<compile_context>
chip_gen: v7x
topology: tpu7x:2x2x1
jax: 0.10.0
libtpu: 0.0.40
codegen_flags: <defaults>
</compile_context>

<pallas_src>
import functools

import jax
import jax.numpy as jnp
from jax import lax
from jax.experimental import pallas as pl
from jax.experimental.pallas import tpu as pltpu

EMB_DIM = 768   # CLIP ViT-B-16 embedding dim implied by the 768-wide discriminator
VOCAB = 512


# ----------------------------------------------------------------------------
# Pallas kernels
# ----------------------------------------------------------------------------
def _matmul_bias_kernel(x_ref, w_ref, b_ref, o_ref):
    # bf16 MXU matmul (mirrors torch.cuda.amp.autocast), f32 accumulation,
    # bias added in the epilogue.
    o_ref[...] = (
        jnp.dot(x_ref[...], w_ref[...], preferred_element_type=jnp.float32)
        + b_ref[...])


def matmul_bias(x_bf16, w_bf16, b_f32):
    """[M,K] bf16 @ [K,N] bf16 + [N] f32 -> [M,N] f32.

    Single K step (largest weight here is 3072x768 bf16 = 4.5 MiB, fits VMEM).
    The N axis is split 2-way (when divisible by 256) and marked "parallel":
    each v7x TensorCore streams a disjoint half of the weight; M is never
    split (it is tiny and splitting it only adds serial grid overhead /
    duplicate weight DMA).
    """
    M, K = x_bf16.shape
    _, N = w_bf16.shape
    tn = N // 2 if (N % 256 == 0) else N
    return pl.pallas_call(
        _matmul_bias_kernel,
        out_shape=jax.ShapeDtypeStruct((M, N), jnp.float32),
        grid_spec=pltpu.PrefetchScalarGridSpec(
            num_scalar_prefetch=0,
            grid=(N // tn,),
            in_specs=[
                pl.BlockSpec((M, K), lambda j: (0, 0)),
                pl.BlockSpec((K, tn), lambda j: (0, j)),
                pl.BlockSpec((1, tn), lambda j: (0, j)),
            ],
            out_specs=pl.BlockSpec((M, tn), lambda j: (0, j)),
        ),
        compiler_params=pltpu.CompilerParams(
            dimension_semantics=("parallel",)),
    )(x_bf16, w_bf16, b_f32.reshape(1, N).astype(jnp.float32))


def _stable_softplus(z):
    # softplus(z) = log(1 + exp(z)), computed without overflow.
    return jnp.maximum(z, 0.0) + jnp.log1p(jnp.exp(-jnp.abs(z)))


def _disc_adv_kernel(x_ref, coef_ref, d1_ref, b1_ref, d2_ref, b2_ref,
                     w3t_ref, b3_ref, o_ref, *, n_src):
    # Fused: discriminator MLP over concat([source_filtered, target]) rows,
    # log-sigmoid adversarial terms, weighted reduction -> scalar loss.
    # Discriminator weights are DMA'd from HBM exactly once.
    x = x_ref[...]                                                   # bf16 [R,768]
    h = jnp.dot(x, d1_ref[...], preferred_element_type=jnp.float32) + b1_ref[...]
    h = jnp.maximum(h, 0.0)
    h = jnp.dot(h.astype(jnp.bfloat16), d2_ref[...],
                preferred_element_type=jnp.float32) + b2_ref[...]
    h = jnp.maximum(h, 0.0)

    # Final Linear(768, 2) as two lane reductions against the transposed
    # [2, 768] weight (avoids a 128-wide zero-padded MXU pass).
    w3t = w3t_ref[...]
    z0 = jnp.sum(h * w3t[0:1, :], axis=-1, keepdims=True) + b3_ref[0]   # [R,1]
    z1 = jnp.sum(h * w3t[1:2, :], axis=-1, keepdims=True) + b3_ref[1]   # [R,1]

    rows = lax.broadcasted_iota(jnp.int32, z0.shape, 0)
    is_src = rows < n_src
    # source rows:  log(sigmoid(z))   = -softplus(-z)
    # target rows:  log(1-sigmoid(z)) = -softplus(z)
    lp = jnp.where(is_src,
                   -(_stable_softplus(-z0) + _stable_softplus(-z1)),
                   -(_stable_softplus(z0) + _stable_softplus(z1)))       # [R,1]

    # coef already carries W2[r]/(2*S) (source rows) and W2[r]/(2*B) (target
    # rows); a single (1,R)x(R,1) contraction gives the weighted means.
    o_ref[...] = -lax.dot_general(coef_ref[...], lp, (((1,), (0,)), ((), ())),
                                  preferred_element_type=jnp.float32)


def adversarial_loss(source, target, w2_weights, disc_params):
    """-(mean(W2*log(sigmoid(D(src)))) + mean(W2*log(1-sigmoid(D(tgt)))))."""
    d1, b1, d2, b2, w3t, b3 = disc_params
    S = source.shape[0]
    B = target.shape[0]
    # Reference broadcasts W2 [S,1] against prob_target [B,2]; only shape
    # consistent when S == B (ratio == 1), same constraint as the PyTorch code.
    x = jnp.concatenate([source, target], axis=0).astype(jnp.bfloat16)  # [S+B,768]
    coef = jnp.concatenate([w2_weights / (2.0 * S),
                            w2_weights / (2.0 * B)], axis=0)
    coef = coef.reshape(1, S + B).astype(jnp.float32)                   # lane-dense row
    out = pl.pallas_call(
        functools.partial(_disc_adv_kernel, n_src=S),
        out_shape=jax.ShapeDtypeStruct((1, 1), jnp.float32),
        grid_spec=pltpu.PrefetchScalarGridSpec(
            num_scalar_prefetch=0,
            grid=(1,),
            in_specs=[
                pl.BlockSpec((S + B, EMB_DIM), lambda i: (0, 0)),
                pl.BlockSpec((1, S + B), lambda i: (0, 0)),
                pl.BlockSpec((EMB_DIM, EMB_DIM), lambda i: (0, 0)),
                pl.BlockSpec((1, EMB_DIM), lambda i: (0, 0)),
                pl.BlockSpec((EMB_DIM, EMB_DIM), lambda i: (0, 0)),
                pl.BlockSpec((1, EMB_DIM), lambda i: (0, 0)),
                pl.BlockSpec((2, EMB_DIM), lambda i: (0, 0)),
                pl.BlockSpec(memory_space=pltpu.MemorySpace.SMEM),
            ],
            out_specs=pl.BlockSpec((1, 1), lambda i: (0, 0)),
        ),
        compiler_params=pltpu.CompilerParams(dimension_semantics=("arbitrary",)),
    )(x, coef, d1, b1.reshape(1, -1), d2, b2.reshape(1, -1), w3t, b3)
    return out[0, 0]


# ----------------------------------------------------------------------------
# Tiny glue kept in plain JAX (8x768 elementwise / 8x8 matmuls — cheaper as
# fused XLA than standalone pallas_call launches).
# ----------------------------------------------------------------------------
def l2norm(x, eps=1e-8):
    # Exact PyTorch l2norm semantics: x / (sqrt(sum x^2) + eps).
    norm = jnp.sqrt(jnp.sum(x * x, axis=-1, keepdims=True)) + eps
    return x / norm


def cosine_sim(a, b):
    an = l2norm(a.astype(jnp.float32))
    bn = l2norm(b.astype(jnp.float32))
    return an @ bn.T


def triplet_margin_loss(anchor, positive, negatives, margin):
    # nn.TripletMarginLoss semantics: d(x,y) = ||x - y + eps||_2, eps=1e-6,
    # mean reduction.
    eps = 1e-6
    d_ap = jnp.sqrt(jnp.sum((anchor - positive + eps) ** 2, axis=-1))
    d_an = jnp.sqrt(jnp.sum((anchor - negatives + eps) ** 2, axis=-1))
    return jnp.mean(jnp.maximum(d_ap - d_an + margin, 0.0))


# ----------------------------------------------------------------------------
# Stand-in CLIP encoders + parameters
# ----------------------------------------------------------------------------
# TODO(synk): the pretrained open_clip ViT-B-16 ('laion2B-s34B-b88K') towers cannot
# be reproduced here; they are replaced by deterministic linear encoders producing
# the 768-d embeddings the rest of the module (discriminator, losses) operates on.
def init_params(key, img_flat):
    ks = jax.random.split(key, 6)
    p = {}
    p["w_img"] = (0.02 * jax.random.normal(ks[0], (img_flat, EMB_DIM), jnp.float32)
                  ).astype(jnp.bfloat16)
    p["b_img"] = jnp.zeros((EMB_DIM,), jnp.float32)
    p["tok_emb"] = 0.02 * jax.random.normal(ks[1], (VOCAB, EMB_DIM), jnp.float32)
    p["w_txt"] = (0.05 * jax.random.normal(ks[2], (EMB_DIM, EMB_DIM), jnp.float32)
                  ).astype(jnp.bfloat16)
    p["b_txt"] = jnp.zeros((EMB_DIM,), jnp.float32)
    p["d_w1"] = (0.03 * jax.random.normal(ks[3], (EMB_DIM, EMB_DIM), jnp.float32)
                 ).astype(jnp.bfloat16)
    p["d_b1"] = jnp.zeros((EMB_DIM,), jnp.float32)
    p["d_w2"] = (0.03 * jax.random.normal(ks[4], (EMB_DIM, EMB_DIM), jnp.float32)
                 ).astype(jnp.bfloat16)
    p["d_b2"] = jnp.zeros((EMB_DIM,), jnp.float32)
    # Final Linear(768, 2) stored transposed [2, 768] (lane-aligned), f32.
    p["d_w3t"] = 0.03 * jax.random.normal(ks[5], (2, EMB_DIM), jnp.float32)
    p["d_b3"] = jnp.zeros((2,), jnp.float32)
    return p


def encode_image(params, img_nchw):
    n = img_nchw.shape[0]
    x = img_nchw.reshape(n, -1).astype(jnp.bfloat16)
    return matmul_bias(x, params["w_img"], params["b_img"])


def encode_images_pair(params, img_a, img_b):
    # Batch the two image-encoder calls: one weight stream, one kernel launch.
    n = img_a.shape[0]
    x = jnp.concatenate([img_a, img_b], axis=0).reshape(2 * n, -1).astype(jnp.bfloat16)
    emb = matmul_bias(x, params["w_img"], params["b_img"])
    return emb[:n], emb[n:]


def encode_text(params, tokens):
    emb = params["tok_emb"][tokens]          # [B, L, 768] gather (plain JAX)
    pooled = jnp.mean(emb, axis=1).astype(jnp.bfloat16)
    return matmul_bias(pooled, params["w_txt"], params["b_txt"])


def encode_texts_pair(params, tok_a, tok_b):
    n = tok_a.shape[0]
    toks = jnp.concatenate([tok_a, tok_b], axis=0)
    emb = params["tok_emb"][toks]            # [2B, L, 768]
    pooled = jnp.mean(emb, axis=1).astype(jnp.bfloat16)
    out = matmul_bias(pooled, params["w_txt"], params["b_txt"])
    return out[:n], out[n:]


# ----------------------------------------------------------------------------
# UrbanCross_finetune_curriculum forward
# ----------------------------------------------------------------------------
def urbancross_forward(params, img_source, img_target, text_source, text_target,
                       num_cycle_of_target=0, val=False):
    if val:
        return urbancross_forward_val(params, img_target, text_target)

    ratio = min(0.2 + 0.2 * num_cycle_of_target, 1.0)
    # NOTE: torch.cuda.amp.autocast mixed precision -> bf16 matmuls, f32 accum.

    img_emb_source, img_emb_target = encode_images_pair(params, img_source, img_target)
    text_emb_source, text_emb_target = encode_texts_pair(params, text_source, text_target)

    W1 = cosine_sim(text_emb_target, text_emb_source)          # [B, B]
    W1_mean = jnp.mean(W1, axis=0)                              # [B]
    batchsize = img_emb_source.shape[0]
    selected_batchsize = int(batchsize * ratio)

    sorted_W1 = -jnp.sort(-W1, axis=1)                          # descending
    W2 = sorted_W1[:, :selected_batchsize]
    sorted_W1_mean_index = jnp.argsort(-W1_mean)                # descending
    sel_idx = sorted_W1_mean_index[:selected_batchsize]
    img_emb_source_filtered = img_emb_source[sel_idx]
    text_emb_source_filtered = text_emb_source[sel_idx]

    W2 = jnp.sum(W2, axis=1)
    W2 = (W2 - jnp.min(W2)) / (jnp.max(W2) - jnp.min(W2))
    W2 = W2 / jnp.sum(W2)

    negatives = img_emb_target
    similarity_matrix = cosine_sim(img_emb_source_filtered, negatives)
    hard_negatives_idx = jnp.argmax(similarity_matrix, axis=1)
    hard_negatives = negatives[hard_negatives_idx]

    margin = min(0.5 + 0.2 * num_cycle_of_target, 1.5)
    trip = triplet_margin_loss(img_emb_source_filtered, text_emb_source_filtered,
                               hard_negatives, margin)

    disc_params = (params["d_w1"], params["d_b1"], params["d_w2"],
                   params["d_b2"], params["d_w3t"], params["d_b3"])
    adv = adversarial_loss(img_emb_source_filtered, img_emb_target, W2, disc_params)
    return trip, adv, ratio


def urbancross_forward_val(params, img_target, text_target):
    img_emb = encode_image(params, img_target)
    text_emb = encode_text(params, text_target)
    return cosine_sim(img_emb, text_emb)


# ----------------------------------------------------------------------------
if __name__ == "__main__":
    key = jax.random.PRNGKey(0)
    kp, k1, k2, k3, k4 = jax.random.split(key, 5)

    B, C, H, W, L = 8, 3, 32, 32, 16
    params = init_params(kp, img_flat=C * H * W)

    img_source = jax.random.normal(k1, (B, C, H, W), jnp.float32)
    img_target = jax.random.normal(k2, (B, C, H, W), jnp.float32)
    text_source = jax.random.randint(k3, (B, L), 0, VOCAB, jnp.int32)
    text_target = jax.random.randint(k4, (B, L), 0, VOCAB, jnp.int32)

    # num_cycle_of_target=4 -> ratio=1.0 (selected batch == batch), the only
    # shape-consistent configuration of the reference adversarial-loss broadcast.
    trip, adv, ratio = urbancross_forward(params, img_source, img_target,
                                          text_source, text_target,
                                          num_cycle_of_target=4)
    jax.block_until_ready((trip, adv))
    assert ratio == 1.0
    assert bool(jnp.isfinite(trip)) and bool(jnp.isfinite(adv))
    print("KERNEL_OK")
</pallas_src>

<mosaic_0001>
module attributes {stable_mosaic.version = 11 : i64} {
  func.func @_matmul_bias_kernel(%arg0: i32, %arg1: memref<16x3072xbf16, #tpu.memory_space<vmem>>, %arg2: memref<3072x384xbf16, #tpu.memory_space<vmem>>, %arg3: memref<1x384xf32, #tpu.memory_space<vmem>>, %arg4: memref<16x384xf32, #tpu.memory_space<vmem>>) attributes {dimension_semantics = [#tpu.dimension_semantics<parallel>], iteration_bounds = array<i64: 2>, scalar_prefetch = 0 : i64, scratch_operands = 0 : i64, tpu.core_type = #tpu.core_type<tc>, window_params = [{pipeline_mode = #tpu.pipeline_mode<synchronous>, transform_indices = @transform_0, window_bounds = array<i64: 16, 3072>}, {transform_indices = @transform_1, window_bounds = array<i64: 3072, 384>}, {transform_indices = @transform_2, window_bounds = array<i64: 1, 384>}, {transform_indices = @transform_3, window_bounds = array<i64: 16, 384>}]} {
    %c0 = arith.constant 0 : index
    %c0_0 = arith.constant 0 : index
    %0 = vector.load %arg1[%c0, %c0_0] : memref<16x3072xbf16, #tpu.memory_space<vmem>>, vector<16x3072xbf16>
    %c0_1 = arith.constant 0 : index
    %c0_2 = arith.constant 0 : index
    %1 = vector.load %arg2[%c0_1, %c0_2] : memref<3072x384xbf16, #tpu.memory_space<vmem>>, vector<3072x384xbf16>
    %cst = arith.constant dense<0.000000e+00> : vector<16x384xf32>
    %2 = tpu.matmul %0, %1, %cst {dimension_numbers = #tpu.dot_dimension_numbers<[1], [0], [0], [1], [0, 0, 1, 1], [], []>} : vector<16x3072xbf16>, vector<3072x384xbf16>, vector<16x384xf32> -> vector<16x384xf32>
    %c0_3 = arith.constant 0 : index
    %c0_4 = arith.constant 0 : index
    %3 = vector.load %arg3[%c0_3, %c0_4] : memref<1x384xf32, #tpu.memory_space<vmem>>, vector<1x384xf32>
    %4 = vector.broadcast %3 : vector<1x384xf32> to vector<16x384xf32>
    %5 = arith.addf %2, %4 : vector<16x384xf32>
    %c0_5 = arith.constant 0 : index
    %c0_6 = arith.constant 0 : index
    %6 = vector.load %arg4[%c0_5, %c0_6] : memref<16x384xf32, #tpu.memory_space<vmem>>, vector<16x384xf32>
    tpu.vector_store %arg4[%c0_5, %c0_6], %5 {strides = array<i32>} : memref<16x384xf32, #tpu.memory_space<vmem>>, vector<16x384xf32>,
    return
  }
  func.func @transform_0(%arg0: i32) -> (i32, i32) {
    %c0_i32 = arith.constant 0 : i32
    %c0_i32_0 = arith.constant 0 : i32
    %c0_i32_1 = arith.constant 0 : i32
    return %c0_i32, %c0_i32_0 : i32, i32
  }
  func.func @transform_1(%arg0: i32) -> (i32, i32) {
    %c0_i32 = arith.constant 0 : i32
    %c0_i32_0 = arith.constant 0 : i32
    return %c0_i32, %arg0 : i32, i32
  }
  func.func @transform_2(%arg0: i32) -> (i32, i32) {
    %c0_i32 = arith.constant 0 : i32
    %c0_i32_0 = arith.constant 0 : i32
    return %c0_i32, %arg0 : i32, i32
  }
  func.func @transform_3(%arg0: i32) -> (i32, i32) {
    %c0_i32 = arith.constant 0 : i32
    %c0_i32_0 = arith.constant 0 : i32
    return %c0_i32, %arg0 : i32, i32
  }
}

</mosaic_0001>

<llo_original>
// kernel: tpu_custom_call.1
$region0: #{tpu_custom_call.1}
  #allocation0 [shape = 'u32[]', space=smem, size = 0x4, offset = 0x4, fixed_abs, tag = 'smem constant byte address 0x4 - core index']
  #allocation1 [shape = 'u32[144,128]{1,0:T(1,128)}', space=vmem, size = 0x12000, scoped, tag = 'internal scratch']
  %s0 = inlined_call_operand.hbm [shape: bf16[16,3072], index: 0, kind: input, shape index: {}]
  %s1 = inlined_call_operand.hbm [shape: bf16[3072,768], index: 1, kind: input, shape index: {}]
  %s2 = inlined_call_operand.hbm [shape: f32[1,768], index: 2, kind: input, shape index: {}]
  %s3 = inlined_call_operand.hbm [shape: f32[16,768], index: 3, kind: output, shape index: {}]
  %s4 = sld [smem:[#allocation0]]
  $region57: #{tpu_custom_call.1} parent=0
    _
  %s6 = ssub.s32 1, %s4
  %s7 = scalar_select 0, %s6, %s4
  $region1: #{tpu_custom_call.1} parent=0
    #allocation2 [shape = 'u8[98304]{0}', space=vmem, size = 0x18000, scoped, tag = 'input window, operand 0, single buffered']
    #allocation3 [shape = 's32[2]{0}', space=sflag, size = 0x8, scoped, tag = 'scoped memory for tpu_custom_call.1']
    #allocation4 [shape = 's32[2]{0}', space=sflag, size = 0x8, scoped, tag = 'scoped memory for tpu_custom_call.1']
    #allocation5 [shape = 'u8[4718592]{0}', space=vmem, size = 0x480000, scoped, tag = 'input window, operand 1']
    #allocation6 [shape = 's32[2]{0}', space=sflag, size = 0x8, scoped, tag = 'scoped memory for tpu_custom_call.1']
    #allocation7 [shape = 'u8[3072]{0}', space=vmem, size = 0xc00, scoped, tag = 'input window, operand 2']
    #allocation8 [shape = 'u8[49152]{0}', space=vmem, size = 0xc000, scoped, tag = 'output window, operand 0']
    %8 = vsyncpa [#allocation3], 0
    %9 = vsyncpa [#allocation6], 0
    %s10 = scalar_lea.sflag [#allocation6], 1
    %11 = vsyncpa %s10, 0
    %12 = vsyncpa [#allocation4], 0
    %s13 = scalar_lea.sflag [#allocation4], 1
    %14 = vsyncpa %s13, 0
    loop: start=0, step=1, limit=4
    $region2: #{tpu_custom_call.1} parent=1 // loop_pre_header
      _
    $region3: #{tpu_custom_call.1} parent=1 // loop_header
      %s16 = sphi 0, %s20
      %p17 = scmp.ge.s32.totalorder %s16, 4
      %s24 = sphi 0, %s24
      %s26 = sphi 0, %s24
      %s27 = sphi 0, %s26
      %s41 = sphi 0, %s27
      %s47 = sphi 0, %s49
      %s50 = sphi 0, %s47
      %s51 = sphi 0, %s50
      %s67 = sphi 0, %s51
      %s73 = sphi 0, %s75
      %s76 = sphi 0, %s73
      %s77 = sphi 0, %s76
      %s93 = sphi 0, %s77
      %s99 = sphi 0, %s101
      %s102 = sphi 0, %s99
      %s103 = sphi 0, %s102
      %s119 = sphi 0, %s103
    $region4: #{tpu_custom_call.1} parent=1 // loop_header_branch
      %19 = sbr.rel (%p17) target = $region8
    $region5: #{tpu_custom_call.1} parent=1 // loop_body
      %s21 = ssub.s32 %s16, 1
      %s22 = ssub.s32 %s16, 2
      %s23 = sadd.s32 %s16, 1
      %s25 = sadd.s32 %s24, 1
      %p28 = scmp.eq.s32.totalorder %s16, 1
      %p29 = scmp.ne.s32.totalorder %s24, %s26
      %p30 = scmp.eq.s32.totalorder %s16, 0
      %p31 = por %p29, %p30
      %p32 = scmp.ne.s32.totalorder %s24, %s26
      %p33 = scmp.eq.s32.totalorder %s21, 1
      %p34 = por %p32, %p33
      %p35 = scmp.ne.s32.totalorder %s26, %s27
      %p36 = scmp.eq.s32.totalorder %s21, 0
      %p37 = por %p35, %p36
      %p38 = scmp.ne.s32.totalorder %s26, %s27
      %p39 = scmp.eq.s32.totalorder %s22, 1
      %p40 = por %p38, %p39
      %p42 = scmp.ne.s32.totalorder %s27, %s41
      %p43 = scmp.eq.s32.totalorder %s22, 0
      %p44 = por %p42, %p43
      %s45 = ssub.s32 %s16, %s23
      %p46 = scmp.eq.s32.totalorder %s45, 0
      %s48 = sadd.s32 %s47, 1
      %s49 = scalar_select %p46, %s47, %s48
      %p52 = pneg %p46
      %p53 = scmp.eq.s32.totalorder %s16, 1
      %p54 = por %p52, %p53
      %p55 = scmp.ne.s32.totalorder %s47, %s50
      %p56 = scmp.eq.s32.totalorder %s16, 0
      %p57 = por %p55, %p56
      %p58 = scmp.ne.s32.totalorder %s47, %s50
      %p59 = scmp.eq.s32.totalorder %s21, 1
      %p60 = por %p58, %p59
      %p61 = scmp.ne.s32.totalorder %s50, %s51
      %p62 = scmp.eq.s32.totalorder %s21, 0
      %p63 = por %p61, %p62
      %p64 = scmp.ne.s32.totalorder %s50, %s51
      %p65 = scmp.eq.s32.totalorder %s22, 1
      %p66 = por %p64, %p65
      %p68 = scmp.ne.s32.totalorder %s51, %s67
      %p69 = scmp.eq.s32.totalorder %s22, 0
      %p70 = por %p68, %p69
      %s71 = ssub.s32 %s16, %s23
      %p72 = scmp.eq.s32.totalorder %s71, 0
      %s74 = sadd.s32 %s73, 1
      %s75 = scalar_select %p72, %s73, %s74
      %p78 = pneg %p72
      %p79 = scmp.eq.s32.totalorder %s16, 1
      %p80 = por %p78, %p79
      %p81 = scmp.ne.s32.totalorder %s73, %s76
      %p82 = scmp.eq.s32.totalorder %s16, 0
      %p83 = por %p81, %p82
      %p84 = scmp.ne.s32.totalorder %s73, %s76
      %p85 = scmp.eq.s32.totalorder %s21, 1
      %p86 = por %p84, %p85
      %p87 = scmp.ne.s32.totalorder %s76, %s77
      %p88 = scmp.eq.s32.totalorder %s21, 0
      %p89 = por %p87, %p88
      %p90 = scmp.ne.s32.totalorder %s76, %s77
      %p91 = scmp.eq.s32.totalorder %s22, 1
      %p92 = por %p90, %p91
      %p94 = scmp.ne.s32.totalorder %s77, %s93
      %p95 = scmp.eq.s32.totalorder %s22, 0
      %p96 = por %p94, %p95
      %s97 = ssub.s32 %s16, %s23
      %p98 = scmp.eq.s32.totalorder %s97, 0
      %s100 = sadd.s32 %s99, 1
      %s101 = scalar_select %p98, %s99, %s100
      %p104 = pneg %p98
      %p105 = scmp.eq.s32.totalorder %s16, 1
      %p106 = por %p104, %p105
      %p107 = scmp.ne.s32.totalorder %s99, %s102
      %p108 = scmp.eq.s32.totalorder %s16, 0
      %p109 = por %p107, %p108
      %p110 = scmp.ne.s32.totalorder %s99, %s102
      %p111 = scmp.eq.s32.totalorder %s21, 1
      %p112 = por %p110, %p111
      %p113 = scmp.ne.s32.totalorder %s102, %s103
      %p114 = scmp.eq.s32.totalorder %s21, 0
      %p115 = por %p113, %p114
      %p116 = scmp.ne.s32.totalorder %s102, %s103
      %p117 = scmp.eq.s32.totalorder %s22, 1
      %p118 = por %p116, %p117
      %p120 = scmp.ne.s32.totalorder %s103, %s119
      %p121 = scmp.eq.s32.totalorder %s22, 0
      %p122 = por %p120, %p121
      %p123 = scmp.le.s32.totalorder 1, %s16
      %p124 = scmp.lt.s32.totalorder %s16, 3
      %p125 = pnand %p123, %p124
      %p126 = pneg %p125
      // Predicated region
      $region9: #{tpu_custom_call.1} parent=5 // pred_check
        _
      $region10: #{tpu_custom_call.1} parent=5 // pred_check_branch
        %128 = sbr.rel (%p125) target = $region12
      $region11: #{tpu_custom_call.1} parent=5 // pred_region
        %s129 = ssub.s32 %s16, 1
        // Predicated region
        $region13: #{tpu_custom_call.1} parent=11 // pred_check
          %p130 = pneg %p37
        $region14: #{tpu_custom_call.1} parent=11 // pred_check_branch
          %132 = sbr.rel (%p130) target = $region16
        $region15: #{tpu_custom_call.1} parent=11 // pred_region
          %s134 = ssub.s32 3072, 3072
          %135 = vsyncadd [#allocation3], %s134
          %s136 = sshll.u32 [#allocation2], 4
          %s137 = int_to_ptr.vmem [resolvable:$true] %s136
          %142 = dma.hbm_to_vmem [thread:$0]  %s0, 3072, %s137, [#allocation3], 1536, 1536, 96
        $region16: #{tpu_custom_call.1} parent=11 // pred_fallthru
          _
      $region12: #{tpu_custom_call.1} parent=5 // pred_fallthru
        _
      %p143 = scmp.lt.s32.totalorder %s16, 2
      // Predicated region
      $region17: #{tpu_custom_call.1} parent=5 // pred_check
        %p144 = pneg %p143
      $region18: #{tpu_custom_call.1} parent=5 // pred_check_branch
        %146 = sbr.rel (%p144) target = $region20
      $region19: #{tpu_custom_call.1} parent=5 // pred_region
        // Predicated region
        $region21: #{tpu_custom_call.1} parent=19 // pred_check
          %p147 = pneg %p57
        $region22: #{tpu_custom_call.1} parent=19 // pred_check_branch
          %149 = sbr.rel (%p147) target = $region24
        $region23: #{tpu_custom_call.1} parent=19 // pred_region
          %s150 = sand.u32 %s16, 1
          %s151 = scalar_lea.sflag [#allocation6], %s150
          %s152 = sand.u32 %s47, 1
          %s153 = smul.addr %s152, 4608
          %s154 = scalar_lea.vmem [#allocation5], %s153
          %s155 = smul.u32 3, %s16
          %s157 = ssub.s32 73728, 73728
          %158 = vsyncadd %s151, %s157
          %s159 = smul.addr %s155, 64
          %s160 = scalar_lea.hbm %s1, %s159
          %s161 = sshll.u32 %s154, 4
          %s162 = int_to_ptr.vmem [resolvable:$true] %s161
          %167 = dma.hbm_to_vmem [thread:$0]  %s160, 73728, %s162, %s151, 384, 192, 12
        $region24: #{tpu_custom_call.1} parent=19 // pred_fallthru
          _
        // Predicated region
        $region25: #{tpu_custom_call.1} parent=19 // pred_check
          %p168 = pneg %p83
        $region26: #{tpu_custom_call.1} parent=19 // pred_check_branch
          %170 = sbr.rel (%p168) target = $region28
        $region27: #{tpu_custom_call.1} parent=19 // pred_region
          %s171 = sand.u32 %s16, 1
          %s172 = scalar_lea.sflag [#allocation6], %s171
          %s173 = sand.u32 %s73, 1
          %s174 = smul.addr %s173, 3
          %s175 = scalar_lea.vmem [#allocation7], %s174
          %s176 = smul.u32 3, %s16
          %s178 = ssub.s32 48, 48
          %179 = vsyncadd %s172, %s178
          %s180 = smul.addr %s176, 16
          %s181 = scalar_lea.hbm %s2, %s180
          %s183 = sshll.u32 %s175, 4
          %s184 = int_to_ptr.vmem [resolvable:$true] %s183
          %186 = dma.hbm_to_vmem [thread:$0]  %s181, 48, %s184, %s172
        $region28: #{tpu_custom_call.1} parent=19 // pred_fallthru
          _
      $region20: #{tpu_custom_call.1} parent=5 // pred_fallthru
        _
      %p187 = scmp.le.s32.totalorder 1, %s16
      %p188 = scmp.lt.s32.totalorder %s16, 3
      %p189 = pnand %p187, %p188
      %p190 = pneg %p189
      // Predicated region
      $region29: #{tpu_custom_call.1} parent=5 // pred_check
        _
      $region30: #{tpu_custom_call.1} parent=5 // pred_check_branch
        %192 = sbr.rel (%p189) target = $region32
      $region31: #{tpu_custom_call.1} parent=5 // pred_region
        %s193 = ssub.s32 %s16, 1
        // Predicated region
        $region33: #{tpu_custom_call.1} parent=31 // pred_check
          %p194 = pneg %p37
        $region34: #{tpu_custom_call.1} parent=31 // pred_check_branch
          %196 = sbr.rel (%p194) target = $region36
        $region35: #{tpu_custom_call.1} parent=31 // pred_region
          %197 = dma.done [#allocation3], 3072
        $region36: #{tpu_custom_call.1} parent=31 // pred_fallthru
          _
        %s198 = sand.u32 %s21, 1
        %s199 = scalar_lea.sflag [#allocation6], %s198
        %s200 = sand.u32 %s50, 1
        %s201 = smul.addr %s200, 4608
        %s202 = scalar_lea.vmem [#allocation5], %s201
        // Predicated region
        $region37: #{tpu_custom_call.1} parent=31 // pred_check
          %p203 = pneg %p63
        $region38: #{tpu_custom_call.1} parent=31 // pred_check_branch
          %205 = sbr.rel (%p203) target = $region40
        $region39: #{tpu_custom_call.1} parent=31 // pred_region
          %206 = dma.done %s199, 73728
        $region40: #{tpu_custom_call.1} parent=31 // pred_fallthru
          _
        %s207 = sand.u32 %s21, 1
        %s208 = scalar_lea.sflag [#allocation6], %s207
        %s209 = sand.u32 %s76, 1
        %s210 = smul.addr %s209, 3
        %s211 = scalar_lea.vmem [#allocation7], %s210
        // Predicated region
        $region41: #{tpu_custom_call.1} parent=31 // pred_check
          %p212 = pneg %p89
        $region42: #{tpu_custom_call.1} parent=31 // pred_check_branch
          %214 = sbr.rel (%p212) target = $region44
        $region43: #{tpu_custom_call.1} parent=31 // pred_region
          %215 = dma.done %s208, 48
        $region44: #{tpu_custom_call.1} parent=31 // pred_fallthru
          _
        %p216 = pneg %p37
        %p217 = pneg %p34
        %s218 = sand.u32 %s21, 1
        %s219 = scalar_lea.sflag [#allocation6], %s218
        %s220 = sand.u32 %s50, 1
        %s221 = smul.addr %s220, 4608
        %s222 = scalar_lea.vmem [#allocation5], %s221
        %p223 = pneg %p63
        %p224 = pneg %p60
        %s225 = sand.u32 %s21, 1
        %s226 = scalar_lea.sflag [#allocation6], %s225
        %s227 = sand.u32 %s76, 1
        %s228 = smul.addr %s227, 3
        %s229 = scalar_lea.vmem [#allocation7], %s228
        %p230 = pneg %p89
        %p231 = pneg %p86
        %p232 = pneg %p115
        %p233 = pneg %p112
        %s234 = sand.u32 %s102, 1
        %s235 = scalar_lea.sflag [#allocation4], %s234
        %s236 = sand.u32 %s102, 1
        %s237 = smul.addr %s236, 48
        %s238 = scalar_lea.vmem [#allocation8], %s237
        %s239 = smul.u32 3, %s21
        %s240 = smul.u32 3, %s21
        %s241 = smul.u32 3, %s21
        %v243 = vld [vmem:[#allocation2] sm:$0xff]
        %v244 = vld [vmem:[#allocation2 + $0x8] sm:$0xff]
        %v245 = vld [vmem:[#allocation2 + $0x10] sm:$0xff]
        %v246 = vld [vmem:[#allocation2 + $0x18] sm:$0xff]
        %v247 = vld [vmem:[#allocation2 + $0x20] sm:$0xff]
        %v248 = vld [vmem:[#allocation2 + $0x28] sm:$0xff]
        %v249 = vld [vmem:[#allocation2 + $0x30] sm:$0xff]
        %v250 = vld [vmem:[#allocation2 + $0x38] sm:$0xff]
        %v251 = vld [vmem:[#allocation2 + $0x40] sm:$0xff]
        %v252 = vld [vmem:[#allocation2 + $0x48] sm:$0xff]
        %v253 = vld [vmem:[#allocation2 + $0x50] sm:$0xff]
        %v254 = vld [vmem:[#allocation2 + $0x58] sm:$0xff]
        %v255 = vld [vmem:[#allocation2 + $0x60] sm:$0xff]
        %v256 = vld [vmem:[#allocation2 + $0x68] sm:$0xff]
        %v257 = vld [vmem:[#allocation2 + $0x70] sm:$0xff]
        %v258 = vld [vmem:[#allocation2 + $0x78] sm:$0xff]
        %v259 = vld [vmem:[#allocation2 + $0x80] sm:$0xff]
        %v260 = vld [vmem:[#allocation2 + $0x88] sm:$0xff]
        %v261 = vld [vmem:[#allocation2 + $0x90] sm:$0xff]
        %v262 = vld [vmem:[#allocation2 + $0x98] sm:$0xff]
        %v263 = vld [vmem:[#allocation2 + $0xa0] sm:$0xff]
        %v264 = vld [vmem:[#allocation2 + $0xa8] sm:$0xff]
        %v265 = vld [vmem:[#allocation2 + $0xb0] sm:$0xff]
        %v266 = vld [vmem:[#allocation2 + $0xb8] sm:$0xff]
        %v267 = vld [vmem:[%s202] sm:$0xff]
        %v268 = vld [vmem:[%s202 + $0x8] sm:$0xf]
        %v269 = vld [vmem:[%s202 + $0xc] sm:$0xff]
        %v270 = vld [vmem:[%s202 + $0x14] sm:$0xf]
        %v271 = vld [vmem:[%s202 + $0x18] sm:$0xff]
        %v272 = vld [vmem:[%s202 + $0x20] sm:$0xf]
        %v273 = vld [vmem:[%s202 + $0x24] sm:$0xff]
        %v274 = vld [vmem:[%s202 + $0x2c] sm:$0xf]
        %v275 = vld [vmem:[%s202 + $0x30] sm:$0xff]
        %v276 = vld [vmem:[%s202 + $0x38] sm:$0xf]
        %v277 = vld [vmem:[%s202 + $0x3c] sm:$0xff]
        %v278 = vld [vmem:[%s202 + $0x44] sm:$0xf]
        %v279 = vld [vmem:[%s202 + $0x48] sm:$0xff]
        %v280 = vld [vmem:[%s202 + $0x50] sm:$0xf]
        %v281 = vld [vmem:[%s202 + $0x54] sm:$0xff]
        %v282 = vld [vmem:[%s202 + $0x5c] sm:$0xf]
        %v283 = vld [vmem:[%s202 + $0x60] sm:$0xff]
        %v284 = vld [vmem:[%s202 + $0x68] sm:$0xf]
        %v285 = vld [vmem:[%s202 + $0x6c] sm:$0xff]
        %v286 = vld [vmem:[%s202 + $0x74] sm:$0xf]
        %v287 = vld [vmem:[%s202 + $0x78] sm:$0xff]
        %v288 = vld [vmem:[%s202 + $0x80] sm:$0xf]
        %v289 = vld [vmem:[%s202 + $0x84] sm:$0xff]
        %v290 = vld [vmem:[%s202 + $0x8c] sm:$0xf]
        %v291 = vld [vmem:[%s202 + $0x90] sm:$0xff]
        %v292 = vld [vmem:[%s202 + $0x98] sm:$0xf]
        %v293 = vld [vmem:[%s202 + $0x9c] sm:$0xff]
        %v294 = vld [vmem:[%s202 + $0xa4] sm:$0xf]
        %v295 = vld [vmem:[%s202 + $0xa8] sm:$0xff]
        %v296 = vld [vmem:[%s202 + $0xb0] sm:$0xf]
        %v297 = vld [vmem:[%s202 + $0xb4] sm:$0xff]
        %v298 = vld [vmem:[%s202 + $0xbc] sm:$0xf]
        %v299 = vld [vmem:[%s202 + $0xc0] sm:$0xff]
        %v300 = vld [vmem:[%s202 + $0xc8] sm:$0xf]
        %v301 = vld [vmem:[%s202 + $0xcc] sm:$0xff]
        %v302 = vld [vmem:[%s202 + $0xd4] sm:$0xf]
        %v303 = vld [vmem:[%s202 + $0xd8] sm:$0xff]
        %v304 = vld [vmem:[%s202 + $0xe0] sm:$0xf]
        %v305 = vld [vmem:[%s202 + $0xe4] sm:$0xff]
        %v306 = vld [vmem:[%s202 + $0xec] sm:$0xf]
        %v307 = vld [vmem:[%s202 + $0xf0] sm:$0xff]
        %v308 = vld [vmem:[%s202 + $0xf8] sm:$0xf]
        %v309 = vld [vmem:[%s202 + $0xfc] sm:$0xff]
        %v310 = vld [vmem:[%s202 + $0x104] sm:$0xf]
        %v311 = vld [vmem:[%s202 + $0x108] sm:$0xff]
        %v312 = vld [vmem:[%s202 + $0x110] sm:$0xf]
        %v313 = vld [vmem:[%s202 + $0x114] sm:$0xff]
        %v314 = vld [vmem:[%s202 + $0x11c] sm:$0xf]
        %v315 = vld [vmem:[%s202 + $0x120] sm:$0xff]
        %v316 = vld [vmem:[%s202 + $0x128] sm:$0xf]
        %v317 = vld [vmem:[%s202 + $0x12c] sm:$0xff]
        %v318 = vld [vmem:[%s202 + $0x134] sm:$0xf]
        %v319 = vld [vmem:[%s202 + $0x138] sm:$0xff]
        %v320 = vld [vmem:[%s202 + $0x140] sm:$0xf]
        %v321 = vld [vmem:[%s202 + $0x144] sm:$0xff]
        %v322 = vld [vmem:[%s202 + $0x14c] sm:$0xf]
        %v323 = vld [vmem:[%s202 + $0x150] sm:$0xff]
        %v324 = vld [vmem:[%s202 + $0x158] sm:$0xf]
        %v325 = vld [vmem:[%s202 + $0x15c] sm:$0xff]
        %v326 = vld [vmem:[%s202 + $0x164] sm:$0xf]
        %v327 = vld [vmem:[%s202 + $0x168] sm:$0xff]
        %v328 = vld [vmem:[%s202 + $0x170] sm:$0xf]
        %v329 = vld [vmem:[%s202 + $0x174] sm:$0xff]
        %v330 = vld [vmem:[%s202 + $0x17c] sm:$0xf]
        %v331 = vld [vmem:[%s202 + $0x180] sm:$0xff]
        %v332 = vld [vmem:[%s202 + $0x188] sm:$0xf]
        %v333 = vld [vmem:[%s202 + $0x18c] sm:$0xff]
        %v334 = vld [vmem:[%s202 + $0x194] sm:$0xf]
        %v335 = vld [vmem:[%s202 + $0x198] sm:$0xff]
        %v336 = vld [vmem:[%s202 + $0x1a0] sm:$0xf]
        %v337 = vld [vmem:[%s202 + $0x1a4] sm:$0xff]
        %v338 = vld [vmem:[%s202 + $0x1ac] sm:$0xf]
        %v339 = vld [vmem:[%s202 + $0x1b0] sm:$0xff]
        %v340 = vld [vmem:[%s202 + $0x1b8] sm:$0xf]
        %v341 = vld [vmem:[%s202 + $0x1bc] sm:$0xff]
        %v342 = vld [vmem:[%s202 + $0x1c4] sm:$0xf]
        %v343 = vld [vmem:[%s202 + $0x1c8] sm:$0xff]
        %v344 = vld [vmem:[%s202 + $0x1d0] sm:$0xf]
        %v345 = vld [vmem:[%s202 + $0x1d4] sm:$0xff]
        %v346 = vld [vmem:[%s202 + $0x1dc] sm:$0xf]
        %v347 = vld [vmem:[%s202 + $0x1e0] sm:$0xff]
        %v348 = vld [vmem:[%s202 + $0x1e8] sm:$0xf]
        %v349 = vld [vmem:[%s202 + $0x1ec] sm:$0xff]
        %v350 = vld [vmem:[%s202 + $0x1f4] sm:$0xf]
        %v351 = vld [vmem:[%s202 + $0x1f8] sm:$0xff]
        %v352 = vld [vmem:[%s202 + $0x200] sm:$0xf]
        %v353 = vld [vmem:[%s202 + $0x204] sm:$0xff]
        %v354 = vld [vmem:[%s202 + $0x20c] sm:$0xf]
        %v355 = vld [vmem:[%s202 + $0x210] sm:$0xff]
        %v356 = vld [vmem:[%s202 + $0x218] sm:$0xf]
        %v357 = vld [vmem:[%s202 + $0x21c] sm:$0xff]
        %v358 = vld [vmem:[%s202 + $0x224] sm:$0xf]
        %v359 = vld [vmem:[%s202 + $0x228] sm:$0xff]
        %v360 = vld [vmem:[%s202 + $0x230] sm:$0xf]
        %v361 = vld [vmem:[%s202 + $0x234] sm:$0xff]
        %v362 = vld [vmem:[%s202 + $0x23c] sm:$0xf]
        %v363 = vld [vmem:[%s202 + $0x240] sm:$0xff]
        %v364 = vld [vmem:[%s202 + $0x248] sm:$0xf]
        %v365 = vld [vmem:[%s202 + $0x24c] sm:$0xff]
        %v366 = vld [vmem:[%s202 + $0x254] sm:$0xf]
        %v367 = vld [vmem:[%s202 + $0x258] sm:$0xff]
        %v368 = vld [vmem:[%s202 + $0x260] sm:$0xf]
        %v369 = vld [vmem:[%s202 + $0x264] sm:$0xff]
        %v370 = vld [vmem:[%s202 + $0x26c] sm:$0xf]
        %v371 = vld [vmem:[%s202 + $0x270] sm:$0xff]
        %v372 = vld [vmem:[%s202 + $0x278] sm:$0xf]
        %v373 = vld [vmem:[%s202 + $0x27c] sm:$0xff]
        %v374 = vld [vmem:[%s202 + $0x284] sm:$0xf]
        %v375 = vld [vmem:[%s202 + $0x288] sm:$0xff]
        %v376 = vld [vmem:[%s202 + $0x290] sm:$0xf]
        %v377 = vld [vmem:[%s202 + $0x294] sm:$0xff]
        %v378 = vld [vmem:[%s202 + $0x29c] sm:$0xf]
        %v379 = vld [vmem:[%s202 + $0x2a0] sm:$0xff]
        %v380 = vld [vmem:[%s202 + $0x2a8] sm:$0xf]
        %v381 = vld [vmem:[%s202 + $0x2ac] sm:$0xff]
        %v382 = vld [vmem:[%s202 + $0x2b4] sm:$0xf]
        %v383 = vld [vmem:[%s202 + $0x2b8] sm:$0xff]
        %v384 = vld [vmem:[%s202 + $0x2c0] sm:$0xf]
        %v385 = vld [vmem:[%s202 + $0x2c4] sm:$0xff]
        %v386 = vld [vmem:[%s202 + $0x2cc] sm:$0xf]
        %v387 = vld [vmem:[%s202 + $0x2d0] sm:$0xff]
        %v388 = vld [vmem:[%s202 + $0x2d8] sm:$0xf]
        %v389 = vld [vmem:[%s202 + $0x2dc] sm:$0xff]
        %v390 = vld [vmem:[%s202 + $0x2e4] sm:$0xf]
        %v391 = vld [vmem:[%s202 + $0x2e8] sm:$0xff]
        %v392 = vld [vmem:[%s202 + $0x2f0] sm:$0xf]
        %v393 = vld [vmem:[%s202 + $0x2f4] sm:$0xff]
        %v394 = vld [vmem:[%s202 + $0x2fc] sm:$0xf]
        %v395 = vld [vmem:[%s202 + $0x300] sm:$0xff]
        %v396 = vld [vmem:[%s202 + $0x308] sm:$0xf]
        %v397 = vld [vmem:[%s202 + $0x30c] sm:$0xff]
        %v398 = vld [vmem:[%s202 + $0x314] sm:$0xf]
        %v399 = vld [vmem:[%s202 + $0x318] sm:$0xff]
        %v400 = vld [vmem:[%s202 + $0x320] sm:$0xf]
        %v401 = vld [vmem:[%s202 + $0x324] sm:$0xff]
        %v402 = vld [vmem:[%s202 + $0x32c] sm:$0xf]
        %v403 = vld [vmem:[%s202 + $0x330] sm:$0xff]
        %v404 = vld [vmem:[%s202 + $0x338] sm:$0xf]
        %v405 = vld [vmem:[%s202 + $0x33c] sm:$0xff]
        %v406 = vld [vmem:[%s202 + $0x344] sm:$0xf]
        %v407 = vld [vmem:[%s202 + $0x348] sm:$0xff]
        %v408 = vld [vmem:[%s202 + $0x350] sm:$0xf]
        %v409 = vld [vmem:[%s202 + $0x354] sm:$0xff]
        %v410 = vld [vmem:[%s202 + $0x35c] sm:$0xf]
        %v411 = vld [vmem:[%s202 + $0x360] sm:$0xff]
        %v412 = vld [vmem:[%s202 + $0x368] sm:$0xf]
        %v413 = vld [vmem:[%s202 + $0x36c] sm:$0xff]
        %v414 = vld [vmem:[%s202 + $0x374] sm:$0xf]
        %v415 = vld [vmem:[%s202 + $0x378] sm:$0xff]
        %v416 = vld [vmem:[%s202 + $0x380] sm:$0xf]
        %v417 = vld [vmem:[%s202 + $0x384] sm:$0xff]
        %v418 = vld [vmem:[%s202 + $0x38c] sm:$0xf]
        %v419 = vld [vmem:[%s202 + $0x390] sm:$0xff]
        %v420 = vld [vmem:[%s202 + $0x398] sm:$0xf]
        %v421 = vld [vmem:[%s202 + $0x39c] sm:$0xff]
        %v422 = vld [vmem:[%s202 + $0x3a4] sm:$0xf]
        %v423 = vld [vmem:[%s202 + $0x3a8] sm:$0xff]
        %v424 = vld [vmem:[%s202 + $0x3b0] sm:$0xf]
        %v425 = vld [vmem:[%s202 + $0x3b4] sm:$0xff]
        %v426 = vld [vmem:[%s202 + $0x3bc] sm:$0xf]
        %v427 = vld [vmem:[%s202 + $0x3c0] sm:$0xff]
        %v428 = vld [vmem:[%s202 + $0x3c8] sm:$0xf]
        %v429 = vld [vmem:[%s202 + $0x3cc] sm:$0xff]
        %v430 = vld [vmem:[%s202 + $0x3d4] sm:$0xf]
        %v431 = vld [vmem:[%s202 + $0x3d8] sm:$0xff]
        %v432 = vld [vmem:[%s202 + $0x3e0] sm:$0xf]
        %v433 = vld [vmem:[%s202 + $0x3e4] sm:$0xff]
        %v434 = vld [vmem:[%s202 + $0x3ec] sm:$0xf]
        %v435 = vld [vmem:[%s202 + $0x3f0] sm:$0xff]
        %v436 = vld [vmem:[%s202 + $0x3f8] sm:$0xf]
        %v437 = vld [vmem:[%s202 + $0x3fc] sm:$0xff]
        %v438 = vld [vmem:[%s202 + $0x404] sm:$0xf]
        %v439 = vld [vmem:[%s202 + $0x408] sm:$0xff]
        %v440 = vld [vmem:[%s202 + $0x410] sm:$0xf]
        %v441 = vld [vmem:[%s202 + $0x414] sm:$0xff]
        %v442 = vld [vmem:[%s202 + $0x41c] sm:$0xf]
        %v443 = vld [vmem:[%s202 + $0x420] sm:$0xff]
        %v444 = vld [vmem:[%s202 + $0x428] sm:$0xf]
        %v445 = vld [vmem:[%s202 + $0x42c] sm:$0xff]
        %v446 = vld [vmem:[%s202 + $0x434] sm:$0xf]
        %v447 = vld [vmem:[%s202 + $0x438] sm:$0xff]
        %v448 = vld [vmem:[%s202 + $0x440] sm:$0xf]
        %v449 = vld [vmem:[%s202 + $0x444] sm:$0xff]
        %v450 = vld [vmem:[%s202 + $0x44c] sm:$0xf]
        %v451 = vld [vmem:[%s202 + $0x450] sm:$0xff]
        %v452 = vld [vmem:[%s202 + $0x458] sm:$0xf]
        %v453 = vld [vmem:[%s202 + $0x45c] sm:$0xff]
        %v454 = vld [vmem:[%s202 + $0x464] sm:$0xf]
        %v455 = vld [vmem:[%s202 + $0x468] sm:$0xff]
        %v456 = vld [vmem:[%s202 + $0x470] sm:$0xf]
        %v457 = vld [vmem:[%s202 + $0x474] sm:$0xff]
        %v458 = vld [vmem:[%s202 + $0x47c] sm:$0xf]
        %v459 = vld [vmem:[%s202 + $0x480] sm:$0xff]
        %v460 = vld [vmem:[%s202 + $0x488] sm:$0xf]
        %v461 = vld [vmem:[%s202 + $0x48c] sm:$0xff]
        %v462 = vld [vmem:[%s202 + $0x494] sm:$0xf]
        %v463 = vld [vmem:[%s202 + $0x498] sm:$0xff]
        %v464 = vld [vmem:[%s202 + $0x4a0] sm:$0xf]
        %v465 = vld [vmem:[%s202 + $0x4a4] sm:$0xff]
        %v466 = vld [vmem:[%s202 + $0x4ac] sm:$0xf]
        %v467 = vld [vmem:[%s202 + $0x4b0] sm:$0xff]
        %v468 = vld [vmem:[%s202 + $0x4b8] sm:$0xf]
        %v469 = vld [vmem:[%s202 + $0x4bc] sm:$0xff]
        %v470 = vld [vmem:[%s202 + $0x4c4] sm:$0xf]
        %v471 = vld [vmem:[%s202 + $0x4c8] sm:$0xff]
        %v472 = vld [vmem:[%s202 + $0x4d0] sm:$0xf]
        %v473 = vld [vmem:[%s202 + $0x4d4] sm:$0xff]
        %v474 = vld [vmem:[%s202 + $0x4dc] sm:$0xf]
        %v475 = vld [vmem:[%s202 + $0x4e0] sm:$0xff]
        %v476 = vld [vmem:[%s202 + $0x4e8] sm:$0xf]
        %v477 = vld [vmem:[%s202 + $0x4ec] sm:$0xff]
        %v478 = vld [vmem:[%s202 + $0x4f4] sm:$0xf]
        %v479 = vld [vmem:[%s202 + $0x4f8] sm:$0xff]
        %v480 = vld [vmem:[%s202 + $0x500] sm:$0xf]
        %v481 = vld [vmem:[%s202 + $0x504] sm:$0xff]
        %v482 = vld [vmem:[%s202 + $0x50c] sm:$0xf]
        %v483 = vld [vmem:[%s202 + $0x510] sm:$0xff]
        %v484 = vld [vmem:[%s202 + $0x518] sm:$0xf]
        %v485 = vld [vmem:[%s202 + $0x51c] sm:$0xff]
        %v486 = vld [vmem:[%s202 + $0x524] sm:$0xf]
        %v487 = vld [vmem:[%s202 + $0x528] sm:$0xff]
        %v488 = vld [vmem:[%s202 + $0x530] sm:$0xf]
        %v489 = vld [vmem:[%s202 + $0x534] sm:$0xff]
        %v490 = vld [vmem:[%s202 + $0x53c] sm:$0xf]
        %v491 = vld [vmem:[%s202 + $0x540] sm:$0xff]
        %v492 = vld [vmem:[%s202 + $0x548] sm:$0xf]
        %v493 = vld [vmem:[%s202 + $0x54c] sm:$0xff]
        %v494 = vld [vmem:[%s202 + $0x554] sm:$0xf]
        %v495 = vld [vmem:[%s202 + $0x558] sm:$0xff]
        %v496 = vld [vmem:[%s202 + $0x560] sm:$0xf]
        %v497 = vld [vmem:[%s202 + $0x564] sm:$0xff]
        %v498 = vld [vmem:[%s202 + $0x56c] sm:$0xf]
        %v499 = vld [vmem:[%s202 + $0x570] sm:$0xff]
        %v500 = vld [vmem:[%s202 + $0x578] sm:$0xf]
        %v501 = vld [vmem:[%s202 + $0x57c] sm:$0xff]
        %v502 = vld [vmem:[%s202 + $0x584] sm:$0xf]
        %v503 = vld [vmem:[%s202 + $0x588] sm:$0xff]
        %v504 = vld [vmem:[%s202 + $0x590] sm:$0xf]
        %v505 = vld [vmem:[%s202 + $0x594] sm:$0xff]
        %v506 = vld [vmem:[%s202 + $0x59c] sm:$0xf]
        %v507 = vld [vmem:[%s202 + $0x5a0] sm:$0xff]
        %v508 = vld [vmem:[%s202 + $0x5a8] sm:$0xf]
        %v509 = vld [vmem:[%s202 + $0x5ac] sm:$0xff]
        %v510 = vld [vmem:[%s202 + $0x5b4] sm:$0xf]
        %v511 = vld [vmem:[%s202 + $0x5b8] sm:$0xff]
        %v512 = vld [vmem:[%s202 + $0x5c0] sm:$0xf]
        %v513 = vld [vmem:[%s202 + $0x5c4] sm:$0xff]
        %v514 = vld [vmem:[%s202 + $0x5cc] sm:$0xf]
        %v515 = vld [vmem:[%s202 + $0x5d0] sm:$0xff]
        %v516 = vld [vmem:[%s202 + $0x5d8] sm:$0xf]
        %v517 = vld [vmem:[%s202 + $0x5dc] sm:$0xff]
        %v518 = vld [vmem:[%s202 + $0x5e4] sm:$0xf]
        %v519 = vld [vmem:[%s202 + $0x5e8] sm:$0xff]
        %v520 = vld [vmem:[%s202 + $0x5f0] sm:$0xf]
        %v521 = vld [vmem:[%s202 + $0x5f4] sm:$0xff]
        %v522 = vld [vmem:[%s202 + $0x5fc] sm:$0xf]
        %v523 = vld [vmem:[%s202 + $0x600] sm:$0xff]
        %v524 = vld [vmem:[%s202 + $0x608] sm:$0xf]
        %v525 = vld [vmem:[%s202 + $0x60c] sm:$0xff]
        %v526 = vld [vmem:[%s202 + $0x614] sm:$0xf]
        %v527 = vld [vmem:[%s202 + $0x618] sm:$0xff]
        %v528 = vld [vmem:[%s202 + $0x620] sm:$0xf]
        %v529 = vld [vmem:[%s202 + $0x624] sm:$0xff]
        %v530 = vld [vmem:[%s202 + $0x62c] sm:$0xf]
        %v531 = vld [vmem:[%s202 + $0x630] sm:$0xff]
        %v532 = vld [vmem:[%s202 + $0x638] sm:$0xf]
        %v533 = vld [vmem:[%s202 + $0x63c] sm:$0xff]
        %v534 = vld [vmem:[%s202 + $0x644] sm:$0xf]
        %v535 = vld [vmem:[%s202 + $0x648] sm:$0xff]
        %v536 = vld [vmem:[%s202 + $0x650] sm:$0xf]
        %v537 = vld [vmem:[%s202 + $0x654] sm:$0xff]
        %v538 = vld [vmem:[%s202 + $0x65c] sm:$0xf]
        %v539 = vld [vmem:[%s202 + $0x660] sm:$0xff]
        %v540 = vld [vmem:[%s202 + $0x668] sm:$0xf]
        %v541 = vld [vmem:[%s202 + $0x66c] sm:$0xff]
        %v542 = vld [vmem:[%s202 + $0x674] sm:$0xf]
        %v543 = vld [vmem:[%s202 + $0x678] sm:$0xff]
        %v544 = vld [vmem:[%s202 + $0x680] sm:$0xf]
        %v545 = vld [vmem:[%s202 + $0x684] sm:$0xff]
        %v546 = vld [vmem:[%s202 + $0x68c] sm:$0xf]
        %v547 = vld [vmem:[%s202 + $0x690] sm:$0xff]
        %v548 = vld [vmem:[%s202 + $0x698] sm:$0xf]
        %v549 = vld [vmem:[%s202 + $0x69c] sm:$0xff]
        %v550 = vld [vmem:[%s202 + $0x6a4] sm:$0xf]
        %v551 = vld [vmem:[%s202 + $0x6a8] sm:$0xff]
        %v552 = vld [vmem:[%s202 + $0x6b0] sm:$0xf]
        %v553 = vld [vmem:[%s202 + $0x6b4] sm:$0xff]
        %v554 = vld [vmem:[%s202 + $0x6bc] sm:$0xf]
        %v555 = vld [vmem:[%s202 + $0x6c0] sm:$0xff]
        %v556 = vld [vmem:[%s202 + $0x6c8] sm:$0xf]
        %v557 = vld [vmem:[%s202 + $0x6cc] sm:$0xff]
        %v558 = vld [vmem:[%s202 + $0x6d4] sm:$0xf]
        %v559 = vld [vmem:[%s202 + $0x6d8] sm:$0xff]
        %v560 = vld [vmem:[%s202 + $0x6e0] sm:$0xf]
        %v561 = vld [vmem:[%s202 + $0x6e4] sm:$0xff]
        %v562 = vld [vmem:[%s202 + $0x6ec] sm:$0xf]
        %v563 = vld [vmem:[%s202 + $0x6f0] sm:$0xff]
        %v564 = vld [vmem:[%s202 + $0x6f8] sm:$0xf]
        %v565 = vld [vmem:[%s202 + $0x6fc] sm:$0xff]
        %v566 = vld [vmem:[%s202 + $0x704] sm:$0xf]
        %v567 = vld [vmem:[%s202 + $0x708] sm:$0xff]
        %v568 = vld [vmem:[%s202 + $0x710] sm:$0xf]
        %v569 = vld [vmem:[%s202 + $0x714] sm:$0xff]
        %v570 = vld [vmem:[%s202 + $0x71c] sm:$0xf]
        %v571 = vld [vmem:[%s202 + $0x720] sm:$0xff]
        %v572 = vld [vmem:[%s202 + $0x728] sm:$0xf]
        %v573 = vld [vmem:[%s202 + $0x72c] sm:$0xff]
        %v574 = vld [vmem:[%s202 + $0x734] sm:$0xf]
        %v575 = vld [vmem:[%s202 + $0x738] sm:$0xff]
        %v576 = vld [vmem:[%s202 + $0x740] sm:$0xf]
        %v577 = vld [vmem:[%s202 + $0x744] sm:$0xff]
        %v578 = vld [vmem:[%s202 + $0x74c] sm:$0xf]
        %v579 = vld [vmem:[%s202 + $0x750] sm:$0xff]
        %v580 = vld [vmem:[%s202 + $0x758] sm:$0xf]
        %v581 = vld [vmem:[%s202 + $0x75c] sm:$0xff]
        %v582 = vld [vmem:[%s202 + $0x764] sm:$0xf]
        %v583 = vld [vmem:[%s202 + $0x768] sm:$0xff]
        %v584 = vld [vmem:[%s202 + $0x770] sm:$0xf]
        %v585 = vld [vmem:[%s202 + $0x774] sm:$0xff]
        %v586 = vld [vmem:[%s202 + $0x77c] sm:$0xf]
        %v587 = vld [vmem:[%s202 + $0x780] sm:$0xff]
        %v588 = vld [vmem:[%s202 + $0x788] sm:$0xf]
        %v589 = vld [vmem:[%s202 + $0x78c] sm:$0xff]
        %v590 = vld [vmem:[%s202 + $0x794] sm:$0xf]
        %v591 = vld [vmem:[%s202 + $0x798] sm:$0xff]
        %v592 = vld [vmem:[%s202 + $0x7a0] sm:$0xf]
        %v593 = vld [vmem:[%s202 + $0x7a4] sm:$0xff]
        %v594 = vld [vmem:[%s202 + $0x7ac] sm:$0xf]
        %v595 = vld [vmem:[%s202 + $0x7b0] sm:$0xff]
        %v596 = vld [vmem:[%s202 + $0x7b8] sm:$0xf]
        %v597 = vld [vmem:[%s202 + $0x7bc] sm:$0xff]
        %v598 = vld [vmem:[%s202 + $0x7c4] sm:$0xf]
        %v599 = vld [vmem:[%s202 + $0x7c8] sm:$0xff]
        %v600 = vld [vmem:[%s202 + $0x7d0] sm:$0xf]
        %v601 = vld [vmem:[%s202 + $0x7d4] sm:$0xff]
        %v602 = vld [vmem:[%s202 + $0x7dc] sm:$0xf]
        %v603 = vld [vmem:[%s202 + $0x7e0] sm:$0xff]
        %v604 = vld [vmem:[%s202 + $0x7e8] sm:$0xf]
        %v605 = vld [vmem:[%s202 + $0x7ec] sm:$0xff]
        %v606 = vld [vmem:[%s202 + $0x7f4] sm:$0xf]
        %v607 = vld [vmem:[%s202 + $0x7f8] sm:$0xff]
        %v608 = vld [vmem:[%s202 + $0x800] sm:$0xf]
        %v609 = vld [vmem:[%s202 + $0x804] sm:$0xff]
        %v610 = vld [vmem:[%s202 + $0x80c] sm:$0xf]
        %v611 = vld [vmem:[%s202 + $0x810] sm:$0xff]
        %v612 = vld [vmem:[%s202 + $0x818] sm:$0xf]
        %v613 = vld [vmem:[%s202 + $0x81c] sm:$0xff]
        %v614 = vld [vmem:[%s202 + $0x824] sm:$0xf]
        %v615 = vld [vmem:[%s202 + $0x828] sm:$0xff]
        %v616 = vld [vmem:[%s202 + $0x830] sm:$0xf]
        %v617 = vld [vmem:[%s202 + $0x834] sm:$0xff]
        %v618 = vld [vmem:[%s202 + $0x83c] sm:$0xf]
        %v619 = vld [vmem:[%s202 + $0x840] sm:$0xff]
        %v620 = vld [vmem:[%s202 + $0x848] sm:$0xf]
        %v621 = vld [vmem:[%s202 + $0x84c] sm:$0xff]
        %v622 = vld [vmem:[%s202 + $0x854] sm:$0xf]
        %v623 = vld [vmem:[%s202 + $0x858] sm:$0xff]
        %v624 = vld [vmem:[%s202 + $0x860] sm:$0xf]
        %v625 = vld [vmem:[%s202 + $0x864] sm:$0xff]
        %v626 = vld [vmem:[%s202 + $0x86c] sm:$0xf]
        %v627 = vld [vmem:[%s202 + $0x870] sm:$0xff]
        %v628 = vld [vmem:[%s202 + $0x878] sm:$0xf]
        %v629 = vld [vmem:[%s202 + $0x87c] sm:$0xff]
        %v630 = vld [vmem:[%s202 + $0x884] sm:$0xf]
        %v631 = vld [vmem:[%s202 + $0x888] sm:$0xff]
        %v632 = vld [vmem:[%s202 + $0x890] sm:$0xf]
        %v633 = vld [vmem:[%s202 + $0x894] sm:$0xff]
        %v634 = vld [vmem:[%s202 + $0x89c] sm:$0xf]
        %v635 = vld [vmem:[%s202 + $0x8a0] sm:$0xff]
        %v636 = vld [vmem:[%s202 + $0x8a8] sm:$0xf]
        %v637 = vld [vmem:[%s202 + $0x8ac] sm:$0xff]
        %v638 = vld [vmem:[%s202 + $0x8b4] sm:$0xf]
        %v639 = vld [vmem:[%s202 + $0x8b8] sm:$0xff]
        %v640 = vld [vmem:[%s202 + $0x8c0] sm:$0xf]
        %v641 = vld [vmem:[%s202 + $0x8c4] sm:$0xff]
        %v642 = vld [vmem:[%s202 + $0x8cc] sm:$0xf]
        %v643 = vld [vmem:[%s202 + $0x8d0] sm:$0xff]
        %v644 = vld [vmem:[%s202 + $0x8d8] sm:$0xf]
        %v645 = vld [vmem:[%s202 + $0x8dc] sm:$0xff]
        %v646 = vld [vmem:[%s202 + $0x8e4] sm:$0xf]
        %v647 = vld [vmem:[%s202 + $0x8e8] sm:$0xff]
        %v648 = vld [vmem:[%s202 + $0x8f0] sm:$0xf]
        %v649 = vld [vmem:[%s202 + $0x8f4] sm:$0xff]
        %v650 = vld [vmem:[%s202 + $0x8fc] sm:$0xf]
        %v651 = vld [vmem:[%s202 + $0x900] sm:$0xff]
        %v652 = vld [vmem:[%s202 + $0x908] sm:$0xf]
        %v653 = vld [vmem:[%s202 + $0x90c] sm:$0xff]
        %v654 = vld [vmem:[%s202 + $0x914] sm:$0xf]
        %v655 = vld [vmem:[%s202 + $0x918] sm:$0xff]
        %v656 = vld [vmem:[%s202 + $0x920] sm:$0xf]
        %v657 = vld [vmem:[%s202 + $0x924] sm:$0xff]
        %v658 = vld [vmem:[%s202 + $0x92c] sm:$0xf]
        %v659 = vld [vmem:[%s202 + $0x930] sm:$0xff]
        %v660 = vld [vmem:[%s202 + $0x938] sm:$0xf]
        %v661 = vld [vmem:[%s202 + $0x93c] sm:$0xff]
        %v662 = vld [vmem:[%s202 + $0x944] sm:$0xf]
        %v663 = vld [vmem:[%s202 + $0x948] sm:$0xff]
        %v664 = vld [vmem:[%s202 + $0x950] sm:$0xf]
        %v665 = vld [vmem:[%s202 + $0x954] sm:$0xff]
        %v666 = vld [vmem:[%s202 + $0x95c] sm:$0xf]
        %v667 = vld [vmem:[%s202 + $0x960] sm:$0xff]
        %v668 = vld [vmem:[%s202 + $0x968] sm:$0xf]
        %v669 = vld [vmem:[%s202 + $0x96c] sm:$0xff]
        %v670 = vld [vmem:[%s202 + $0x974] sm:$0xf]
        %v671 = vld [vmem:[%s202 + $0x978] sm:$0xff]
        %v672 = vld [vmem:[%s202 + $0x980] sm:$0xf]
        %v673 = vld [vmem:[%s202 + $0x984] sm:$0xff]
        %v674 = vld [vmem:[%s202 + $0x98c] sm:$0xf]
        %v675 = vld [vmem:[%s202 + $0x990] sm:$0xff]
        %v676 = vld [vmem:[%s202 + $0x998] sm:$0xf]
        %v677 = vld [vmem:[%s202 + $0x99c] sm:$0xff]
        %v678 = vld [vmem:[%s202 + $0x9a4] sm:$0xf]
        %v679 = vld [vmem:[%s202 + $0x9a8] sm:$0xff]
        %v680 = vld [vmem:[%s202 + $0x9b0] sm:$0xf]
        %v681 = vld [vmem:[%s202 + $0x9b4] sm:$0xff]
        %v682 = vld [vmem:[%s202 + $0x9bc] sm:$0xf]
        %v683 = vld [vmem:[%s202 + $0x9c0] sm:$0xff]
        %v684 = vld [vmem:[%s202 + $0x9c8] sm:$0xf]
        %v685 = vld [vmem:[%s202 + $0x9cc] sm:$0xff]
        %v686 = vld [vmem:[%s202 + $0x9d4] sm:$0xf]
        %v687 = vld [vmem:[%s202 + $0x9d8] sm:$0xff]
        %v688 = vld [vmem:[%s202 + $0x9e0] sm:$0xf]
        %v689 = vld [vmem:[%s202 + $0x9e4] sm:$0xff]
        %v690 = vld [vmem:[%s202 + $0x9ec] sm:$0xf]
        %v691 = vld [vmem:[%s202 + $0x9f0] sm:$0xff]
        %v692 = vld [vmem:[%s202 + $0x9f8] sm:$0xf]
        %v693 = vld [vmem:[%s202 + $0x9fc] sm:$0xff]
        %v694 = vld [vmem:[%s202 + $0xa04] sm:$0xf]
        %v695 = vld [vmem:[%s202 + $0xa08] sm:$0xff]
        %v696 = vld [vmem:[%s202 + $0xa10] sm:$0xf]
        %v697 = vld [vmem:[%s202 + $0xa14] sm:$0xff]
        %v698 = vld [vmem:[%s202 + $0xa1c] sm:$0xf]
        %v699 = vld [vmem:[%s202 + $0xa20] sm:$0xff]
        %v700 = vld [vmem:[%s202 + $0xa28] sm:$0xf]
        %v701 = vld [vmem:[%s202 + $0xa2c] sm:$0xff]
        %v702 = vld [vmem:[%s202 + $0xa34] sm:$0xf]
        %v703 = vld [vmem:[%s202 + $0xa38] sm:$0xff]
        %v704 = vld [vmem:[%s202 + $0xa40] sm:$0xf]
        %v705 = vld [vmem:[%s202 + $0xa44] sm:$0xff]
        %v706 = vld [vmem:[%s202 + $0xa4c] sm:$0xf]
        %v707 = vld [vmem:[%s202 + $0xa50] sm:$0xff]
        %v708 = vld [vmem:[%s202 + $0xa58] sm:$0xf]
        %v709 = vld [vmem:[%s202 + $0xa5c] sm:$0xff]
        %v710 = vld [vmem:[%s202 + $0xa64] sm:$0xf]
        %v711 = vld [vmem:[%s202 + $0xa68] sm:$0xff]
        %v712 = vld [vmem:[%s202 + $0xa70] sm:$0xf]
        %v713 = vld [vmem:[%s202 + $0xa74] sm:$0xff]
        %v714 = vld [vmem:[%s202 + $0xa7c] sm:$0xf]
        %v715 = vld [vmem:[%s202 + $0xa80] sm:$0xff]
        %v716 = vld [vmem:[%s202 + $0xa88] sm:$0xf]
        %v717 = vld [vmem:[%s202 + $0xa8c] sm:$0xff]
        %v718 = vld [vmem:[%s202 + $0xa94] sm:$0xf]
        %v719 = vld [vmem:[%s202 + $0xa98] sm:$0xff]
        %v720 = vld [vmem:[%s202 + $0xaa0] sm:$0xf]
        %v721 = vld [vmem:[%s202 + $0xaa4] sm:$0xff]
        %v722 = vld [vmem:[%s202 + $0xaac] sm:$0xf]
        %v723 = vld [vmem:[%s202 + $0xab0] sm:$0xff]
        %v724 = vld [vmem:[%s202 + $0xab8] sm:$0xf]
        %v725 = vld [vmem:[%s202 + $0xabc] sm:$0xff]
        %v726 = vld [vmem:[%s202 + $0xac4] sm:$0xf]
        %v727 = vld [vmem:[%s202 + $0xac8] sm:$0xff]
        %v728 = vld [vmem:[%s202 + $0xad0] sm:$0xf]
        %v729 = vld [vmem:[%s202 + $0xad4] sm:$0xff]
        %v730 = vld [vmem:[%s202 + $0xadc] sm:$0xf]
        %v731 = vld [vmem:[%s202 + $0xae0] sm:$0xff]
        %v732 = vld [vmem:[%s202 + $0xae8] sm:$0xf]
        %v733 = vld [vmem:[%s202 + $0xaec] sm:$0xff]
        %v734 = vld [vmem:[%s202 + $0xaf4] sm:$0xf]
        %v735 = vld [vmem:[%s202 + $0xaf8] sm:$0xff]
        %v736 = vld [vmem:[%s202 + $0xb00] sm:$0xf]
        %v737 = vld [vmem:[%s202 + $0xb04] sm:$0xff]
        %v738 = vld [vmem:[%s202 + $0xb0c] sm:$0xf]
        %v739 = vld [vmem:[%s202 + $0xb10] sm:$0xff]
        %v740 = vld [vmem:[%s202 + $0xb18] sm:$0xf]
        %v741 = vld [vmem:[%s202 + $0xb1c] sm:$0xff]
        %v742 = vld [vmem:[%s202 + $0xb24] sm:$0xf]
        %v743 = vld [vmem:[%s202 + $0xb28] sm:$0xff]
        %v744 = vld [vmem:[%s202 + $0xb30] sm:$0xf]
        %v745 = vld [vmem:[%s202 + $0xb34] sm:$0xff]
        %v746 = vld [vmem:[%s202 + $0xb3c] sm:$0xf]
        %v747 = vld [vmem:[%s202 + $0xb40] sm:$0xff]
        %v748 = vld [vmem:[%s202 + $0xb48] sm:$0xf]
        %v749 = vld [vmem:[%s202 + $0xb4c] sm:$0xff]
        %v750 = vld [vmem:[%s202 + $0xb54] sm:$0xf]
        %v751 = vld [vmem:[%s202 + $0xb58] sm:$0xff]
        %v752 = vld [vmem:[%s202 + $0xb60] sm:$0xf]
        %v753 = vld [vmem:[%s202 + $0xb64] sm:$0xff]
        %v754 = vld [vmem:[%s202 + $0xb6c] sm:$0xf]
        %v755 = vld [vmem:[%s202 + $0xb70] sm:$0xff]
        %v756 = vld [vmem:[%s202 + $0xb78] sm:$0xf]
        %v757 = vld [vmem:[%s202 + $0xb7c] sm:$0xff]
        %v758 = vld [vmem:[%s202 + $0xb84] sm:$0xf]
        %v759 = vld [vmem:[%s202 + $0xb88] sm:$0xff]
        %v760 = vld [vmem:[%s202 + $0xb90] sm:$0xf]
        %v761 = vld [vmem:[%s202 + $0xb94] sm:$0xff]
        %v762 = vld [vmem:[%s202 + $0xb9c] sm:$0xf]
        %v763 = vld [vmem:[%s202 + $0xba0] sm:$0xff]
        %v764 = vld [vmem:[%s202 + $0xba8] sm:$0xf]
        %v765 = vld [vmem:[%s202 + $0xbac] sm:$0xff]
        %v766 = vld [vmem:[%s202 + $0xbb4] sm:$0xf]
        %v767 = vld [vmem:[%s202 + $0xbb8] sm:$0xff]
        %v768 = vld [vmem:[%s202 + $0xbc0] sm:$0xf]
        %v769 = vld [vmem:[%s202 + $0xbc4] sm:$0xff]
        %v770 = vld [vmem:[%s202 + $0xbcc] sm:$0xf]
        %v771 = vld [vmem:[%s202 + $0xbd0] sm:$0xff]
        %v772 = vld [vmem:[%s202 + $0xbd8] sm:$0xf]
        %v773 = vld [vmem:[%s202 + $0xbdc] sm:$0xff]
        %v774 = vld [vmem:[%s202 + $0xbe4] sm:$0xf]
        %v775 = vld [vmem:[%s202 + $0xbe8] sm:$0xff]
        %v776 = vld [vmem:[%s202 + $0xbf0] sm:$0xf]
        %v777 = vld [vmem:[%s202 + $0xbf4] sm:$0xff]
        %v778 = vld [vmem:[%s202 + $0xbfc] sm:$0xf]
        %v779 = vld [vmem:[%s202 + $0xc00] sm:$0xff]
        %v780 = vld [vmem:[%s202 + $0xc08] sm:$0xf]
        %v781 = vld [vmem:[%s202 + $0xc0c] sm:$0xff]
        %v782 = vld [vmem:[%s202 + $0xc14] sm:$0xf]
        %v783 = vld [vmem:[%s202 + $0xc18] sm:$0xff]
        %v784 = vld [vmem:[%s202 + $0xc20] sm:$0xf]
        %v785 = vld [vmem:[%s202 + $0xc24] sm:$0xff]
        %v786 = vld [vmem:[%s202 + $0xc2c] sm:$0xf]
        %v787 = vld [vmem:[%s202 + $0xc30] sm:$0xff]
        %v788 = vld [vmem:[%s202 + $0xc38] sm:$0xf]
        %v789 = vld [vmem:[%s202 + $0xc3c] sm:$0xff]
        %v790 = vld [vmem:[%s202 + $0xc44] sm:$0xf]
        %v791 = vld [vmem:[%s202 + $0xc48] sm:$0xff]
        %v792 = vld [vmem:[%s202 + $0xc50] sm:$0xf]
        %v793 = vld [vmem:[%s202 + $0xc54] sm:$0xff]
        %v794 = vld [vmem:[%s202 + $0xc5c] sm:$0xf]
        %v795 = vld [vmem:[%s202 + $0xc60] sm:$0xff]
        %v796 = vld [vmem:[%s202 + $0xc68] sm:$0xf]
        %v797 = vld [vmem:[%s202 + $0xc6c] sm:$0xff]
        %v798 = vld [vmem:[%s202 + $0xc74] sm:$0xf]
        %v799 = vld [vmem:[%s202 + $0xc78] sm:$0xff]
        %v800 = vld [vmem:[%s202 + $0xc80] sm:$0xf]
        %v801 = vld [vmem:[%s202 + $0xc84] sm:$0xff]
        %v802 = vld [vmem:[%s202 + $0xc8c] sm:$0xf]
        %v803 = vld [vmem:[%s202 + $0xc90] sm:$0xff]
        %v804 = vld [vmem:[%s202 + $0xc98] sm:$0xf]
        %v805 = vld [vmem:[%s202 + $0xc9c] sm:$0xff]
        %v806 = vld [vmem:[%s202 + $0xca4] sm:$0xf]
        %v807 = vld [vmem:[%s202 + $0xca8] sm:$0xff]
        %v808 = vld [vmem:[%s202 + $0xcb0] sm:$0xf]
        %v809 = vld [vmem:[%s202 + $0xcb4] sm:$0xff]
        %v810 = vld [vmem:[%s202 + $0xcbc] sm:$0xf]
        %v811 = vld [vmem:[%s202 + $0xcc0] sm:$0xff]
        %v812 = vld [vmem:[%s202 + $0xcc8] sm:$0xf]
        %v813 = vld [vmem:[%s202 + $0xccc] sm:$0xff]
        %v814 = vld [vmem:[%s202 + $0xcd4] sm:$0xf]
        %v815 = vld [vmem:[%s202 + $0xcd8] sm:$0xff]
        %v816 = vld [vmem:[%s202 + $0xce0] sm:$0xf]
        %v817 = vld [vmem:[%s202 + $0xce4] sm:$0xff]
        %v818 = vld [vmem:[%s202 + $0xcec] sm:$0xf]
        %v819 = vld [vmem:[%s202 + $0xcf0] sm:$0xff]
        %v820 = vld [vmem:[%s202 + $0xcf8] sm:$0xf]
        %v821 = vld [vmem:[%s202 + $0xcfc] sm:$0xff]
        %v822 = vld [vmem:[%s202 + $0xd04] sm:$0xf]
        %v823 = vld [vmem:[%s202 + $0xd08] sm:$0xff]
        %v824 = vld [vmem:[%s202 + $0xd10] sm:$0xf]
        %v825 = vld [vmem:[%s202 + $0xd14] sm:$0xff]
        %v826 = vld [vmem:[%s202 + $0xd1c] sm:$0xf]
        %v827 = vld [vmem:[%s202 + $0xd20] sm:$0xff]
        %v828 = vld [vmem:[%s202 + $0xd28] sm:$0xf]
        %v829 = vld [vmem:[%s202 + $0xd2c] sm:$0xff]
        %v830 = vld [vmem:[%s202 + $0xd34] sm:$0xf]
        %v831 = vld [vmem:[%s202 + $0xd38] sm:$0xff]
        %v832 = vld [vmem:[%s202 + $0xd40] sm:$0xf]
        %v833 = vld [vmem:[%s202 + $0xd44] sm:$0xff]
        %v834 = vld [vmem:[%s202 + $0xd4c] sm:$0xf]
        %v835 = vld [vmem:[%s202 + $0xd50] sm:$0xff]
        %v836 = vld [vmem:[%s202 + $0xd58] sm:$0xf]
        %v837 = vld [vmem:[%s202 + $0xd5c] sm:$0xff]
        %v838 = vld [vmem:[%s202 + $0xd64] sm:$0xf]
        %v839 = vld [vmem:[%s202 + $0xd68] sm:$0xff]
        %v840 = vld [vmem:[%s202 + $0xd70] sm:$0xf]
        %v841 = vld [vmem:[%s202 + $0xd74] sm:$0xff]
        %v842 = vld [vmem:[%s202 + $0xd7c] sm:$0xf]
        %v843 = vld [vmem:[%s202 + $0xd80] sm:$0xff]
        %v844 = vld [vmem:[%s202 + $0xd88] sm:$0xf]
        %v845 = vld [vmem:[%s202 + $0xd8c] sm:$0xff]
        %v846 = vld [vmem:[%s202 + $0xd94] sm:$0xf]
        %v847 = vld [vmem:[%s202 + $0xd98] sm:$0xff]
        %v848 = vld [vmem:[%s202 + $0xda0] sm:$0xf]
        %v849 = vld [vmem:[%s202 + $0xda4] sm:$0xff]
        %v850 = vld [vmem:[%s202 + $0xdac] sm:$0xf]
        %v851 = vld [vmem:[%s202 + $0xdb0] sm:$0xff]
        %v852 = vld [vmem:[%s202 + $0xdb8] sm:$0xf]
        %v853 = vld [vmem:[%s202 + $0xdbc] sm:$0xff]
        %v854 = vld [vmem:[%s202 + $0xdc4] sm:$0xf]
        %v855 = vld [vmem:[%s202 + $0xdc8] sm:$0xff]
        %v856 = vld [vmem:[%s202 + $0xdd0] sm:$0xf]
        %v857 = vld [vmem:[%s202 + $0xdd4] sm:$0xff]
        %v858 = vld [vmem:[%s202 + $0xddc] sm:$0xf]
        %v859 = vld [vmem:[%s202 + $0xde0] sm:$0xff]
        %v860 = vld [vmem:[%s202 + $0xde8] sm:$0xf]
        %v861 = vld [vmem:[%s202 + $0xdec] sm:$0xff]
        %v862 = vld [vmem:[%s202 + $0xdf4] sm:$0xf]
        %v863 = vld [vmem:[%s202 + $0xdf8] sm:$0xff]
        %v864 = vld [vmem:[%s202 + $0xe00] sm:$0xf]
        %v865 = vld [vmem:[%s202 + $0xe04] sm:$0xff]
        %v866 = vld [vmem:[%s202 + $0xe0c] sm:$0xf]
        %v867 = vld [vmem:[%s202 + $0xe10] sm:$0xff]
        %v868 = vld [vmem:[%s202 + $0xe18] sm:$0xf]
        %v869 = vld [vmem:[%s202 + $0xe1c] sm:$0xff]
        %v870 = vld [vmem:[%s202 + $0xe24] sm:$0xf]
        %v871 = vld [vmem:[%s202 + $0xe28] sm:$0xff]
        %v872 = vld [vmem:[%s202 + $0xe30] sm:$0xf]
        %v873 = vld [vmem:[%s202 + $0xe34] sm:$0xff]
        %v874 = vld [vmem:[%s202 + $0xe3c] sm:$0xf]
        %v875 = vld [vmem:[%s202 + $0xe40] sm:$0xff]
        %v876 = vld [vmem:[%s202 + $0xe48] sm:$0xf]
        %v877 = vld [vmem:[%s202 + $0xe4c] sm:$0xff]
        %v878 = vld [vmem:[%s202 + $0xe54] sm:$0xf]
        %v879 = vld [vmem:[%s202 + $0xe58] sm:$0xff]
        %v880 = vld [vmem:[%s202 + $0xe60] sm:$0xf]
        %v881 = vld [vmem:[%s202 + $0xe64] sm:$0xff]
        %v882 = vld [vmem:[%s202 + $0xe6c] sm:$0xf]
        %v883 = vld [vmem:[%s202 + $0xe70] sm:$0xff]
        %v884 = vld [vmem:[%s202 + $0xe78] sm:$0xf]
        %v885 = vld [vmem:[%s202 + $0xe7c] sm:$0xff]
        %v886 = vld [vmem:[%s202 + $0xe84] sm:$0xf]
        %v887 = vld [vmem:[%s202 + $0xe88] sm:$0xff]
        %v888 = vld [vmem:[%s202 + $0xe90] sm:$0xf]
        %v889 = vld [vmem:[%s202 + $0xe94] sm:$0xff]
        %v890 = vld [vmem:[%s202 + $0xe9c] sm:$0xf]
        %v891 = vld [vmem:[%s202 + $0xea0] sm:$0xff]
        %v892 = vld [vmem:[%s202 + $0xea8] sm:$0xf]
        %v893 = vld [vmem:[%s202 + $0xeac] sm:$0xff]
        %v894 = vld [vmem:[%s202 + $0xeb4] sm:$0xf]
        %v895 = vld [vmem:[%s202 + $0xeb8] sm:$0xff]
        %v896 = vld [vmem:[%s202 + $0xec0] sm:$0xf]
        %v897 = vld [vmem:[%s202 + $0xec4] sm:$0xff]
        %v898 = vld [vmem:[%s202 + $0xecc] sm:$0xf]
        %v899 = vld [vmem:[%s202 + $0xed0] sm:$0xff]
        %v900 = vld [vmem:[%s202 + $0xed8] sm:$0xf]
        %v901 = vld [vmem:[%s202 + $0xedc] sm:$0xff]
        %v902 = vld [vmem:[%s202 + $0xee4] sm:$0xf]
        %v903 = vld [vmem:[%s202 + $0xee8] sm:$0xff]
        %v904 = vld [vmem:[%s202 + $0xef0] sm:$0xf]
        %v905 = vld [vmem:[%s202 + $0xef4] sm:$0xff]
        %v906 = vld [vmem:[%s202 + $0xefc] sm:$0xf]
        %v907 = vld [vmem:[%s202 + $0xf00] sm:$0xff]
        %v908 = vld [vmem:[%s202 + $0xf08] sm:$0xf]
        %v909 = vld [vmem:[%s202 + $0xf0c] sm:$0xff]
        %v910 = vld [vmem:[%s202 + $0xf14] sm:$0xf]
        %v911 = vld [vmem:[%s202 + $0xf18] sm:$0xff]
        %v912 = vld [vmem:[%s202 + $0xf20] sm:$0xf]
        %v913 = vld [vmem:[%s202 + $0xf24] sm:$0xff]
        %v914 = vld [vmem:[%s202 + $0xf2c] sm:$0xf]
        %v915 = vld [vmem:[%s202 + $0xf30] sm:$0xff]
        %v916 = vld [vmem:[%s202 + $0xf38] sm:$0xf]
        %v917 = vld [vmem:[%s202 + $0xf3c] sm:$0xff]
        %v918 = vld [vmem:[%s202 + $0xf44] sm:$0xf]
        %v919 = vld [vmem:[%s202 + $0xf48] sm:$0xff]
        %v920 = vld [vmem:[%s202 + $0xf50] sm:$0xf]
        %v921 = vld [vmem:[%s202 + $0xf54] sm:$0xff]
        %v922 = vld [vmem:[%s202 + $0xf5c] sm:$0xf]
        %v923 = vld [vmem:[%s202 + $0xf60] sm:$0xff]
        %v924 = vld [vmem:[%s202 + $0xf68] sm:$0xf]
        %v925 = vld [vmem:[%s202 + $0xf6c] sm:$0xff]
        %v926 = vld [vmem:[%s202 + $0xf74] sm:$0xf]
        %v927 = vld [vmem:[%s202 + $0xf78] sm:$0xff]
        %v928 = vld [vmem:[%s202 + $0xf80] sm:$0xf]
        %v929 = vld [vmem:[%s202 + $0xf84] sm:$0xff]
        %v930 = vld [vmem:[%s202 + $0xf8c] sm:$0xf]
        %v931 = vld [vmem:[%s202 + $0xf90] sm:$0xff]
        %v932 = vld [vmem:[%s202 + $0xf98] sm:$0xf]
        %v933 = vld [vmem:[%s202 + $0xf9c] sm:$0xff]
        %v934 = vld [vmem:[%s202 + $0xfa4] sm:$0xf]
        %v935 = vld [vmem:[%s202 + $0xfa8] sm:$0xff]
        %v936 = vld [vmem:[%s202 + $0xfb0] sm:$0xf]
        %v937 = vld [vmem:[%s202 + $0xfb4] sm:$0xff]
        %v938 = vld [vmem:[%s202 + $0xfbc] sm:$0xf]
        %v939 = vld [vmem:[%s202 + $0xfc0] sm:$0xff]
        %v940 = vld [vmem:[%s202 + $0xfc8] sm:$0xf]
        %v941 = vld [vmem:[%s202 + $0xfcc] sm:$0xff]
        %v942 = vld [vmem:[%s202 + $0xfd4] sm:$0xf]
        %v943 = vld [vmem:[%s202 + $0xfd8] sm:$0xff]
        %v944 = vld [vmem:[%s202 + $0xfe0] sm:$0xf]
        %v945 = vld [vmem:[%s202 + $0xfe4] sm:$0xff]
        %v946 = vld [vmem:[%s202 + $0xfec] sm:$0xf]
        %v947 = vld [vmem:[%s202 + $0xff0] sm:$0xff]
        %v948 = vld [vmem:[%s202 + $0xff8] sm:$0xf]
        %v949 = vld [vmem:[%s202 + $0xffc] sm:$0xff]
        %v950 = vld [vmem:[%s202 + $0x1004] sm:$0xf]
        %v951 = vld [vmem:[%s202 + $0x1008] sm:$0xff]
        %v952 = vld [vmem:[%s202 + $0x1010] sm:$0xf]
        %v953 = vld [vmem:[%s202 + $0x1014] sm:$0xff]
        %v954 = vld [vmem:[%s202 + $0x101c] sm:$0xf]
        %v955 = vld [vmem:[%s202 + $0x1020] sm:$0xff]
        %v956 = vld [vmem:[%s202 + $0x1028] sm:$0xf]
        %v957 = vld [vmem:[%s202 + $0x102c] sm:$0xff]
        %v958 = vld [vmem:[%s202 + $0x1034] sm:$0xf]
        %v959 = vld [vmem:[%s202 + $0x1038] sm:$0xff]
        %v960 = vld [vmem:[%s202 + $0x1040] sm:$0xf]
        %v961 = vld [vmem:[%s202 + $0x1044] sm:$0xff]
        %v962 = vld [vmem:[%s202 + $0x104c] sm:$0xf]
        %v963 = vld [vmem:[%s202 + $0x1050] sm:$0xff]
        %v964 = vld [vmem:[%s202 + $0x1058] sm:$0xf]
        %v965 = vld [vmem:[%s202 + $0x105c] sm:$0xff]
        %v966 = vld [vmem:[%s202 + $0x1064] sm:$0xf]
        %v967 = vld [vmem:[%s202 + $0x1068] sm:$0xff]
        %v968 = vld [vmem:[%s202 + $0x1070] sm:$0xf]
        %v969 = vld [vmem:[%s202 + $0x1074] sm:$0xff]
        %v970 = vld [vmem:[%s202 + $0x107c] sm:$0xf]
        %v971 = vld [vmem:[%s202 + $0x1080] sm:$0xff]
        %v972 = vld [vmem:[%s202 + $0x1088] sm:$0xf]
        %v973 = vld [vmem:[%s202 + $0x108c] sm:$0xff]
        %v974 = vld [vmem:[%s202 + $0x1094] sm:$0xf]
        %v975 = vld [vmem:[%s202 + $0x1098] sm:$0xff]
        %v976 = vld [vmem:[%s202 + $0x10a0] sm:$0xf]
        %v977 = vld [vmem:[%s202 + $0x10a4] sm:$0xff]
        %v978 = vld [vmem:[%s202 + $0x10ac] sm:$0xf]
        %v979 = vld [vmem:[%s202 + $0x10b0] sm:$0xff]
        %v980 = vld [vmem:[%s202 + $0x10b8] sm:$0xf]
        %v981 = vld [vmem:[%s202 + $0x10bc] sm:$0xff]
        %v982 = vld [vmem:[%s202 + $0x10c4] sm:$0xf]
        %v983 = vld [vmem:[%s202 + $0x10c8] sm:$0xff]
        %v984 = vld [vmem:[%s202 + $0x10d0] sm:$0xf]
        %v985 = vld [vmem:[%s202 + $0x10d4] sm:$0xff]
        %v986 = vld [vmem:[%s202 + $0x10dc] sm:$0xf]
        %v987 = vld [vmem:[%s202 + $0x10e0] sm:$0xff]
        %v988 = vld [vmem:[%s202 + $0x10e8] sm:$0xf]
        %v989 = vld [vmem:[%s202 + $0x10ec] sm:$0xff]
        %v990 = vld [vmem:[%s202 + $0x10f4] sm:$0xf]
        %v991 = vld [vmem:[%s202 + $0x10f8] sm:$0xff]
        %v992 = vld [vmem:[%s202 + $0x1100] sm:$0xf]
        %v993 = vld [vmem:[%s202 + $0x1104] sm:$0xff]
        %v994 = vld [vmem:[%s202 + $0x110c] sm:$0xf]
        %v995 = vld [vmem:[%s202 + $0x1110] sm:$0xff]
        %v996 = vld [vmem:[%s202 + $0x1118] sm:$0xf]
        %v997 = vld [vmem:[%s202 + $0x111c] sm:$0xff]
        %v998 = vld [vmem:[%s202 + $0x1124] sm:$0xf]
        %v999 = vld [vmem:[%s202 + $0x1128] sm:$0xff]
        %v1000 = vld [vmem:[%s202 + $0x1130] sm:$0xf]
        %v1001 = vld [vmem:[%s202 + $0x1134] sm:$0xff]
        %v1002 = vld [vmem:[%s202 + $0x113c] sm:$0xf]
        %v1003 = vld [vmem:[%s202 + $0x1140] sm:$0xff]
        %v1004 = vld [vmem:[%s202 + $0x1148] sm:$0xf]
        %v1005 = vld [vmem:[%s202 + $0x114c] sm:$0xff]
        %v1006 = vld [vmem:[%s202 + $0x1154] sm:$0xf]
        %v1007 = vld [vmem:[%s202 + $0x1158] sm:$0xff]
        %v1008 = vld [vmem:[%s202 + $0x1160] sm:$0xf]
        %v1009 = vld [vmem:[%s202 + $0x1164] sm:$0xff]
        %v1010 = vld [vmem:[%s202 + $0x116c] sm:$0xf]
        %v1011 = vld [vmem:[%s202 + $0x1170] sm:$0xff]
        %v1012 = vld [vmem:[%s202 + $0x1178] sm:$0xf]
        %v1013 = vld [vmem:[%s202 + $0x117c] sm:$0xff]
        %v1014 = vld [vmem:[%s202 + $0x1184] sm:$0xf]
        %v1015 = vld [vmem:[%s202 + $0x1188] sm:$0xff]
        %v1016 = vld [vmem:[%s202 + $0x1190] sm:$0xf]
        %v1017 = vld [vmem:[%s202 + $0x1194] sm:$0xff]
        %v1018 = vld [vmem:[%s202 + $0x119c] sm:$0xf]
        %v1019 = vld [vmem:[%s202 + $0x11a0] sm:$0xff]
        %v1020 = vld [vmem:[%s202 + $0x11a8] sm:$0xf]
        %v1021 = vld [vmem:[%s202 + $0x11ac] sm:$0xff]
        %v1022 = vld [vmem:[%s202 + $0x11b4] sm:$0xf]
        %v1023 = vld [vmem:[%s202 + $0x11b8] sm:$0xff]
        %v1024 = vld [vmem:[%s202 + $0x11c0] sm:$0xf]
        %v1025 = vld [vmem:[%s202 + $0x11c4] sm:$0xff]
        %v1026 = vld [vmem:[%s202 + $0x11cc] sm:$0xf]
        %v1027 = vld [vmem:[%s202 + $0x11d0] sm:$0xff]
        %v1028 = vld [vmem:[%s202 + $0x11d8] sm:$0xf]
        %v1029 = vld [vmem:[%s202 + $0x11dc] sm:$0xff]
        %v1030 = vld [vmem:[%s202 + $0x11e4] sm:$0xf]
        %v1031 = vld [vmem:[%s202 + $0x11e8] sm:$0xff]
        %v1032 = vld [vmem:[%s202 + $0x11f0] sm:$0xf]
        %v1033 = vld [vmem:[%s202 + $0x11f4] sm:$0xff]
        %v1034 = vld [vmem:[%s202 + $0x11fc] sm:$0xf]
        %v1035 = vld [vmem:[%s211] sm:$0x7]
        %v1037 = vlaneseq
        %v1038 = vshrl.u32 %v1037, 7
        %v1039 = vsub.s32 0, %v1038
        %v1040 = vrot.slane %v1035, %v1039
        %v1041 = vlaneseq
        %v1042 = vshrl.u32 %v1041, 7
        %v1043 = vsub.s32 1, %v1042
        %v1044 = vrot.slane %v1035, %v1043
        %v1045 = vlaneseq
        %v1046 = vshrl.u32 %v1045, 7
        %v1047 = vsub.s32 2, %v1046
        %v1048 = vrot.slane %v1035, %v1047
        %v1076 = vunpack.c.l.b16 %v243
        %v1077 = vunpack.c.h.b16 %v243
        %v1078 = vunpack.c.l.b16 %v244
        %v1079 = vunpack.c.h.b16 %v244
        %v1080 = vunpack.c.l.b16 %v245
        %v1081 = vunpack.c.h.b16 %v245
        %v1082 = vunpack.c.l.b16 %v246
        %v1083 = vunpack.c.h.b16 %v246
        %v1084 = vunpack.c.l.b16 %v247
        %v1085 = vunpack.c.h.b16 %v247
        %v1086 = vunpack.c.l.b16 %v248
        %v1087 = vunpack.c.h.b16 %v248
        %v1088 = vunpack.c.l.b16 %v249
        %v1089 = vunpack.c.h.b16 %v249
        %v1090 = vunpack.c.l.b16 %v250
        %v1091 = vunpack.c.h.b16 %v250
        %v1092 = vunpack.c.l.b16 %v251
        %v1093 = vunpack.c.h.b16 %v251
        %v1094 = vunpack.c.l.b16 %v252
        %v1095 = vunpack.c.h.b16 %v252
        %v1096 = vunpack.c.l.b16 %v253
        %v1097 = vunpack.c.h.b16 %v253
        %v1098 = vunpack.c.l.b16 %v254
        %v1099 = vunpack.c.h.b16 %v254
        %v1100 = vunpack.c.l.b16 %v255
        %v1101 = vunpack.c.h.b16 %v255
        %v1102 = vunpack.c.l.b16 %v256
        %v1103 = vunpack.c.h.b16 %v256
        %v1104 = vunpack.c.l.b16 %v257
        %v1105 = vunpack.c.h.b16 %v257
        %v1106 = vunpack.c.l.b16 %v258
        %v1107 = vunpack.c.h.b16 %v258
        %v1108 = vunpack.c.l.b16 %v259
        %v1109 = vunpack.c.h.b16 %v259
        %v1110 = vunpack.c.l.b16 %v260
        %v1111 = vunpack.c.h.b16 %v260
        %v1112 = vunpack.c.l.b16 %v261
        %v1113 = vunpack.c.h.b16 %v261
        %v1114 = vunpack.c.l.b16 %v262
        %v1115 = vunpack.c.h.b16 %v262
        %v1116 = vunpack.c.l.b16 %v263
        %v1117 = vunpack.c.h.b16 %v263
        %v1118 = vunpack.c.l.b16 %v264
        %v1119 = vunpack.c.h.b16 %v264
        %v1120 = vunpack.c.l.b16 %v265
        %v1121 = vunpack.c.h.b16 %v265
        %v1122 = vunpack.c.l.b16 %v266
        %v1123 = vunpack.c.h.b16 %v266
        %v1124 = vpack.c.b16 %v1100, %v1076
        %v1125 = vpack.c.b16 %v1101, %v1077
        %v1126 = vpack.c.b16 %v1102, %v1078
        %v1127 = vpack.c.b16 %v1103, %v1079
        %v1128 = vpack.c.b16 %v1104, %v1080
        %v1129 = vpack.c.b16 %v1105, %v1081
        %v1130 = vpack.c.b16 %v1106, %v1082
        %v1131 = vpack.c.b16 %v1107, %v1083
        %v1132 = vpack.c.b16 %v1108, %v1084
        %v1133 = vpack.c.b16 %v1109, %v1085
        %v1134 = vpack.c.b16 %v1110, %v1086
        %v1135 = vpack.c.b16 %v1111, %v1087
        %v1136 = vpack.c.b16 %v1112, %v1088
        %v1137 = vpack.c.b16 %v1113, %v1089
        %v1138 = vpack.c.b16 %v1114, %v1090
        %v1139 = vpack.c.b16 %v1115, %v1091
        %v1140 = vpack.c.b16 %v1116, %v1092
        %v1141 = vpack.c.b16 %v1117, %v1093
        %v1142 = vpack.c.b16 %v1118, %v1094
        %v1143 = vpack.c.b16 %v1119, %v1095
        %v1144 = vpack.c.b16 %v1120, %v1096
        %v1145 = vpack.c.b16 %v1121, %v1097
        %v1146 = vpack.c.b16 %v1122, %v1098
        %v1147 = vpack.c.b16 %v1123, %v1099
        %v1940 = vunpack.c.l.b16 %v267
        %v1941 = vunpack.c.h.b16 %v267
        %v1942 = vunpack.c.l.b16 %v268
        %v1943 = vunpack.c.l.b16 %v269
        %v1944 = vunpack.c.h.b16 %v269
        %v1945 = vunpack.c.l.b16 %v270
        %v1946 = vunpack.c.l.b16 %v271
        %v1947 = vunpack.c.h.b16 %v271
        %v1948 = vunpack.c.l.b16 %v272
        %v1949 = vunpack.c.l.b16 %v273
        %v1950 = vunpack.c.h.b16 %v273
        %v1951 = vunpack.c.l.b16 %v274
        %v1952 = vunpack.c.l.b16 %v275
        %v1953 = vunpack.c.h.b16 %v275
        %v1954 = vunpack.c.l.b16 %v276
        %v1955 = vunpack.c.l.b16 %v277
        %v1956 = vunpack.c.h.b16 %v277
        %v1957 = vunpack.c.l.b16 %v278
        %v1958 = vunpack.c.l.b16 %v279
        %v1959 = vunpack.c.h.b16 %v279
        %v1960 = vunpack.c.l.b16 %v280
        %v1961 = vunpack.c.l.b16 %v281
        %v1962 = vunpack.c.h.b16 %v281
        %v1963 = vunpack.c.l.b16 %v282
        %v1964 = vunpack.c.l.b16 %v283
        %v1965 = vunpack.c.h.b16 %v283
        %v1966 = vunpack.c.l.b16 %v284
        %v1967 = vunpack.c.l.b16 %v285
        %v1968 = vunpack.c.h.b16 %v285
        %v1969 = vunpack.c.l.b16 %v286
        %v1970 = vunpack.c.l.b16 %v287
        %v1971 = vunpack.c.h.b16 %v287
        %v1972 = vunpack.c.l.b16 %v288
        %v1973 = vunpack.c.l.b16 %v289
        %v1974 = vunpack.c.h.b16 %v289
        %v1975 = vunpack.c.l.b16 %v290
        %v1976 = vunpack.c.l.b16 %v291
        %v1977 = vunpack.c.h.b16 %v291
        %v1978 = vunpack.c.l.b16 %v292
        %v1979 = vunpack.c.l.b16 %v293
        %v1980 = vunpack.c.h.b16 %v293
        %v1981 = vunpack.c.l.b16 %v294
        %v1982 = vunpack.c.l.b16 %v295
        %v1983 = vunpack.c.h.b16 %v295
        %v1984 = vunpack.c.l.b16 %v296
        %v1985 = vunpack.c.l.b16 %v297
        %v1986 = vunpack.c.h.b16 %v297
        %v1987 = vunpack.c.l.b16 %v298
        %v1988 = vunpack.c.l.b16 %v299
        %v1989 = vunpack.c.h.b16 %v299
        %v1990 = vunpack.c.l.b16 %v300
        %v1991 = vunpack.c.l.b16 %v301
        %v1992 = vunpack.c.h.b16 %v301
        %v1993 = vunpack.c.l.b16 %v302
        %v1994 = vunpack.c.l.b16 %v303
        %v1995 = vunpack.c.h.b16 %v303
        %v1996 = vunpack.c.l.b16 %v304
        %v1997 = vunpack.c.l.b16 %v305
        %v1998 = vunpack.c.h.b16 %v305
        %v1999 = vunpack.c.l.b16 %v306
        %v2000 = vunpack.c.l.b16 %v307
        %v2001 = vunpack.c.h.b16 %v307
        %v2002 = vunpack.c.l.b16 %v308
        %v2003 = vunpack.c.l.b16 %v309
        %v2004 = vunpack.c.h.b16 %v309
        %v2005 = vunpack.c.l.b16 %v310
        %v2006 = vunpack.c.l.b16 %v311
        %v2007 = vunpack.c.h.b16 %v311
        %v2008 = vunpack.c.l.b16 %v312
        %v2009 = vunpack.c.l.b16 %v313
        %v2010 = vunpack.c.h.b16 %v313
        %v2011 = vunpack.c.l.b16 %v314
        %v2012 = vunpack.c.l.b16 %v315
        %v2013 = vunpack.c.h.b16 %v315
        %v2014 = vunpack.c.l.b16 %v316
        %v2015 = vunpack.c.l.b16 %v317
        %v2016 = vunpack.c.h.b16 %v317
        %v2017 = vunpack.c.l.b16 %v318
        %v2018 = vunpack.c.l.b16 %v319
        %v2019 = vunpack.c.h.b16 %v319
        %v2020 = vunpack.c.l.b16 %v320
        %v2021 = vunpack.c.l.b16 %v321
        %v2022 = vunpack.c.h.b16 %v321
        %v2023 = vunpack.c.l.b16 %v322
        %v2024 = vunpack.c.l.b16 %v323
        %v2025 = vunpack.c.h.b16 %v323
        %v2026 = vunpack.c.l.b16 %v324
        %v2027 = vunpack.c.l.b16 %v325
        %v2028 = vunpack.c.h.b16 %v325
        %v2029 = vunpack.c.l.b16 %v326
        %v2030 = vunpack.c.l.b16 %v327
        %v2031 = vunpack.c.h.b16 %v327
        %v2032 = vunpack.c.l.b16 %v328
        %v2033 = vunpack.c.l.b16 %v329
        %v2034 = vunpack.c.h.b16 %v329
        %v2035 = vunpack.c.l.b16 %v330
        %v2036 = vunpack.c.l.b16 %v331
        %v2037 = vunpack.c.h.b16 %v331
        %v2038 = vunpack.c.l.b16 %v332
        %v2039 = vunpack.c.l.b16 %v333
        %v2040 = vunpack.c.h.b16 %v333
        %v2041 = vunpack.c.l.b16 %v334
        %v2042 = vunpack.c.l.b16 %v335
        %v2043 = vunpack.c.h.b16 %v335
        %v2044 = vunpack.c.l.b16 %v336
        %v2045 = vunpack.c.l.b16 %v337
        %v2046 = vunpack.c.h.b16 %v337
        %v2047 = vunpack.c.l.b16 %v338
        %v2048 = vunpack.c.l.b16 %v339
        %v2049 = vunpack.c.h.b16 %v339
        %v2050 = vunpack.c.l.b16 %v340
        %v2051 = vunpack.c.l.b16 %v341
        %v2052 = vunpack.c.h.b16 %v341
        %v2053 = vunpack.c.l.b16 %v342
        %v2054 = vunpack.c.l.b16 %v343
        %v2055 = vunpack.c.h.b16 %v343
        %v2056 = vunpack.c.l.b16 %v344
        %v2057 = vunpack.c.l.b16 %v345
        %v2058 = vunpack.c.h.b16 %v345
        %v2059 = vunpack.c.l.b16 %v346
        %v2060 = vunpack.c.l.b16 %v347
        %v2061 = vunpack.c.h.b16 %v347
        %v2062 = vunpack.c.l.b16 %v348
        %v2063 = vunpack.c.l.b16 %v349
        %v2064 = vunpack.c.h.b16 %v349
        %v2065 = vunpack.c.l.b16 %v350
        %v2066 = vunpack.c.l.b16 %v351
        %v2067 = vunpack.c.h.b16 %v351
        %v2068 = vunpack.c.l.b16 %v352
        %v2069 = vunpack.c.l.b16 %v353
        %v2070 = vunpack.c.h.b16 %v353
        %v2071 = vunpack.c.l.b16 %v354
        %v2072 = vunpack.c.l.b16 %v355
        %v2073 = vunpack.c.h.b16 %v355
        %v2074 = vunpack.c.l.b16 %v356
        %v2075 = vunpack.c.l.b16 %v357
        %v2076 = vunpack.c.h.b16 %v357
        %v2077 = vunpack.c.l.b16 %v358
        %v2078 = vunpack.c.l.b16 %v359
        %v2079 = vunpack.c.h.b16 %v359
        %v2080 = vunpack.c.l.b16 %v360
        %v2081 = vunpack.c.l.b16 %v361
        %v2082 = vunpack.c.h.b16 %v361
        %v2083 = vunpack.c.l.b16 %v362
        %v2084 = vunpack.c.l.b16 %v363
        %v2085 = vunpack.c.h.b16 %v363
        %v2086 = vunpack.c.l.b16 %v364
        %v2087 = vunpack.c.l.b16 %v365
        %v2088 = vunpack.c.h.b16 %v365
        %v2089 = vunpack.c.l.b16 %v366
        %v2090 = vunpack.c.l.b16 %v367
        %v2091 = vunpack.c.h.b16 %v367
        %v2092 = vunpack.c.l.b16 %v368
        %v2093 = vunpack.c.l.b16 %v369
        %v2094 = vunpack.c.h.b16 %v369
        %v2095 = vunpack.c.l.b16 %v370
        %v2096 = vunpack.c.l.b16 %v371
        %v2097 = vunpack.c.h.b16 %v371
        %v2098 = vunpack.c.l.b16 %v372
        %v2099 = vunpack.c.l.b16 %v373
        %v2100 = vunpack.c.h.b16 %v373
        %v2101 = vunpack.c.l.b16 %v374
        %v2102 = vunpack.c.l.b16 %v375
        %v2103 = vunpack.c.h.b16 %v375
        %v2104 = vunpack.c.l.b16 %v376
        %v2105 = vunpack.c.l.b16 %v377
        %v2106 = vunpack.c.h.b16 %v377
        %v2107 = vunpack.c.l.b16 %v378
        %v2108 = vunpack.c.l.b16 %v379
        %v2109 = vunpack.c.h.b16 %v379
        %v2110 = vunpack.c.l.b16 %v380
        %v2111 = vunpack.c.l.b16 %v381
        %v2112 = vunpack.c.h.b16 %v381
        %v2113 = vunpack.c.l.b16 %v382
        %v2114 = vunpack.c.l.b16 %v383
        %v2115 = vunpack.c.h.b16 %v383
        %v2116 = vunpack.c.l.b16 %v384
        %v2117 = vunpack.c.l.b16 %v385
        %v2118 = vunpack.c.h.b16 %v385
        %v2119 = vunpack.c.l.b16 %v386
        %v2120 = vunpack.c.l.b16 %v387
        %v2121 = vunpack.c.h.b16 %v387
        %v2122 = vunpack.c.l.b16 %v388
        %v2123 = vunpack.c.l.b16 %v389
        %v2124 = vunpack.c.h.b16 %v389
        %v2125 = vunpack.c.l.b16 %v390
        %v2126 = vunpack.c.l.b16 %v391
        %v2127 = vunpack.c.h.b16 %v391
        %v2128 = vunpack.c.l.b16 %v392
        %v2129 = vunpack.c.l.b16 %v393
        %v2130 = vunpack.c.h.b16 %v393
        %v2131 = vunpack.c.l.b16 %v394
        %v2132 = vunpack.c.l.b16 %v395
        %v2133 = vunpack.c.h.b16 %v395
        %v2134 = vunpack.c.l.b16 %v396
        %v2135 = vunpack.c.l.b16 %v397
        %v2136 = vunpack.c.h.b16 %v397
        %v2137 = vunpack.c.l.b16 %v398
        %v2138 = vunpack.c.l.b16 %v399
        %v2139 = vunpack.c.h.b16 %v399
        %v2140 = vunpack.c.l.b16 %v400
        %v2141 = vunpack.c.l.b16 %v401
        %v2142 = vunpack.c.h.b16 %v401
        %v2143 = vunpack.c.l.b16 %v402
        %v2144 = vunpack.c.l.b16 %v403
        %v2145 = vunpack.c.h.b16 %v403
        %v2146 = vunpack.c.l.b16 %v404
        %v2147 = vunpack.c.l.b16 %v405
        %v2148 = vunpack.c.h.b16 %v405
        %v2149 = vunpack.c.l.b16 %v406
        %v2150 = vunpack.c.l.b16 %v407
        %v2151 = vunpack.c.h.b16 %v407
        %v2152 = vunpack.c.l.b16 %v408
        %v2153 = vunpack.c.l.b16 %v409
        %v2154 = vunpack.c.h.b16 %v409
        %v2155 = vunpack.c.l.b16 %v410
        %v2156 = vunpack.c.l.b16 %v411
        %v2157 = vunpack.c.h.b16 %v411
        %v2158 = vunpack.c.l.b16 %v412
        %v2159 = vunpack.c.l.b16 %v413
        %v2160 = vunpack.c.h.b16 %v413
        %v2161 = vunpack.c.l.b16 %v414
        %v2162 = vunpack.c.l.b16 %v415
        %v2163 = vunpack.c.h.b16 %v415
        %v2164 = vunpack.c.l.b16 %v416
        %v2165 = vunpack.c.l.b16 %v417
        %v2166 = vunpack.c.h.b16 %v417
        %v2167 = vunpack.c.l.b16 %v418
        %v2168 = vunpack.c.l.b16 %v419
        %v2169 = vunpack.c.h.b16 %v419
        %v2170 = vunpack.c.l.b16 %v420
        %v2171 = vunpack.c.l.b16 %v421
        %v2172 = vunpack.c.h.b16 %v421
        %v2173 = vunpack.c.l.b16 %v422
        %v2174 = vunpack.c.l.b16 %v423
        %v2175 = vunpack.c.h.b16 %v423
        %v2176 = vunpack.c.l.b16 %v424
        %v2177 = vunpack.c.l.b16 %v425
        %v2178 = vunpack.c.h.b16 %v425
        %v2179 = vunpack.c.l.b16 %v426
        %v2180 = vunpack.c.l.b16 %v427
        %v2181 = vunpack.c.h.b16 %v427
        %v2182 = vunpack.c.l.b16 %v428
        %v2183 = vunpack.c.l.b16 %v429
        %v2184 = vunpack.c.h.b16 %v429
        %v2185 = vunpack.c.l.b16 %v430
        %v2186 = vunpack.c.l.b16 %v431
        %v2187 = vunpack.c.h.b16 %v431
        %v2188 = vunpack.c.l.b16 %v432
        %v2189 = vunpack.c.l.b16 %v433
        %v2190 = vunpack.c.h.b16 %v433
        %v2191 = vunpack.c.l.b16 %v434
        %v2192 = vunpack.c.l.b16 %v435
        %v2193 = vunpack.c.h.b16 %v435
        %v2194 = vunpack.c.l.b16 %v436
        %v2195 = vunpack.c.l.b16 %v437
        %v2196 = vunpack.c.h.b16 %v437
        %v2197 = vunpack.c.l.b16 %v438
        %v2198 = vunpack.c.l.b16 %v439
        %v2199 = vunpack.c.h.b16 %v439
        %v2200 = vunpack.c.l.b16 %v440
        %v2201 = vunpack.c.l.b16 %v441
        %v2202 = vunpack.c.h.b16 %v441
        %v2203 = vunpack.c.l.b16 %v442
        %v2204 = vunpack.c.l.b16 %v443
        %v2205 = vunpack.c.h.b16 %v443
        %v2206 = vunpack.c.l.b16 %v444
        %v2207 = vunpack.c.l.b16 %v445
        %v2208 = vunpack.c.h.b16 %v445
        %v2209 = vunpack.c.l.b16 %v446
        %v2210 = vunpack.c.l.b16 %v447
        %v2211 = vunpack.c.h.b16 %v447
        %v2212 = vunpack.c.l.b16 %v448
        %v2213 = vunpack.c.l.b16 %v449
        %v2214 = vunpack.c.h.b16 %v449
        %v2215 = vunpack.c.l.b16 %v450
        %v2216 = vunpack.c.l.b16 %v451
        %v2217 = vunpack.c.h.b16 %v451
        %v2218 = vunpack.c.l.b16 %v452
        %v2219 = vunpack.c.l.b16 %v453
        %v2220 = vunpack.c.h.b16 %v453
        %v2221 = vunpack.c.l.b16 %v454
        %v2222 = vunpack.c.l.b16 %v455
        %v2223 = vunpack.c.h.b16 %v455
        %v2224 = vunpack.c.l.b16 %v456
        %v2225 = vunpack.c.l.b16 %v457
        %v2226 = vunpack.c.h.b16 %v457
        %v2227 = vunpack.c.l.b16 %v458
        %v2228 = vunpack.c.l.b16 %v459
        %v2229 = vunpack.c.h.b16 %v459
        %v2230 = vunpack.c.l.b16 %v460
        %v2231 = vunpack.c.l.b16 %v461
        %v2232 = vunpack.c.h.b16 %v461
        %v2233 = vunpack.c.l.b16 %v462
        %v2234 = vunpack.c.l.b16 %v463
        %v2235 = vunpack.c.h.b16 %v463
        %v2236 = vunpack.c.l.b16 %v464
        %v2237 = vunpack.c.l.b16 %v465
        %v2238 = vunpack.c.h.b16 %v465
        %v2239 = vunpack.c.l.b16 %v466
        %v2240 = vunpack.c.l.b16 %v467
        %v2241 = vunpack.c.h.b16 %v467
        %v2242 = vunpack.c.l.b16 %v468
        %v2243 = vunpack.c.l.b16 %v469
        %v2244 = vunpack.c.h.b16 %v469
        %v2245 = vunpack.c.l.b16 %v470
        %v2246 = vunpack.c.l.b16 %v471
        %v2247 = vunpack.c.h.b16 %v471
        %v2248 = vunpack.c.l.b16 %v472
        %v2249 = vunpack.c.l.b16 %v473
        %v2250 = vunpack.c.h.b16 %v473
        %v2251 = vunpack.c.l.b16 %v474
        %v2252 = vunpack.c.l.b16 %v475
        %v2253 = vunpack.c.h.b16 %v475
        %v2254 = vunpack.c.l.b16 %v476
        %v2255 = vunpack.c.l.b16 %v477
        %v2256 = vunpack.c.h.b16 %v477
        %v2257 = vunpack.c.l.b16 %v478
        %v2258 = vunpack.c.l.b16 %v479
        %v2259 = vunpack.c.h.b16 %v479
        %v2260 = vunpack.c.l.b16 %v480
        %v2261 = vunpack.c.l.b16 %v481
        %v2262 = vunpack.c.h.b16 %v481
        %v2263 = vunpack.c.l.b16 %v482
        %v2264 = vunpack.c.l.b16 %v483
        %v2265 = vunpack.c.h.b16 %v483
        %v2266 = vunpack.c.l.b16 %v484
        %v2267 = vunpack.c.l.b16 %v485
        %v2268 = vunpack.c.h.b16 %v485
        %v2269 = vunpack.c.l.b16 %v486
        %v2270 = vunpack.c.l.b16 %v487
        %v2271 = vunpack.c.h.b16 %v487
        %v2272 = vunpack.c.l.b16 %v488
        %v2273 = vunpack.c.l.b16 %v489
        %v2274 = vunpack.c.h.b16 %v489
        %v2275 = vunpack.c.l.b16 %v490
        %v2276 = vunpack.c.l.b16 %v491
        %v2277 = vunpack.c.h.b16 %v491
        %v2278 = vunpack.c.l.b16 %v492
        %v2279 = vunpack.c.l.b16 %v493
        %v2280 = vunpack.c.h.b16 %v493
        %v2281 = vunpack.c.l.b16 %v494
        %v2282 = vunpack.c.l.b16 %v495
        %v2283 = vunpack.c.h.b16 %v495
        %v2284 = vunpack.c.l.b16 %v496
        %v2285 = vunpack.c.l.b16 %v497
        %v2286 = vunpack.c.h.b16 %v497
        %v2287 = vunpack.c.l.b16 %v498
        %v2288 = vunpack.c.l.b16 %v499
        %v2289 = vunpack.c.h.b16 %v499
        %v2290 = vunpack.c.l.b16 %v500
        %v2291 = vunpack.c.l.b16 %v501
        %v2292 = vunpack.c.h.b16 %v501
        %v2293 = vunpack.c.l.b16 %v502
        %v2294 = vunpack.c.l.b16 %v503
        %v2295 = vunpack.c.h.b16 %v503
        %v2296 = vunpack.c.l.b16 %v504
        %v2297 = vunpack.c.l.b16 %v505
        %v2298 = vunpack.c.h.b16 %v505
        %v2299 = vunpack.c.l.b16 %v506
        %v2300 = vunpack.c.l.b16 %v507
        %v2301 = vunpack.c.h.b16 %v507
        %v2302 = vunpack.c.l.b16 %v508
        %v2303 = vunpack.c.l.b16 %v509
        %v2304 = vunpack.c.h.b16 %v509
        %v2305 = vunpack.c.l.b16 %v510
        %v2306 = vunpack.c.l.b16 %v511
        %v2307 = vunpack.c.h.b16 %v511
        %v2308 = vunpack.c.l.b16 %v512
        %v2309 = vunpack.c.l.b16 %v513
        %v2310 = vunpack.c.h.b16 %v513
        %v2311 = vunpack.c.l.b16 %v514
        %v2312 = vunpack.c.l.b16 %v515
        %v2313 = vunpack.c.h.b16 %v515
        %v2314 = vunpack.c.l.b16 %v516
        %v2315 = vunpack.c.l.b16 %v517
        %v2316 = vunpack.c.h.b16 %v517
        %v2317 = vunpack.c.l.b16 %v518
        %v2318 = vunpack.c.l.b16 %v519
        %v2319 = vunpack.c.h.b16 %v519
        %v2320 = vunpack.c.l.b16 %v520
        %v2321 = vunpack.c.l.b16 %v521
        %v2322 = vunpack.c.h.b16 %v521
        %v2323 = vunpack.c.l.b16 %v522
        %v2324 = vunpack.c.l.b16 %v523
        %v2325 = vunpack.c.h.b16 %v523
        %v2326 = vunpack.c.l.b16 %v524
        %v2327 = vunpack.c.l.b16 %v525
        %v2328 = vunpack.c.h.b16 %v525
        %v2329 = vunpack.c.l.b16 %v526
        %v2330 = vunpack.c.l.b16 %v527
        %v2331 = vunpack.c.h.b16 %v527
        %v2332 = vunpack.c.l.b16 %v528
        %v2333 = vunpack.c.l.b16 %v529
        %v2334 = vunpack.c.h.b16 %v529
        %v2335 = vunpack.c.l.b16 %v530
        %v2336 = vunpack.c.l.b16 %v531
        %v2337 = vunpack.c.h.b16 %v531
        %v2338 = vunpack.c.l.b16 %v532
        %v2339 = vunpack.c.l.b16 %v533
        %v2340 = vunpack.c.h.b16 %v533
        %v2341 = vunpack.c.l.b16 %v534
        %v2342 = vunpack.c.l.b16 %v535
        %v2343 = vunpack.c.h.b16 %v535
        %v2344 = vunpack.c.l.b16 %v536
        %v2345 = vunpack.c.l.b16 %v537
        %v2346 = vunpack.c.h.b16 %v537
        %v2347 = vunpack.c.l.b16 %v538
        %v2348 = vunpack.c.l.b16 %v539
        %v2349 = vunpack.c.h.b16 %v539
        %v2350 = vunpack.c.l.b16 %v540
        %v2351 = vunpack.c.l.b16 %v541
        %v2352 = vunpack.c.h.b16 %v541
        %v2353 = vunpack.c.l.b16 %v542
        %v2354 = vunpack.c.l.b16 %v543
        %v2355 = vunpack.c.h.b16 %v543
        %v2356 = vunpack.c.l.b16 %v544
        %v2357 = vunpack.c.l.b16 %v545
        %v2358 = vunpack.c.h.b16 %v545
        %v2359 = vunpack.c.l.b16 %v546
        %v2360 = vunpack.c.l.b16 %v547
        %v2361 = vunpack.c.h.b16 %v547
        %v2362 = vunpack.c.l.b16 %v548
        %v2363 = vunpack.c.l.b16 %v549
        %v2364 = vunpack.c.h.b16 %v549
        %v2365 = vunpack.c.l.b16 %v550
        %v2366 = vunpack.c.l.b16 %v551
        %v2367 = vunpack.c.h.b16 %v551
        %v2368 = vunpack.c.l.b16 %v552
        %v2369 = vunpack.c.l.b16 %v553
        %v2370 = vunpack.c.h.b16 %v553
        %v2371 = vunpack.c.l.b16 %v554
        %v2372 = vunpack.c.l.b16 %v555
        %v2373 = vunpack.c.h.b16 %v555
        %v2374 = vunpack.c.l.b16 %v556
        %v2375 = vunpack.c.l.b16 %v557
        %v2376 = vunpack.c.h.b16 %v557
        %v2377 = vunpack.c.l.b16 %v558
        %v2378 = vunpack.c.l.b16 %v559
        %v2379 = vunpack.c.h.b16 %v559
        %v2380 = vunpack.c.l.b16 %v560
        %v2381 = vunpack.c.l.b16 %v561
        %v2382 = vunpack.c.h.b16 %v561
        %v2383 = vunpack.c.l.b16 %v562
        %v2384 = vunpack.c.l.b16 %v563
        %v2385 = vunpack.c.h.b16 %v563
        %v2386 = vunpack.c.l.b16 %v564
        %v2387 = vunpack.c.l.b16 %v565
        %v2388 = vunpack.c.h.b16 %v565
        %v2389 = vunpack.c.l.b16 %v566
        %v2390 = vunpack.c.l.b16 %v567
        %v2391 = vunpack.c.h.b16 %v567
        %v2392 = vunpack.c.l.b16 %v568
        %v2393 = vunpack.c.l.b16 %v569
        %v2394 = vunpack.c.h.b16 %v569
        %v2395 = vunpack.c.l.b16 %v570
        %v2396 = vunpack.c.l.b16 %v571
        %v2397 = vunpack.c.h.b16 %v571
        %v2398 = vunpack.c.l.b16 %v572
        %v2399 = vunpack.c.l.b16 %v573
        %v2400 = vunpack.c.h.b16 %v573
        %v2401 = vunpack.c.l.b16 %v574
        %v2402 = vunpack.c.l.b16 %v575
        %v2403 = vunpack.c.h.b16 %v575
        %v2404 = vunpack.c.l.b16 %v576
        %v2405 = vunpack.c.l.b16 %v577
        %v2406 = vunpack.c.h.b16 %v577
        %v2407 = vunpack.c.l.b16 %v578
        %v2408 = vunpack.c.l.b16 %v579
        %v2409 = vunpack.c.h.b16 %v579
        %v2410 = vunpack.c.l.b16 %v580
        %v2411 = vunpack.c.l.b16 %v581
        %v2412 = vunpack.c.h.b16 %v581
        %v2413 = vunpack.c.l.b16 %v582
        %v2414 = vunpack.c.l.b16 %v583
        %v2415 = vunpack.c.h.b16 %v583
        %v2416 = vunpack.c.l.b16 %v584
        %v2417 = vunpack.c.l.b16 %v585
        %v2418 = vunpack.c.h.b16 %v585
        %v2419 = vunpack.c.l.b16 %v586
        %v2420 = vunpack.c.l.b16 %v587
        %v2421 = vunpack.c.h.b16 %v587
        %v2422 = vunpack.c.l.b16 %v588
        %v2423 = vunpack.c.l.b16 %v589
        %v2424 = vunpack.c.h.b16 %v589
        %v2425 = vunpack.c.l.b16 %v590
        %v2426 = vunpack.c.l.b16 %v591
        %v2427 = vunpack.c.h.b16 %v591
        %v2428 = vunpack.c.l.b16 %v592
        %v2429 = vunpack.c.l.b16 %v593
        %v2430 = vunpack.c.h.b16 %v593
        %v2431 = vunpack.c.l.b16 %v594
        %v2432 = vunpack.c.l.b16 %v595
        %v2433 = vunpack.c.h.b16 %v595
        %v2434 = vunpack.c.l.b16 %v596
        %v2435 = vunpack.c.l.b16 %v597
        %v2436 = vunpack.c.h.b16 %v597
        %v2437 = vunpack.c.l.b16 %v598
        %v2438 = vunpack.c.l.b16 %v599
        %v2439 = vunpack.c.h.b16 %v599
        %v2440 = vunpack.c.l.b16 %v600
        %v2441 = vunpack.c.l.b16 %v601
        %v2442 = vunpack.c.h.b16 %v601
        %v2443 = vunpack.c.l.b16 %v602
        %v2444 = vunpack.c.l.b16 %v603
        %v2445 = vunpack.c.h.b16 %v603
        %v2446 = vunpack.c.l.b16 %v604
        %v2447 = vunpack.c.l.b16 %v605
        %v2448 = vunpack.c.h.b16 %v605
        %v2449 = vunpack.c.l.b16 %v606
        %v2450 = vunpack.c.l.b16 %v607
        %v2451 = vunpack.c.h.b16 %v607
        %v2452 = vunpack.c.l.b16 %v608
        %v2453 = vunpack.c.l.b16 %v609
        %v2454 = vunpack.c.h.b16 %v609
        %v2455 = vunpack.c.l.b16 %v610
        %v2456 = vunpack.c.l.b16 %v611
        %v2457 = vunpack.c.h.b16 %v611
        %v2458 = vunpack.c.l.b16 %v612
        %v2459 = vunpack.c.l.b16 %v613
        %v2460 = vunpack.c.h.b16 %v613
        %v2461 = vunpack.c.l.b16 %v614
        %v2462 = vunpack.c.l.b16 %v615
        %v2463 = vunpack.c.h.b16 %v615
        %v2464 = vunpack.c.l.b16 %v616
        %v2465 = vunpack.c.l.b16 %v617
        %v2466 = vunpack.c.h.b16 %v617
        %v2467 = vunpack.c.l.b16 %v618
        %v2468 = vunpack.c.l.b16 %v619
        %v2469 = vunpack.c.h.b16 %v619
        %v2470 = vunpack.c.l.b16 %v620
        %v2471 = vunpack.c.l.b16 %v621
        %v2472 = vunpack.c.h.b16 %v621
        %v2473 = vunpack.c.l.b16 %v622
        %v2474 = vunpack.c.l.b16 %v623
        %v2475 = vunpack.c.h.b16 %v623
        %v2476 = vunpack.c.l.b16 %v624
        %v2477 = vunpack.c.l.b16 %v625
        %v2478 = vunpack.c.h.b16 %v625
        %v2479 = vunpack.c.l.b16 %v626
        %v2480 = vunpack.c.l.b16 %v627
        %v2481 = vunpack.c.h.b16 %v627
        %v2482 = vunpack.c.l.b16 %v628
        %v2483 = vunpack.c.l.b16 %v629
        %v2484 = vunpack.c.h.b16 %v629
        %v2485 = vunpack.c.l.b16 %v630
        %v2486 = vunpack.c.l.b16 %v631
        %v2487 = vunpack.c.h.b16 %v631
        %v2488 = vunpack.c.l.b16 %v632
        %v2489 = vunpack.c.l.b16 %v633
        %v2490 = vunpack.c.h.b16 %v633
        %v2491 = vunpack.c.l.b16 %v634
        %v2492 = vunpack.c.l.b16 %v635
        %v2493 = vunpack.c.h.b16 %v635
        %v2494 = vunpack.c.l.b16 %v636
        %v2495 = vunpack.c.l.b16 %v637
        %v2496 = vunpack.c.h.b16 %v637
        %v2497 = vunpack.c.l.b16 %v638
        %v2498 = vunpack.c.l.b16 %v639
        %v2499 = vunpack.c.h.b16 %v639
        %v2500 = vunpack.c.l.b16 %v640
        %v2501 = vunpack.c.l.b16 %v641
        %v2502 = vunpack.c.h.b16 %v641
        %v2503 = vunpack.c.l.b16 %v642
        %v2504 = vunpack.c.l.b16 %v643
        %v2505 = vunpack.c.h.b16 %v643
        %v2506 = vunpack.c.l.b16 %v644
        %v2507 = vunpack.c.l.b16 %v645
        %v2508 = vunpack.c.h.b16 %v645
        %v2509 = vunpack.c.l.b16 %v646
        %v2510 = vunpack.c.l.b16 %v647
        %v2511 = vunpack.c.h.b16 %v647
        %v2512 = vunpack.c.l.b16 %v648
        %v2513 = vunpack.c.l.b16 %v649
        %v2514 = vunpack.c.h.b16 %v649
        %v2515 = vunpack.c.l.b16 %v650
        %v2516 = vunpack.c.l.b16 %v651
        %v2517 = vunpack.c.h.b16 %v651
        %v2518 = vunpack.c.l.b16 %v652
        %v2519 = vunpack.c.l.b16 %v653
        %v2520 = vunpack.c.h.b16 %v653
        %v2521 = vunpack.c.l.b16 %v654
        %v2522 = vunpack.c.l.b16 %v655
        %v2523 = vunpack.c.h.b16 %v655
        %v2524 = vunpack.c.l.b16 %v656
        %v2525 = vunpack.c.l.b16 %v657
        %v2526 = vunpack.c.h.b16 %v657
        %v2527 = vunpack.c.l.b16 %v658
        %v2528 = vunpack.c.l.b16 %v659
        %v2529 = vunpack.c.h.b16 %v659
        %v2530 = vunpack.c.l.b16 %v660
        %v2531 = vunpack.c.l.b16 %v661
        %v2532 = vunpack.c.h.b16 %v661
        %v2533 = vunpack.c.l.b16 %v662
        %v2534 = vunpack.c.l.b16 %v663
        %v2535 = vunpack.c.h.b16 %v663
        %v2536 = vunpack.c.l.b16 %v664
        %v2537 = vunpack.c.l.b16 %v665
        %v2538 = vunpack.c.h.b16 %v665
        %v2539 = vunpack.c.l.b16 %v666
        %v2540 = vunpack.c.l.b16 %v667
        %v2541 = vunpack.c.h.b16 %v667
        %v2542 = vunpack.c.l.b16 %v668
        %v2543 = vunpack.c.l.b16 %v669
        %v2544 = vunpack.c.h.b16 %v669
        %v2545 = vunpack.c.l.b16 %v670
        %v2546 = vunpack.c.l.b16 %v671
        %v2547 = vunpack.c.h.b16 %v671
        %v2548 = vunpack.c.l.b16 %v672
        %v2549 = vunpack.c.l.b16 %v673
        %v2550 = vunpack.c.h.b16 %v673
        %v2551 = vunpack.c.l.b16 %v674
        %v2552 = vunpack.c.l.b16 %v675
        %v2553 = vunpack.c.h.b16 %v675
        %v2554 = vunpack.c.l.b16 %v676
        %v2555 = vunpack.c.l.b16 %v677
        %v2556 = vunpack.c.h.b16 %v677
        %v2557 = vunpack.c.l.b16 %v678
        %v2558 = vunpack.c.l.b16 %v679
        %v2559 = vunpack.c.h.b16 %v679
        %v2560 = vunpack.c.l.b16 %v680
        %v2561 = vunpack.c.l.b16 %v681
        %v2562 = vunpack.c.h.b16 %v681
        %v2563 = vunpack.c.l.b16 %v682
        %v2564 = vunpack.c.l.b16 %v683
        %v2565 = vunpack.c.h.b16 %v683
        %v2566 = vunpack.c.l.b16 %v684
        %v2567 = vunpack.c.l.b16 %v685
        %v2568 = vunpack.c.h.b16 %v685
        %v2569 = vunpack.c.l.b16 %v686
        %v2570 = vunpack.c.l.b16 %v687
        %v2571 = vunpack.c.h.b16 %v687
        %v2572 = vunpack.c.l.b16 %v688
        %v2573 = vunpack.c.l.b16 %v689
        %v2574 = vunpack.c.h.b16 %v689
        %v2575 = vunpack.c.l.b16 %v690
        %v2576 = vunpack.c.l.b16 %v691
        %v2577 = vunpack.c.h.b16 %v691
        %v2578 = vunpack.c.l.b16 %v692
        %v2579 = vunpack.c.l.b16 %v693
        %v2580 = vunpack.c.h.b16 %v693
        %v2581 = vunpack.c.l.b16 %v694
        %v2582 = vunpack.c.l.b16 %v695
        %v2583 = vunpack.c.h.b16 %v695
        %v2584 = vunpack.c.l.b16 %v696
        %v2585 = vunpack.c.l.b16 %v697
        %v2586 = vunpack.c.h.b16 %v697
        %v2587 = vunpack.c.l.b16 %v698
        %v2588 = vunpack.c.l.b16 %v699
        %v2589 = vunpack.c.h.b16 %v699
        %v2590 = vunpack.c.l.b16 %v700
        %v2591 = vunpack.c.l.b16 %v701
        %v2592 = vunpack.c.h.b16 %v701
        %v2593 = vunpack.c.l.b16 %v702
        %v2594 = vunpack.c.l.b16 %v703
        %v2595 = vunpack.c.h.b16 %v703
        %v2596 = vunpack.c.l.b16 %v704
        %v2597 = vunpack.c.l.b16 %v705
        %v2598 = vunpack.c.h.b16 %v705
        %v2599 = vunpack.c.l.b16 %v706
        %v2600 = vunpack.c.l.b16 %v707
        %v2601 = vunpack.c.h.b16 %v707
        %v2602 = vunpack.c.l.b16 %v708
        %v2603 = vunpack.c.l.b16 %v709
        %v2604 = vunpack.c.h.b16 %v709
        %v2605 = vunpack.c.l.b16 %v710
        %v2606 = vunpack.c.l.b16 %v711
        %v2607 = vunpack.c.h.b16 %v711
        %v2608 = vunpack.c.l.b16 %v712
        %v2609 = vunpack.c.l.b16 %v713
        %v2610 = vunpack.c.h.b16 %v713
        %v2611 = vunpack.c.l.b16 %v714
        %v2612 = vunpack.c.l.b16 %v715
        %v2613 = vunpack.c.h.b16 %v715
        %v2614 = vunpack.c.l.b16 %v716
        %v2615 = vunpack.c.l.b16 %v717
        %v2616 = vunpack.c.h.b16 %v717
        %v2617 = vunpack.c.l.b16 %v718
        %v2618 = vunpack.c.l.b16 %v719
        %v2619 = vunpack.c.h.b16 %v719
        %v2620 = vunpack.c.l.b16 %v720
        %v2621 = vunpack.c.l.b16 %v721
        %v2622 = vunpack.c.h.b16 %v721
        %v2623 = vunpack.c.l.b16 %v722
        %v2624 = vunpack.c.l.b16 %v723
        %v2625 = vunpack.c.h.b16 %v723
        %v2626 = vunpack.c.l.b16 %v724
        %v2627 = vunpack.c.l.b16 %v725
        %v2628 = vunpack.c.h.b16 %v725
        %v2629 = vunpack.c.l.b16 %v726
        %v2630 = vunpack.c.l.b16 %v727
        %v2631 = vunpack.c.h.b16 %v727
        %v2632 = vunpack.c.l.b16 %v728
        %v2633 = vunpack.c.l.b16 %v729
        %v2634 = vunpack.c.h.b16 %v729
        %v2635 = vunpack.c.l.b16 %v730
        %v2636 = vunpack.c.l.b16 %v731
        %v2637 = vunpack.c.h.b16 %v731
        %v2638 = vunpack.c.l.b16 %v732
        %v2639 = vunpack.c.l.b16 %v733
        %v2640 = vunpack.c.h.b16 %v733
        %v2641 = vunpack.c.l.b16 %v734
        %v2642 = vunpack.c.l.b16 %v735
        %v2643 = vunpack.c.h.b16 %v735
        %v2644 = vunpack.c.l.b16 %v736
        %v2645 = vunpack.c.l.b16 %v737
        %v2646 = vunpack.c.h.b16 %v737
        %v2647 = vunpack.c.l.b16 %v738
        %v2648 = vunpack.c.l.b16 %v739
        %v2649 = vunpack.c.h.b16 %v739
        %v2650 = vunpack.c.l.b16 %v740
        %v2651 = vunpack.c.l.b16 %v741
        %v2652 = vunpack.c.h.b16 %v741
        %v2653 = vunpack.c.l.b16 %v742
        %v2654 = vunpack.c.l.b16 %v743
        %v2655 = vunpack.c.h.b16 %v743
        %v2656 = vunpack.c.l.b16 %v744
        %v2657 = vunpack.c.l.b16 %v745
        %v2658 = vunpack.c.h.b16 %v745
        %v2659 = vunpack.c.l.b16 %v746
        %v2660 = vunpack.c.l.b16 %v747
        %v2661 = vunpack.c.h.b16 %v747
        %v2662 = vunpack.c.l.b16 %v748
        %v2663 = vunpack.c.l.b16 %v749
        %v2664 = vunpack.c.h.b16 %v749
        %v2665 = vunpack.c.l.b16 %v750
        %v2666 = vunpack.c.l.b16 %v751
        %v2667 = vunpack.c.h.b16 %v751
        %v2668 = vunpack.c.l.b16 %v752
        %v2669 = vunpack.c.l.b16 %v753
        %v2670 = vunpack.c.h.b16 %v753
        %v2671 = vunpack.c.l.b16 %v754
        %v2672 = vunpack.c.l.b16 %v755
        %v2673 = vunpack.c.h.b16 %v755
        %v2674 = vunpack.c.l.b16 %v756
        %v2675 = vunpack.c.l.b16 %v757
        %v2676 = vunpack.c.h.b16 %v757
        %v2677 = vunpack.c.l.b16 %v758
        %v2678 = vunpack.c.l.b16 %v759
        %v2679 = vunpack.c.h.b16 %v759
        %v2680 = vunpack.c.l.b16 %v760
        %v2681 = vunpack.c.l.b16 %v761
        %v2682 = vunpack.c.h.b16 %v761
        %v2683 = vunpack.c.l.b16 %v762
        %v2684 = vunpack.c.l.b16 %v763
        %v2685 = vunpack.c.h.b16 %v763
        %v2686 = vunpack.c.l.b16 %v764
        %v2687 = vunpack.c.l.b16 %v765
        %v2688 = vunpack.c.h.b16 %v765
        %v2689 = vunpack.c.l.b16 %v766
        %v2690 = vunpack.c.l.b16 %v767
        %v2691 = vunpack.c.h.b16 %v767
        %v2692 = vunpack.c.l.b16 %v768
        %v2693 = vunpack.c.l.b16 %v769
        %v2694 = vunpack.c.h.b16 %v769
        %v2695 = vunpack.c.l.b16 %v770
        %v2696 = vunpack.c.l.b16 %v771
        %v2697 = vunpack.c.h.b16 %v771
        %v2698 = vunpack.c.l.b16 %v772
        %v2699 = vunpack.c.l.b16 %v773
        %v2700 = vunpack.c.h.b16 %v773
        %v2701 = vunpack.c.l.b16 %v774
        %v2702 = vunpack.c.l.b16 %v775
        %v2703 = vunpack.c.h.b16 %v775
        %v2704 = vunpack.c.l.b16 %v776
        %v2705 = vunpack.c.l.b16 %v777
        %v2706 = vunpack.c.h.b16 %v777
        %v2707 = vunpack.c.l.b16 %v778
        %v2708 = vunpack.c.l.b16 %v779
        %v2709 = vunpack.c.h.b16 %v779
        %v2710 = vunpack.c.l.b16 %v780
        %v2711 = vunpack.c.l.b16 %v781
        %v2712 = vunpack.c.h.b16 %v781
        %v2713 = vunpack.c.l.b16 %v782
        %v2714 = vunpack.c.l.b16 %v783
        %v2715 = vunpack.c.h.b16 %v783
        %v2716 = vunpack.c.l.b16 %v784
        %v2717 = vunpack.c.l.b16 %v785
        %v2718 = vunpack.c.h.b16 %v785
        %v2719 = vunpack.c.l.b16 %v786
        %v2720 = vunpack.c.l.b16 %v787
        %v2721 = vunpack.c.h.b16 %v787
        %v2722 = vunpack.c.l.b16 %v788
        %v2723 = vunpack.c.l.b16 %v789
        %v2724 = vunpack.c.h.b16 %v789
        %v2725 = vunpack.c.l.b16 %v790
        %v2726 = vunpack.c.l.b16 %v791
        %v2727 = vunpack.c.h.b16 %v791
        %v2728 = vunpack.c.l.b16 %v792
        %v2729 = vunpack.c.l.b16 %v793
        %v2730 = vunpack.c.h.b16 %v793
        %v2731 = vunpack.c.l.b16 %v794
        %v2732 = vunpack.c.l.b16 %v795
        %v2733 = vunpack.c.h.b16 %v795
        %v2734 = vunpack.c.l.b16 %v796
        %v2735 = vunpack.c.l.b16 %v797
        %v2736 = vunpack.c.h.b16 %v797
        %v2737 = vunpack.c.l.b16 %v798
        %v2738 = vunpack.c.l.b16 %v799
        %v2739 = vunpack.c.h.b16 %v799
        %v2740 = vunpack.c.l.b16 %v800
        %v2741 = vunpack.c.l.b16 %v801
        %v2742 = vunpack.c.h.b16 %v801
        %v2743 = vunpack.c.l.b16 %v802
        %v2744 = vunpack.c.l.b16 %v803
        %v2745 = vunpack.c.h.b16 %v803
        %v2746 = vunpack.c.l.b16 %v804
        %v2747 = vunpack.c.l.b16 %v805
        %v2748 = vunpack.c.h.b16 %v805
        %v2749 = vunpack.c.l.b16 %v806
        %v2750 = vunpack.c.l.b16 %v807
        %v2751 = vunpack.c.h.b16 %v807
        %v2752 = vunpack.c.l.b16 %v808
        %v2753 = vunpack.c.l.b16 %v809
        %v2754 = vunpack.c.h.b16 %v809
        %v2755 = vunpack.c.l.b16 %v810
        %v2756 = vunpack.c.l.b16 %v811
        %v2757 = vunpack.c.h.b16 %v811
        %v2758 = vunpack.c.l.b16 %v812
        %v2759 = vunpack.c.l.b16 %v813
        %v2760 = vunpack.c.h.b16 %v813
        %v2761 = vunpack.c.l.b16 %v814
        %v2762 = vunpack.c.l.b16 %v815
        %v2763 = vunpack.c.h.b16 %v815
        %v2764 = vunpack.c.l.b16 %v816
        %v2765 = vunpack.c.l.b16 %v817
        %v2766 = vunpack.c.h.b16 %v817
        %v2767 = vunpack.c.l.b16 %v818
        %v2768 = vunpack.c.l.b16 %v819
        %v2769 = vunpack.c.h.b16 %v819
        %v2770 = vunpack.c.l.b16 %v820
        %v2771 = vunpack.c.l.b16 %v821
        %v2772 = vunpack.c.h.b16 %v821
        %v2773 = vunpack.c.l.b16 %v822
        %v2774 = vunpack.c.l.b16 %v823
        %v2775 = vunpack.c.h.b16 %v823
        %v2776 = vunpack.c.l.b16 %v824
        %v2777 = vunpack.c.l.b16 %v825
        %v2778 = vunpack.c.h.b16 %v825
        %v2779 = vunpack.c.l.b16 %v826
        %v2780 = vunpack.c.l.b16 %v827
        %v2781 = vunpack.c.h.b16 %v827
        %v2782 = vunpack.c.l.b16 %v828
        %v2783 = vunpack.c.l.b16 %v829
        %v2784 = vunpack.c.h.b16 %v829
        %v2785 = vunpack.c.l.b16 %v830
        %v2786 = vunpack.c.l.b16 %v831
        %v2787 = vunpack.c.h.b16 %v831
        %v2788 = vunpack.c.l.b16 %v832
        %v2789 = vunpack.c.l.b16 %v833
        %v2790 = vunpack.c.h.b16 %v833
        %v2791 = vunpack.c.l.b16 %v834
        %v2792 = vunpack.c.l.b16 %v835
        %v2793 = vunpack.c.h.b16 %v835
        %v2794 = vunpack.c.l.b16 %v836
        %v2795 = vunpack.c.l.b16 %v837
        %v2796 = vunpack.c.h.b16 %v837
        %v2797 = vunpack.c.l.b16 %v838
        %v2798 = vunpack.c.l.b16 %v839
        %v2799 = vunpack.c.h.b16 %v839
        %v2800 = vunpack.c.l.b16 %v840
        %v2801 = vunpack.c.l.b16 %v841
        %v2802 = vunpack.c.h.b16 %v841
        %v2803 = vunpack.c.l.b16 %v842
        %v2804 = vunpack.c.l.b16 %v843
        %v2805 = vunpack.c.h.b16 %v843
        %v2806 = vunpack.c.l.b16 %v844
        %v2807 = vunpack.c.l.b16 %v845
        %v2808 = vunpack.c.h.b16 %v845
        %v2809 = vunpack.c.l.b16 %v846
        %v2810 = vunpack.c.l.b16 %v847
        %v2811 = vunpack.c.h.b16 %v847
        %v2812 = vunpack.c.l.b16 %v848
        %v2813 = vunpack.c.l.b16 %v849
        %v2814 = vunpack.c.h.b16 %v849
        %v2815 = vunpack.c.l.b16 %v850
        %v2816 = vunpack.c.l.b16 %v851
        %v2817 = vunpack.c.h.b16 %v851
        %v2818 = vunpack.c.l.b16 %v852
        %v2819 = vunpack.c.l.b16 %v853
        %v2820 = vunpack.c.h.b16 %v853
        %v2821 = vunpack.c.l.b16 %v854
        %v2822 = vunpack.c.l.b16 %v855
        %v2823 = vunpack.c.h.b16 %v855
        %v2824 = vunpack.c.l.b16 %v856
        %v2825 = vunpack.c.l.b16 %v857
        %v2826 = vunpack.c.h.b16 %v857
        %v2827 = vunpack.c.l.b16 %v858
        %v2828 = vunpack.c.l.b16 %v859
        %v2829 = vunpack.c.h.b16 %v859
        %v2830 = vunpack.c.l.b16 %v860
        %v2831 = vunpack.c.l.b16 %v861
        %v2832 = vunpack.c.h.b16 %v861
        %v2833 = vunpack.c.l.b16 %v862
        %v2834 = vunpack.c.l.b16 %v863
        %v2835 = vunpack.c.h.b16 %v863
        %v2836 = vunpack.c.l.b16 %v864
        %v2837 = vunpack.c.l.b16 %v865
        %v2838 = vunpack.c.h.b16 %v865
        %v2839 = vunpack.c.l.b16 %v866
        %v2840 = vunpack.c.l.b16 %v867
        %v2841 = vunpack.c.h.b16 %v867
        %v2842 = vunpack.c.l.b16 %v868
        %v2843 = vunpack.c.l.b16 %v869
        %v2844 = vunpack.c.h.b16 %v869
        %v2845 = vunpack.c.l.b16 %v870
        %v2846 = vunpack.c.l.b16 %v871
        %v2847 = vunpack.c.h.b16 %v871
        %v2848 = vunpack.c.l.b16 %v872
        %v2849 = vunpack.c.l.b16 %v873
        %v2850 = vunpack.c.h.b16 %v873
        %v2851 = vunpack.c.l.b16 %v874
        %v2852 = vunpack.c.l.b16 %v875
        %v2853 = vunpack.c.h.b16 %v875
        %v2854 = vunpack.c.l.b16 %v876
        %v2855 = vunpack.c.l.b16 %v877
        %v2856 = vunpack.c.h.b16 %v877
        %v2857 = vunpack.c.l.b16 %v878
        %v2858 = vunpack.c.l.b16 %v879
        %v2859 = vunpack.c.h.b16 %v879
        %v2860 = vunpack.c.l.b16 %v880
        %v2861 = vunpack.c.l.b16 %v881
        %v2862 = vunpack.c.h.b16 %v881
        %v2863 = vunpack.c.l.b16 %v882
        %v2864 = vunpack.c.l.b16 %v883
        %v2865 = vunpack.c.h.b16 %v883
        %v2866 = vunpack.c.l.b16 %v884
        %v2867 = vunpack.c.l.b16 %v885
        %v2868 = vunpack.c.h.b16 %v885
        %v2869 = vunpack.c.l.b16 %v886
        %v2870 = vunpack.c.l.b16 %v887
        %v2871 = vunpack.c.h.b16 %v887
        %v2872 = vunpack.c.l.b16 %v888
        %v2873 = vunpack.c.l.b16 %v889
        %v2874 = vunpack.c.h.b16 %v889
        %v2875 = vunpack.c.l.b16 %v890
        %v2876 = vunpack.c.l.b16 %v891
        %v2877 = vunpack.c.h.b16 %v891
        %v2878 = vunpack.c.l.b16 %v892
        %v2879 = vunpack.c.l.b16 %v893
        %v2880 = vunpack.c.h.b16 %v893
        %v2881 = vunpack.c.l.b16 %v894
        %v2882 = vunpack.c.l.b16 %v895
        %v2883 = vunpack.c.h.b16 %v895
        %v2884 = vunpack.c.l.b16 %v896
        %v2885 = vunpack.c.l.b16 %v897
        %v2886 = vunpack.c.h.b16 %v897
        %v2887 = vunpack.c.l.b16 %v898
        %v2888 = vunpack.c.l.b16 %v899
        %v2889 = vunpack.c.h.b16 %v899
        %v2890 = vunpack.c.l.b16 %v900
        %v2891 = vunpack.c.l.b16 %v901
        %v2892 = vunpack.c.h.b16 %v901
        %v2893 = vunpack.c.l.b16 %v902
        %v2894 = vunpack.c.l.b16 %v903
        %v2895 = vunpack.c.h.b16 %v903
        %v2896 = vunpack.c.l.b16 %v904
        %v2897 = vunpack.c.l.b16 %v905
        %v2898 = vunpack.c.h.b16 %v905
        %v2899 = vunpack.c.l.b16 %v906
        %v2900 = vunpack.c.l.b16 %v907
        %v2901 = vunpack.c.h.b16 %v907
        %v2902 = vunpack.c.l.b16 %v908
        %v2903 = vunpack.c.l.b16 %v909
        %v2904 = vunpack.c.h.b16 %v909
        %v2905 = vunpack.c.l.b16 %v910
        %v2906 = vunpack.c.l.b16 %v911
        %v2907 = vunpack.c.h.b16 %v911
        %v2908 = vunpack.c.l.b16 %v912
        %v2909 = vunpack.c.l.b16 %v913
        %v2910 = vunpack.c.h.b16 %v913
        %v2911 = vunpack.c.l.b16 %v914
        %v2912 = vunpack.c.l.b16 %v915
        %v2913 = vunpack.c.h.b16 %v915
        %v2914 = vunpack.c.l.b16 %v916
        %v2915 = vunpack.c.l.b16 %v917
        %v2916 = vunpack.c.h.b16 %v917
        %v2917 = vunpack.c.l.b16 %v918
        %v2918 = vunpack.c.l.b16 %v919
        %v2919 = vunpack.c.h.b16 %v919
        %v2920 = vunpack.c.l.b16 %v920
        %v2921 = vunpack.c.l.b16 %v921
        %v2922 = vunpack.c.h.b16 %v921
        %v2923 = vunpack.c.l.b16 %v922
        %v2924 = vunpack.c.l.b16 %v923
        %v2925 = vunpack.c.h.b16 %v923
        %v2926 = vunpack.c.l.b16 %v924
        %v2927 = vunpack.c.l.b16 %v925
        %v2928 = vunpack.c.h.b16 %v925
        %v2929 = vunpack.c.l.b16 %v926
        %v2930 = vunpack.c.l.b16 %v927
        %v2931 = vunpack.c.h.b16 %v927
        %v2932 = vunpack.c.l.b16 %v928
        %v2933 = vunpack.c.l.b16 %v929
        %v2934 = vunpack.c.h.b16 %v929
        %v2935 = vunpack.c.l.b16 %v930
        %v2936 = vunpack.c.l.b16 %v931
        %v2937 = vunpack.c.h.b16 %v931
        %v2938 = vunpack.c.l.b16 %v932
        %v2939 = vunpack.c.l.b16 %v933
        %v2940 = vunpack.c.h.b16 %v933
        %v2941 = vunpack.c.l.b16 %v934
        %v2942 = vunpack.c.l.b16 %v935
        %v2943 = vunpack.c.h.b16 %v935
        %v2944 = vunpack.c.l.b16 %v936
        %v2945 = vunpack.c.l.b16 %v937
        %v2946 = vunpack.c.h.b16 %v937
        %v2947 = vunpack.c.l.b16 %v938
        %v2948 = vunpack.c.l.b16 %v939
        %v2949 = vunpack.c.h.b16 %v939
        %v2950 = vunpack.c.l.b16 %v940
        %v2951 = vunpack.c.l.b16 %v941
        %v2952 = vunpack.c.h.b16 %v941
        %v2953 = vunpack.c.l.b16 %v942
        %v2954 = vunpack.c.l.b16 %v943
        %v2955 = vunpack.c.h.b16 %v943
        %v2956 = vunpack.c.l.b16 %v944
        %v2957 = vunpack.c.l.b16 %v945
        %v2958 = vunpack.c.h.b16 %v945
        %v2959 = vunpack.c.l.b16 %v946
        %v2960 = vunpack.c.l.b16 %v947
        %v2961 = vunpack.c.h.b16 %v947
        %v2962 = vunpack.c.l.b16 %v948
        %v2963 = vunpack.c.l.b16 %v949
        %v2964 = vunpack.c.h.b16 %v949
        %v2965 = vunpack.c.l.b16 %v950
        %v2966 = vunpack.c.l.b16 %v951
        %v2967 = vunpack.c.h.b16 %v951
        %v2968 = vunpack.c.l.b16 %v952
        %v2969 = vunpack.c.l.b16 %v953
        %v2970 = vunpack.c.h.b16 %v953
        %v2971 = vunpack.c.l.b16 %v954
        %v2972 = vunpack.c.l.b16 %v955
        %v2973 = vunpack.c.h.b16 %v955
        %v2974 = vunpack.c.l.b16 %v956
        %v2975 = vunpack.c.l.b16 %v957
        %v2976 = vunpack.c.h.b16 %v957
        %v2977 = vunpack.c.l.b16 %v958
        %v2978 = vunpack.c.l.b16 %v959
        %v2979 = vunpack.c.h.b16 %v959
        %v2980 = vunpack.c.l.b16 %v960
        %v2981 = vunpack.c.l.b16 %v961
        %v2982 = vunpack.c.h.b16 %v961
        %v2983 = vunpack.c.l.b16 %v962
        %v2984 = vunpack.c.l.b16 %v963
        %v2985 = vunpack.c.h.b16 %v963
        %v2986 = vunpack.c.l.b16 %v964
        %v2987 = vunpack.c.l.b16 %v965
        %v2988 = vunpack.c.h.b16 %v965
        %v2989 = vunpack.c.l.b16 %v966
        %v2990 = vunpack.c.l.b16 %v967
        %v2991 = vunpack.c.h.b16 %v967
        %v2992 = vunpack.c.l.b16 %v968
        %v2993 = vunpack.c.l.b16 %v969
        %v2994 = vunpack.c.h.b16 %v969
        %v2995 = vunpack.c.l.b16 %v970
        %v2996 = vunpack.c.l.b16 %v971
        %v2997 = vunpack.c.h.b16 %v971
        %v2998 = vunpack.c.l.b16 %v972
        %v2999 = vunpack.c.l.b16 %v973
        %v3000 = vunpack.c.h.b16 %v973
        %v3001 = vunpack.c.l.b16 %v974
        %v3002 = vunpack.c.l.b16 %v975
        %v3003 = vunpack.c.h.b16 %v975
        %v3004 = vunpack.c.l.b16 %v976
        %v3005 = vunpack.c.l.b16 %v977
        %v3006 = vunpack.c.h.b16 %v977
        %v3007 = vunpack.c.l.b16 %v978
        %v3008 = vunpack.c.l.b16 %v979
        %v3009 = vunpack.c.h.b16 %v979
        %v3010 = vunpack.c.l.b16 %v980
        %v3011 = vunpack.c.l.b16 %v981
        %v3012 = vunpack.c.h.b16 %v981
        %v3013 = vunpack.c.l.b16 %v982
        %v3014 = vunpack.c.l.b16 %v983
        %v3015 = vunpack.c.h.b16 %v983
        %v3016 = vunpack.c.l.b16 %v984
        %v3017 = vunpack.c.l.b16 %v985
        %v3018 = vunpack.c.h.b16 %v985
        %v3019 = vunpack.c.l.b16 %v986
        %v3020 = vunpack.c.l.b16 %v987
        %v3021 = vunpack.c.h.b16 %v987
        %v3022 = vunpack.c.l.b16 %v988
        %v3023 = vunpack.c.l.b16 %v989
        %v3024 = vunpack.c.h.b16 %v989
        %v3025 = vunpack.c.l.b16 %v990
        %v3026 = vunpack.c.l.b16 %v991
        %v3027 = vunpack.c.h.b16 %v991
        %v3028 = vunpack.c.l.b16 %v992
        %v3029 = vunpack.c.l.b16 %v993
        %v3030 = vunpack.c.h.b16 %v993
        %v3031 = vunpack.c.l.b16 %v994
        %v3032 = vunpack.c.l.b16 %v995
        %v3033 = vunpack.c.h.b16 %v995
        %v3034 = vunpack.c.l.b16 %v996
        %v3035 = vunpack.c.l.b16 %v997
        %v3036 = vunpack.c.h.b16 %v997
        %v3037 = vunpack.c.l.b16 %v998
        %v3038 = vunpack.c.l.b16 %v999
        %v3039 = vunpack.c.h.b16 %v999
        %v3040 = vunpack.c.l.b16 %v1000
        %v3041 = vunpack.c.l.b16 %v1001
        %v3042 = vunpack.c.h.b16 %v1001
        %v3043 = vunpack.c.l.b16 %v1002
        %v3044 = vunpack.c.l.b16 %v1003
        %v3045 = vunpack.c.h.b16 %v1003
        %v3046 = vunpack.c.l.b16 %v1004
        %v3047 = vunpack.c.l.b16 %v1005
        %v3048 = vunpack.c.h.b16 %v1005
        %v3049 = vunpack.c.l.b16 %v1006
        %v3050 = vunpack.c.l.b16 %v1007
        %v3051 = vunpack.c.h.b16 %v1007
        %v3052 = vunpack.c.l.b16 %v1008
        %v3053 = vunpack.c.l.b16 %v1009
        %v3054 = vunpack.c.h.b16 %v1009
        %v3055 = vunpack.c.l.b16 %v1010
        %v3056 = vunpack.c.l.b16 %v1011
        %v3057 = vunpack.c.h.b16 %v1011
        %v3058 = vunpack.c.l.b16 %v1012
        %v3059 = vunpack.c.l.b16 %v1013
        %v3060 = vunpack.c.h.b16 %v1013
        %v3061 = vunpack.c.l.b16 %v1014
        %v3062 = vunpack.c.l.b16 %v1015
        %v3063 = vunpack.c.h.b16 %v1015
        %v3064 = vunpack.c.l.b16 %v1016
        %v3065 = vunpack.c.l.b16 %v1017
        %v3066 = vunpack.c.h.b16 %v1017
        %v3067 = vunpack.c.l.b16 %v1018
        %v3068 = vunpack.c.l.b16 %v1019
        %v3069 = vunpack.c.h.b16 %v1019
        %v3070 = vunpack.c.l.b16 %v1020
        %v3071 = vunpack.c.l.b16 %v1021
        %v3072 = vunpack.c.h.b16 %v1021
        %v3073 = vunpack.c.l.b16 %v1022
        %v3074 = vunpack.c.l.b16 %v1023
        %v3075 = vunpack.c.h.b16 %v1023
        %v3076 = vunpack.c.l.b16 %v1024
        %v3077 = vunpack.c.l.b16 %v1025
        %v3078 = vunpack.c.h.b16 %v1025
        %v3079 = vunpack.c.l.b16 %v1026
        %v3080 = vunpack.c.l.b16 %v1027
        %v3081 = vunpack.c.h.b16 %v1027
        %v3082 = vunpack.c.l.b16 %v1028
        %v3083 = vunpack.c.l.b16 %v1029
        %v3084 = vunpack.c.h.b16 %v1029
        %v3085 = vunpack.c.l.b16 %v1030
        %v3086 = vunpack.c.l.b16 %v1031
        %v3087 = vunpack.c.h.b16 %v1031
        %v3088 = vunpack.c.l.b16 %v1032
        %v3089 = vunpack.c.l.b16 %v1033
        %v3090 = vunpack.c.h.b16 %v1033
        %v3091 = vunpack.c.l.b16 %v1034
        %v3092 = vpack.c.b16 %v1943, %v1940
        %v3093 = vpack.c.b16 %v1944, %v1941
        %v3094 = vpack.c.b16 %v1945, %v1942
        %v3095 = vpack.c.b16 %v1949, %v1946
        %v3096 = vpack.c.b16 %v1950, %v1947
        %v3097 = vpack.c.b16 %v1951, %v1948
        %v3098 = vpack.c.b16 %v1955, %v1952
        %v3099 = vpack.c.b16 %v1956, %v1953
        %v3100 = vpack.c.b16 %v1957, %v1954
        %v3101 = vpack.c.b16 %v1961, %v1958
        %v3102 = vpack.c.b16 %v1962, %v1959
        %v3103 = vpack.c.b16 %v1963, %v1960
        %v3104 = vpack.c.b16 %v1967, %v1964
        %v3105 = vpack.c.b16 %v1968, %v1965
        %v3106 = vpack.c.b16 %v1969, %v1966
        %v3107 = vpack.c.b16 %v1973, %v1970
        %v3108 = vpack.c.b16 %v1974, %v1971
        %v3109 = vpack.c.b16 %v1975, %v1972
        %v3110 = vpack.c.b16 %v1979, %v1976
        %v3111 = vpack.c.b16 %v1980, %v1977
        %v3112 = vpack.c.b16 %v1981, %v1978
        %v3113 = vpack.c.b16 %v1985, %v1982
        %v3114 = vpack.c.b16 %v1986, %v1983
        %v3115 = vpack.c.b16 %v1987, %v1984
        %v3116 = vpack.c.b16 %v1991, %v1988
        %v3117 = vpack.c.b16 %v1992, %v1989
        %v3118 = vpack.c.b16 %v1993, %v1990
        %v3119 = vpack.c.b16 %v1997, %v1994
        %v3120 = vpack.c.b16 %v1998, %v1995
        %v3121 = vpack.c.b16 %v1999, %v1996
        %v3122 = vpack.c.b16 %v2003, %v2000
        %v3123 = vpack.c.b16 %v2004, %v2001
        %v3124 = vpack.c.b16 %v2005, %v2002
        %v3125 = vpack.c.b16 %v2009, %v2006
        %v3126 = vpack.c.b16 %v2010, %v2007
        %v3127 = vpack.c.b16 %v2011, %v2008
        %v3128 = vpack.c.b16 %v2015, %v2012
        %v3129 = vpack.c.b16 %v2016, %v2013
        %v3130 = vpack.c.b16 %v2017, %v2014
        %v3131 = vpack.c.b16 %v2021, %v2018
        %v3132 = vpack.c.b16 %v2022, %v2019
        %v3133 = vpack.c.b16 %v2023, %v2020
        %v3134 = vpack.c.b16 %v2027, %v2024
        %v3135 = vpack.c.b16 %v2028, %v2025
        %v3136 = vpack.c.b16 %v2029, %v2026
        %v3137 = vpack.c.b16 %v2033, %v2030
        %v3138 = vpack.c.b16 %v2034, %v2031
        %v3139 = vpack.c.b16 %v2035, %v2032
        %v3140 = vpack.c.b16 %v2039, %v2036
        %v3141 = vpack.c.b16 %v2040, %v2037
        %v3142 = vpack.c.b16 %v2041, %v2038
        %v3143 = vpack.c.b16 %v2045, %v2042
        %v3144 = vpack.c.b16 %v2046, %v2043
        %v3145 = vpack.c.b16 %v2047, %v2044
        %v3146 = vpack.c.b16 %v2051, %v2048
        %v3147 = vpack.c.b16 %v2052, %v2049
        %v3148 = vpack.c.b16 %v2053, %v2050
        %v3149 = vpack.c.b16 %v2057, %v2054
        %v3150 = vpack.c.b16 %v2058, %v2055
        %v3151 = vpack.c.b16 %v2059, %v2056
        %v3152 = vpack.c.b16 %v2063, %v2060
        %v3153 = vpack.c.b16 %v2064, %v2061
        %v3154 = vpack.c.b16 %v2065, %v2062
        %v3155 = vpack.c.b16 %v2069, %v2066
        %v3156 = vpack.c.b16 %v2070, %v2067
        %v3157 = vpack.c.b16 %v2071, %v2068
        %v3158 = vpack.c.b16 %v2075, %v2072
        %v3159 = vpack.c.b16 %v2076, %v2073
        %v3160 = vpack.c.b16 %v2077, %v2074
        %v3161 = vpack.c.b16 %v2081, %v2078
        %v3162 = vpack.c.b16 %v2082, %v2079
        %v3163 = vpack.c.b16 %v2083, %v2080
        %v3164 = vpack.c.b16 %v2087, %v2084
        %v3165 = vpack.c.b16 %v2088, %v2085
        %v3166 = vpack.c.b16 %v2089, %v2086
        %v3167 = vpack.c.b16 %v2093, %v2090
        %v3168 = vpack.c.b16 %v2094, %v2091
        %v3169 = vpack.c.b16 %v2095, %v2092
        %v3170 = vpack.c.b16 %v2099, %v2096
        %v3171 = vpack.c.b16 %v2100, %v2097
        %v3172 = vpack.c.b16 %v2101, %v2098
        %v3173 = vpack.c.b16 %v2105, %v2102
        %v3174 = vpack.c.b16 %v2106, %v2103
        %v3175 = vpack.c.b16 %v2107, %v2104
        %v3176 = vpack.c.b16 %v2111, %v2108
        %v3177 = vpack.c.b16 %v2112, %v2109
        %v3178 = vpack.c.b16 %v2113, %v2110
        %v3179 = vpack.c.b16 %v2117, %v2114
        %v3180 = vpack.c.b16 %v2118, %v2115
        %v3181 = vpack.c.b16 %v2119, %v2116
        %v3182 = vpack.c.b16 %v2123, %v2120
        %v3183 = vpack.c.b16 %v2124, %v2121
        %v3184 = vpack.c.b16 %v2125, %v2122
        %v3185 = vpack.c.b16 %v2129, %v2126
        %v3186 = vpack.c.b16 %v2130, %v2127
        %v3187 = vpack.c.b16 %v2131, %v2128
        %v3188 = vpack.c.b16 %v2135, %v2132
        %v3189 = vpack.c.b16 %v2136, %v2133
        %v3190 = vpack.c.b16 %v2137, %v2134
        %v3191 = vpack.c.b16 %v2141, %v2138
        %v3192 = vpack.c.b16 %v2142, %v2139
        %v3193 = vpack.c.b16 %v2143, %v2140
        %v3194 = vpack.c.b16 %v2147, %v2144
        %v3195 = vpack.c.b16 %v2148, %v2145
        %v3196 = vpack.c.b16 %v2149, %v2146
        %v3197 = vpack.c.b16 %v2153, %v2150
        %v3198 = vpack.c.b16 %v2154, %v2151
        %v3199 = vpack.c.b16 %v2155, %v2152
        %v3200 = vpack.c.b16 %v2159, %v2156
        %v3201 = vpack.c.b16 %v2160, %v2157
        %v3202 = vpack.c.b16 %v2161, %v2158
        %v3203 = vpack.c.b16 %v2165, %v2162
        %v3204 = vpack.c.b16 %v2166, %v2163
        %v3205 = vpack.c.b16 %v2167, %v2164
        %v3206 = vpack.c.b16 %v2171, %v2168
        %v3207 = vpack.c.b16 %v2172, %v2169
        %v3208 = vpack.c.b16 %v2173, %v2170
        %v3209 = vpack.c.b16 %v2177, %v2174
        %v3210 = vpack.c.b16 %v2178, %v2175
        %v3211 = vpack.c.b16 %v2179, %v2176
        %v3212 = vpack.c.b16 %v2183, %v2180
        %v3213 = vpack.c.b16 %v2184, %v2181
        %v3214 = vpack.c.b16 %v2185, %v2182
        %v3215 = vpack.c.b16 %v2189, %v2186
        %v3216 = vpack.c.b16 %v2190, %v2187
        %v3217 = vpack.c.b16 %v2191, %v2188
        %v3218 = vpack.c.b16 %v2195, %v2192
        %v3219 = vpack.c.b16 %v2196, %v2193
        %v3220 = vpack.c.b16 %v2197, %v2194
        %v3221 = vpack.c.b16 %v2201, %v2198
        %v3222 = vpack.c.b16 %v2202, %v2199
        %v3223 = vpack.c.b16 %v2203, %v2200
        %v3224 = vpack.c.b16 %v2207, %v2204
        %v3225 = vpack.c.b16 %v2208, %v2205
        %v3226 = vpack.c.b16 %v2209, %v2206
        %v3227 = vpack.c.b16 %v2213, %v2210
        %v3228 = vpack.c.b16 %v2214, %v2211
        %v3229 = vpack.c.b16 %v2215, %v2212
        %v3230 = vpack.c.b16 %v2219, %v2216
        %v3231 = vpack.c.b16 %v2220, %v2217
        %v3232 = vpack.c.b16 %v2221, %v2218
        %v3233 = vpack.c.b16 %v2225, %v2222
        %v3234 = vpack.c.b16 %v2226, %v2223
        %v3235 = vpack.c.b16 %v2227, %v2224
        %v3236 = vpack.c.b16 %v2231, %v2228
        %v3237 = vpack.c.b16 %v2232, %v2229
        %v3238 = vpack.c.b16 %v2233, %v2230
        %v3239 = vpack.c.b16 %v2237, %v2234
        %v3240 = vpack.c.b16 %v2238, %v2235
        %v3241 = vpack.c.b16 %v2239, %v2236
        %v3242 = vpack.c.b16 %v2243, %v2240
        %v3243 = vpack.c.b16 %v2244, %v2241
        %v3244 = vpack.c.b16 %v2245, %v2242
        %v3245 = vpack.c.b16 %v2249, %v2246
        %v3246 = vpack.c.b16 %v2250, %v2247
        %v3247 = vpack.c.b16 %v2251, %v2248
        %v3248 = vpack.c.b16 %v2255, %v2252
        %v3249 = vpack.c.b16 %v2256, %v2253
        %v3250 = vpack.c.b16 %v2257, %v2254
        %v3251 = vpack.c.b16 %v2261, %v2258
        %v3252 = vpack.c.b16 %v2262, %v2259
        %v3253 = vpack.c.b16 %v2263, %v2260
        %v3254 = vpack.c.b16 %v2267, %v2264
        %v3255 = vpack.c.b16 %v2268, %v2265
        %v3256 = vpack.c.b16 %v2269, %v2266
        %v3257 = vpack.c.b16 %v2273, %v2270
        %v3258 = vpack.c.b16 %v2274, %v2271
        %v3259 = vpack.c.b16 %v2275, %v2272
        %v3260 = vpack.c.b16 %v2279, %v2276
        %v3261 = vpack.c.b16 %v2280, %v2277
        %v3262 = vpack.c.b16 %v2281, %v2278
        %v3263 = vpack.c.b16 %v2285, %v2282
        %v3264 = vpack.c.b16 %v2286, %v2283
        %v3265 = vpack.c.b16 %v2287, %v2284
        %v3266 = vpack.c.b16 %v2291, %v2288
        %v3267 = vpack.c.b16 %v2292, %v2289
        %v3268 = vpack.c.b16 %v2293, %v2290
        %v3269 = vpack.c.b16 %v2297, %v2294
        %v3270 = vpack.c.b16 %v2298, %v2295
        %v3271 = vpack.c.b16 %v2299, %v2296
        %v3272 = vpack.c.b16 %v2303, %v2300
        %v3273 = vpack.c.b16 %v2304, %v2301
        %v3274 = vpack.c.b16 %v2305, %v2302
        %v3275 = vpack.c.b16 %v2309, %v2306
        %v3276 = vpack.c.b16 %v2310, %v2307
        %v3277 = vpack.c.b16 %v2311, %v2308
        %v3278 = vpack.c.b16 %v2315, %v2312
        %v3279 = vpack.c.b16 %v2316, %v2313
        %v3280 = vpack.c.b16 %v2317, %v2314
        %v3281 = vpack.c.b16 %v2321, %v2318
        %v3282 = vpack.c.b16 %v2322, %v2319
        %v3283 = vpack.c.b16 %v2323, %v2320
        %v3284 = vpack.c.b16 %v2327, %v2324
        %v3285 = vpack.c.b16 %v2328, %v2325
        %v3286 = vpack.c.b16 %v2329, %v2326
        %v3287 = vpack.c.b16 %v2333, %v2330
        %v3288 = vpack.c.b16 %v2334, %v2331
        %v3289 = vpack.c.b16 %v2335, %v2332
        %v3290 = vpack.c.b16 %v2339, %v2336
        %v3291 = vpack.c.b16 %v2340, %v2337
        %v3292 = vpack.c.b16 %v2341, %v2338
        %v3293 = vpack.c.b16 %v2345, %v2342
        %v3294 = vpack.c.b16 %v2346, %v2343
        %v3295 = vpack.c.b16 %v2347, %v2344
        %v3296 = vpack.c.b16 %v2351, %v2348
        %v3297 = vpack.c.b16 %v2352, %v2349
        %v3298 = vpack.c.b16 %v2353, %v2350
        %v3299 = vpack.c.b16 %v2357, %v2354
        %v3300 = vpack.c.b16 %v2358, %v2355
        %v3301 = vpack.c.b16 %v2359, %v2356
        %v3302 = vpack.c.b16 %v2363, %v2360
        %v3303 = vpack.c.b16 %v2364, %v2361
        %v3304 = vpack.c.b16 %v2365, %v2362
        %v3305 = vpack.c.b16 %v2369, %v2366
        %v3306 = vpack.c.b16 %v2370, %v2367
        %v3307 = vpack.c.b16 %v2371, %v2368
        %v3308 = vpack.c.b16 %v2375, %v2372
        %v3309 = vpack.c.b16 %v2376, %v2373
        %v3310 = vpack.c.b16 %v2377, %v2374
        %v3311 = vpack.c.b16 %v2381, %v2378
        %v3312 = vpack.c.b16 %v2382, %v2379
        %v3313 = vpack.c.b16 %v2383, %v2380
        %v3314 = vpack.c.b16 %v2387, %v2384
        %v3315 = vpack.c.b16 %v2388, %v2385
        %v3316 = vpack.c.b16 %v2389, %v2386
        %v3317 = vpack.c.b16 %v2393, %v2390
        %v3318 = vpack.c.b16 %v2394, %v2391
        %v3319 = vpack.c.b16 %v2395, %v2392
        %v3320 = vpack.c.b16 %v2399, %v2396
        %v3321 = vpack.c.b16 %v2400, %v2397
        %v3322 = vpack.c.b16 %v2401, %v2398
        %v3323 = vpack.c.b16 %v2405, %v2402
        %v3324 = vpack.c.b16 %v2406, %v2403
        %v3325 = vpack.c.b16 %v2407, %v2404
        %v3326 = vpack.c.b16 %v2411, %v2408
        %v3327 = vpack.c.b16 %v2412, %v2409
        %v3328 = vpack.c.b16 %v2413, %v2410
        %v3329 = vpack.c.b16 %v2417, %v2414
        %v3330 = vpack.c.b16 %v2418, %v2415
        %v3331 = vpack.c.b16 %v2419, %v2416
        %v3332 = vpack.c.b16 %v2423, %v2420
        %v3333 = vpack.c.b16 %v2424, %v2421
        %v3334 = vpack.c.b16 %v2425, %v2422
        %v3335 = vpack.c.b16 %v2429, %v2426
        %v3336 = vpack.c.b16 %v2430, %v2427
        %v3337 = vpack.c.b16 %v2431, %v2428
        %v3338 = vpack.c.b16 %v2435, %v2432
        %v3339 = vpack.c.b16 %v2436, %v2433
        %v3340 = vpack.c.b16 %v2437, %v2434
        %v3341 = vpack.c.b16 %v2441, %v2438
        %v3342 = vpack.c.b16 %v2442, %v2439
        %v3343 = vpack.c.b16 %v2443, %v2440
        %v3344 = vpack.c.b16 %v2447, %v2444
        %v3345 = vpack.c.b16 %v2448, %v2445
        %v3346 = vpack.c.b16 %v2449, %v2446
        %v3347 = vpack.c.b16 %v2453, %v2450
        %v3348 = vpack.c.b16 %v2454, %v2451
        %v3349 = vpack.c.b16 %v2455, %v2452
        %v3350 = vpack.c.b16 %v2459, %v2456
        %v3351 = vpack.c.b16 %v2460, %v2457
        %v3352 = vpack.c.b16 %v2461, %v2458
        %v3353 = vpack.c.b16 %v2465, %v2462
        %v3354 = vpack.c.b16 %v2466, %v2463
        %v3355 = vpack.c.b16 %v2467, %v2464
        %v3356 = vpack.c.b16 %v2471, %v2468
        %v3357 = vpack.c.b16 %v2472, %v2469
        %v3358 = vpack.c.b16 %v2473, %v2470
        %v3359 = vpack.c.b16 %v2477, %v2474
        %v3360 = vpack.c.b16 %v2478, %v2475
        %v3361 = vpack.c.b16 %v2479, %v2476
        %v3362 = vpack.c.b16 %v2483, %v2480
        %v3363 = vpack.c.b16 %v2484, %v2481
        %v3364 = vpack.c.b16 %v2485, %v2482
        %v3365 = vpack.c.b16 %v2489, %v2486
        %v3366 = vpack.c.b16 %v2490, %v2487
        %v3367 = vpack.c.b16 %v2491, %v2488
        %v3368 = vpack.c.b16 %v2495, %v2492
        %v3369 = vpack.c.b16 %v2496, %v2493
        %v3370 = vpack.c.b16 %v2497, %v2494
        %v3371 = vpack.c.b16 %v2501, %v2498
        %v3372 = vpack.c.b16 %v2502, %v2499
        %v3373 = vpack.c.b16 %v2503, %v2500
        %v3374 = vpack.c.b16 %v2507, %v2504
        %v3375 = vpack.c.b16 %v2508, %v2505
        %v3376 = vpack.c.b16 %v2509, %v2506
        %v3377 = vpack.c.b16 %v2513, %v2510
        %v3378 = vpack.c.b16 %v2514, %v2511
        %v3379 = vpack.c.b16 %v2515, %v2512
        %v3380 = vpack.c.b16 %v2519, %v2516
        %v3381 = vpack.c.b16 %v2520, %v2517
        %v3382 = vpack.c.b16 %v2521, %v2518
        %v3383 = vpack.c.b16 %v2525, %v2522
        %v3384 = vpack.c.b16 %v2526, %v2523
        %v3385 = vpack.c.b16 %v2527, %v2524
        %v3386 = vpack.c.b16 %v2531, %v2528
        %v3387 = vpack.c.b16 %v2532, %v2529
        %v3388 = vpack.c.b16 %v2533, %v2530
        %v3389 = vpack.c.b16 %v2537, %v2534
        %v3390 = vpack.c.b16 %v2538, %v2535
        %v3391 = vpack.c.b16 %v2539, %v2536
        %v3392 = vpack.c.b16 %v2543, %v2540
        %v3393 = vpack.c.b16 %v2544, %v2541
        %v3394 = vpack.c.b16 %v2545, %v2542
        %v3395 = vpack.c.b16 %v2549, %v2546
        %v3396 = vpack.c.b16 %v2550, %v2547
        %v3397 = vpack.c.b16 %v2551, %v2548
        %v3398 = vpack.c.b16 %v2555, %v2552
        %v3399 = vpack.c.b16 %v2556, %v2553
        %v3400 = vpack.c.b16 %v2557, %v2554
        %v3401 = vpack.c.b16 %v2561, %v2558
        %v3402 = vpack.c.b16 %v2562, %v2559
        %v3403 = vpack.c.b16 %v2563, %v2560
        %v3404 = vpack.c.b16 %v2567, %v2564
        %v3405 = vpack.c.b16 %v2568, %v2565
        %v3406 = vpack.c.b16 %v2569, %v2566
        %v3407 = vpack.c.b16 %v2573, %v2570
        %v3408 = vpack.c.b16 %v2574, %v2571
        %v3409 = vpack.c.b16 %v2575, %v2572
        %v3410 = vpack.c.b16 %v2579, %v2576
        %v3411 = vpack.c.b16 %v2580, %v2577
        %v3412 = vpack.c.b16 %v2581, %v2578
        %v3413 = vpack.c.b16 %v2585, %v2582
        %v3414 = vpack.c.b16 %v2586, %v2583
        %v3415 = vpack.c.b16 %v2587, %v2584
        %v3416 = vpack.c.b16 %v2591, %v2588
        %v3417 = vpack.c.b16 %v2592, %v2589
        %v3418 = vpack.c.b16 %v2593, %v2590
        %v3419 = vpack.c.b16 %v2597, %v2594
        %v3420 = vpack.c.b16 %v2598, %v2595
        %v3421 = vpack.c.b16 %v2599, %v2596
        %v3422 = vpack.c.b16 %v2603, %v2600
        %v3423 = vpack.c.b16 %v2604, %v2601
        %v3424 = vpack.c.b16 %v2605, %v2602
        %v3425 = vpack.c.b16 %v2609, %v2606
        %v3426 = vpack.c.b16 %v2610, %v2607
        %v3427 = vpack.c.b16 %v2611, %v2608
        %v3428 = vpack.c.b16 %v2615, %v2612
        %v3429 = vpack.c.b16 %v2616, %v2613
        %v3430 = vpack.c.b16 %v2617, %v2614
        %v3431 = vpack.c.b16 %v2621, %v2618
        %v3432 = vpack.c.b16 %v2622, %v2619
        %v3433 = vpack.c.b16 %v2623, %v2620
        %v3434 = vpack.c.b16 %v2627, %v2624
        %v3435 = vpack.c.b16 %v2628, %v2625
        %v3436 = vpack.c.b16 %v2629, %v2626
        %v3437 = vpack.c.b16 %v2633, %v2630
        %v3438 = vpack.c.b16 %v2634, %v2631
        %v3439 = vpack.c.b16 %v2635, %v2632
        %v3440 = vpack.c.b16 %v2639, %v2636
        %v3441 = vpack.c.b16 %v2640, %v2637
        %v3442 = vpack.c.b16 %v2641, %v2638
        %v3443 = vpack.c.b16 %v2645, %v2642
        %v3444 = vpack.c.b16 %v2646, %v2643
        %v3445 = vpack.c.b16 %v2647, %v2644
        %v3446 = vpack.c.b16 %v2651, %v2648
        %v3447 = vpack.c.b16 %v2652, %v2649
        %v3448 = vpack.c.b16 %v2653, %v2650
        %v3449 = vpack.c.b16 %v2657, %v2654
        %v3450 = vpack.c.b16 %v2658, %v2655
        %v3451 = vpack.c.b16 %v2659, %v2656
        %v3452 = vpack.c.b16 %v2663, %v2660
        %v3453 = vpack.c.b16 %v2664, %v2661
        %v3454 = vpack.c.b16 %v2665, %v2662
        %v3455 = vpack.c.b16 %v2669, %v2666
        %v3456 = vpack.c.b16 %v2670, %v2667
        %v3457 = vpack.c.b16 %v2671, %v2668
        %v3458 = vpack.c.b16 %v2675, %v2672
        %v3459 = vpack.c.b16 %v2676, %v2673
        %v3460 = vpack.c.b16 %v2677, %v2674
        %v3461 = vpack.c.b16 %v2681, %v2678
        %v3462 = vpack.c.b16 %v2682, %v2679
        %v3463 = vpack.c.b16 %v2683, %v2680
        %v3464 = vpack.c.b16 %v2687, %v2684
        %v3465 = vpack.c.b16 %v2688, %v2685
        %v3466 = vpack.c.b16 %v2689, %v2686
        %v3467 = vpack.c.b16 %v2693, %v2690
        %v3468 = vpack.c.b16 %v2694, %v2691
        %v3469 = vpack.c.b16 %v2695, %v2692
        %v3470 = vpack.c.b16 %v2699, %v2696
        %v3471 = vpack.c.b16 %v2700, %v2697
        %v3472 = vpack.c.b16 %v2701, %v2698
        %v3473 = vpack.c.b16 %v2705, %v2702
        %v3474 = vpack.c.b16 %v2706, %v2703
        %v3475 = vpack.c.b16 %v2707, %v2704
        %v3476 = vpack.c.b16 %v2711, %v2708
        %v3477 = vpack.c.b16 %v2712, %v2709
        %v3478 = vpack.c.b16 %v2713, %v2710
        %v3479 = vpack.c.b16 %v2717, %v2714
        %v3480 = vpack.c.b16 %v2718, %v2715
        %v3481 = vpack.c.b16 %v2719, %v2716
        %v3482 = vpack.c.b16 %v2723, %v2720
        %v3483 = vpack.c.b16 %v2724, %v2721
        %v3484 = vpack.c.b16 %v2725, %v2722
        %v3485 = vpack.c.b16 %v2729, %v2726
        %v3486 = vpack.c.b16 %v2730, %v2727
        %v3487 = vpack.c.b16 %v2731, %v2728
        %v3488 = vpack.c.b16 %v2735, %v2732
        %v3489 = vpack.c.b16 %v2736, %v2733
        %v3490 = vpack.c.b16 %v2737, %v2734
        %v3491 = vpack.c.b16 %v2741, %v2738
        %v3492 = vpack.c.b16 %v2742, %v2739
        %v3493 = vpack.c.b16 %v2743, %v2740
        %v3494 = vpack.c.b16 %v2747, %v2744
        %v3495 = vpack.c.b16 %v2748, %v2745
        %v3496 = vpack.c.b16 %v2749, %v2746
        %v3497 = vpack.c.b16 %v2753, %v2750
        %v3498 = vpack.c.b16 %v2754, %v2751
        %v3499 = vpack.c.b16 %v2755, %v2752
        %v3500 = vpack.c.b16 %v2759, %v2756
        %v3501 = vpack.c.b16 %v2760, %v2757
        %v3502 = vpack.c.b16 %v2761, %v2758
        %v3503 = vpack.c.b16 %v2765, %v2762
        %v3504 = vpack.c.b16 %v2766, %v2763
        %v3505 = vpack.c.b16 %v2767, %v2764
        %v3506 = vpack.c.b16 %v2771, %v2768
        %v3507 = vpack.c.b16 %v2772, %v2769
        %v3508 = vpack.c.b16 %v2773, %v2770
        %v3509 = vpack.c.b16 %v2777, %v2774
        %v3510 = vpack.c.b16 %v2778, %v2775
        %v3511 = vpack.c.b16 %v2779, %v2776
        %v3512 = vpack.c.b16 %v2783, %v2780
        %v3513 = vpack.c.b16 %v2784, %v2781
        %v3514 = vpack.c.b16 %v2785, %v2782
        %v3515 = vpack.c.b16 %v2789, %v2786
        %v3516 = vpack.c.b16 %v2790, %v2787
        %v3517 = vpack.c.b16 %v2791, %v2788
        %v3518 = vpack.c.b16 %v2795, %v2792
        %v3519 = vpack.c.b16 %v2796, %v2793
        %v3520 = vpack.c.b16 %v2797, %v2794
        %v3521 = vpack.c.b16 %v2801, %v2798
        %v3522 = vpack.c.b16 %v2802, %v2799
        %v3523 = vpack.c.b16 %v2803, %v2800
        %v3524 = vpack.c.b16 %v2807, %v2804
        %v3525 = vpack.c.b16 %v2808, %v2805
        %v3526 = vpack.c.b16 %v2809, %v2806
        %v3527 = vpack.c.b16 %v2813, %v2810
        %v3528 = vpack.c.b16 %v2814, %v2811
        %v3529 = vpack.c.b16 %v2815, %v2812
        %v3530 = vpack.c.b16 %v2819, %v2816
        %v3531 = vpack.c.b16 %v2820, %v2817
        %v3532 = vpack.c.b16 %v2821, %v2818
        %v3533 = vpack.c.b16 %v2825, %v2822
        %v3534 = vpack.c.b16 %v2826, %v2823
        %v3535 = vpack.c.b16 %v2827, %v2824
        %v3536 = vpack.c.b16 %v2831, %v2828
        %v3537 = vpack.c.b16 %v2832, %v2829
        %v3538 = vpack.c.b16 %v2833, %v2830
        %v3539 = vpack.c.b16 %v2837, %v2834
        %v3540 = vpack.c.b16 %v2838, %v2835
        %v3541 = vpack.c.b16 %v2839, %v2836
        %v3542 = vpack.c.b16 %v2843, %v2840
        %v3543 = vpack.c.b16 %v2844, %v2841
        %v3544 = vpack.c.b16 %v2845, %v2842
        %v3545 = vpack.c.b16 %v2849, %v2846
        %v3546 = vpack.c.b16 %v2850, %v2847
        %v3547 = vpack.c.b16 %v2851, %v2848
        %v3548 = vpack.c.b16 %v2855, %v2852
        %v3549 = vpack.c.b16 %v2856, %v2853
        %v3550 = vpack.c.b16 %v2857, %v2854
        %v3551 = vpack.c.b16 %v2861, %v2858
        %v3552 = vpack.c.b16 %v2862, %v2859
        %v3553 = vpack.c.b16 %v2863, %v2860
        %v3554 = vpack.c.b16 %v2867, %v2864
        %v3555 = vpack.c.b16 %v2868, %v2865
        %v3556 = vpack.c.b16 %v2869, %v2866
        %v3557 = vpack.c.b16 %v2873, %v2870
        %v3558 = vpack.c.b16 %v2874, %v2871
        %v3559 = vpack.c.b16 %v2875, %v2872
        %v3560 = vpack.c.b16 %v2879, %v2876
        %v3561 = vpack.c.b16 %v2880, %v2877
        %v3562 = vpack.c.b16 %v2881, %v2878
        %v3563 = vpack.c.b16 %v2885, %v2882
        %v3564 = vpack.c.b16 %v2886, %v2883
        %v3565 = vpack.c.b16 %v2887, %v2884
        %v3566 = vpack.c.b16 %v2891, %v2888
        %v3567 = vpack.c.b16 %v2892, %v2889
        %v3568 = vpack.c.b16 %v2893, %v2890
        %v3569 = vpack.c.b16 %v2897, %v2894
        %v3570 = vpack.c.b16 %v2898, %v2895
        %v3571 = vpack.c.b16 %v2899, %v2896
        %v3572 = vpack.c.b16 %v2903, %v2900
        %v3573 = vpack.c.b16 %v2904, %v2901
        %v3574 = vpack.c.b16 %v2905, %v2902
        %v3575 = vpack.c.b16 %v2909, %v2906
        %v3576 = vpack.c.b16 %v2910, %v2907
        %v3577 = vpack.c.b16 %v2911, %v2908
        %v3578 = vpack.c.b16 %v2915, %v2912
        %v3579 = vpack.c.b16 %v2916, %v2913
        %v3580 = vpack.c.b16 %v2917, %v2914
        %v3581 = vpack.c.b16 %v2921, %v2918
        %v3582 = vpack.c.b16 %v2922, %v2919
        %v3583 = vpack.c.b16 %v2923, %v2920
        %v3584 = vpack.c.b16 %v2927, %v2924
        %v3585 = vpack.c.b16 %v2928, %v2925
        %v3586 = vpack.c.b16 %v2929, %v2926
        %v3587 = vpack.c.b16 %v2933, %v2930
        %v3588 = vpack.c.b16 %v2934, %v2931
        %v3589 = vpack.c.b16 %v2935, %v2932
        %v3590 = vpack.c.b16 %v2939, %v2936
        %v3591 = vpack.c.b16 %v2940, %v2937
        %v3592 = vpack.c.b16 %v2941, %v2938
        %v3593 = vpack.c.b16 %v2945, %v2942
        %v3594 = vpack.c.b16 %v2946, %v2943
        %v3595 = vpack.c.b16 %v2947, %v2944
        %v3596 = vpack.c.b16 %v2951, %v2948
        %v3597 = vpack.c.b16 %v2952, %v2949
        %v3598 = vpack.c.b16 %v2953, %v2950
        %v3599 = vpack.c.b16 %v2957, %v2954
        %v3600 = vpack.c.b16 %v2958, %v2955
        %v3601 = vpack.c.b16 %v2959, %v2956
        %v3602 = vpack.c.b16 %v2963, %v2960
        %v3603 = vpack.c.b16 %v2964, %v2961
        %v3604 = vpack.c.b16 %v2965, %v2962
        %v3605 = vpack.c.b16 %v2969, %v2966
        %v3606 = vpack.c.b16 %v2970, %v2967
        %v3607 = vpack.c.b16 %v2971, %v2968
        %v3608 = vpack.c.b16 %v2975, %v2972
        %v3609 = vpack.c.b16 %v2976, %v2973
        %v3610 = vpack.c.b16 %v2977, %v2974
        %v3611 = vpack.c.b16 %v2981, %v2978
        %v3612 = vpack.c.b16 %v2982, %v2979
        %v3613 = vpack.c.b16 %v2983, %v2980
        %v3614 = vpack.c.b16 %v2987, %v2984
        %v3615 = vpack.c.b16 %v2988, %v2985
        %v3616 = vpack.c.b16 %v2989, %v2986
        %v3617 = vpack.c.b16 %v2993, %v2990
        %v3618 = vpack.c.b16 %v2994, %v2991
        %v3619 = vpack.c.b16 %v2995, %v2992
        %v3620 = vpack.c.b16 %v2999, %v2996
        %v3621 = vpack.c.b16 %v3000, %v2997
        %v3622 = vpack.c.b16 %v3001, %v2998
        %v3623 = vpack.c.b16 %v3005, %v3002
        %v3624 = vpack.c.b16 %v3006, %v3003
        %v3625 = vpack.c.b16 %v3007, %v3004
        %v3626 = vpack.c.b16 %v3011, %v3008
        %v3627 = vpack.c.b16 %v3012, %v3009
        %v3628 = vpack.c.b16 %v3013, %v3010
        %v3629 = vpack.c.b16 %v3017, %v3014
        %v3630 = vpack.c.b16 %v3018, %v3015
        %v3631 = vpack.c.b16 %v3019, %v3016
        %v3632 = vpack.c.b16 %v3023, %v3020
        %v3633 = vpack.c.b16 %v3024, %v3021
        %v3634 = vpack.c.b16 %v3025, %v3022
        %v3635 = vpack.c.b16 %v3029, %v3026
        %v3636 = vpack.c.b16 %v3030, %v3027
        %v3637 = vpack.c.b16 %v3031, %v3028
        %v3638 = vpack.c.b16 %v3035, %v3032
        %v3639 = vpack.c.b16 %v3036, %v3033
        %v3640 = vpack.c.b16 %v3037, %v3034
        %v3641 = vpack.c.b16 %v3041, %v3038
        %v3642 = vpack.c.b16 %v3042, %v3039
        %v3643 = vpack.c.b16 %v3043, %v3040
        %v3644 = vpack.c.b16 %v3047, %v3044
        %v3645 = vpack.c.b16 %v3048, %v3045
        %v3646 = vpack.c.b16 %v3049, %v3046
        %v3647 = vpack.c.b16 %v3053, %v3050
        %v3648 = vpack.c.b16 %v3054, %v3051
        %v3649 = vpack.c.b16 %v3055, %v3052
        %v3650 = vpack.c.b16 %v3059, %v3056
        %v3651 = vpack.c.b16 %v3060, %v3057
        %v3652 = vpack.c.b16 %v3061, %v3058
        %v3653 = vpack.c.b16 %v3065, %v3062
        %v3654 = vpack.c.b16 %v3066, %v3063
        %v3655 = vpack.c.b16 %v3067, %v3064
        %v3656 = vpack.c.b16 %v3071, %v3068
        %v3657 = vpack.c.b16 %v3072, %v3069
        %v3658 = vpack.c.b16 %v3073, %v3070
        %v3659 = vpack.c.b16 %v3077, %v3074
        %v3660 = vpack.c.b16 %v3078, %v3075
        %v3661 = vpack.c.b16 %v3079, %v3076
        %v3662 = vpack.c.b16 %v3083, %v3080
        %v3663 = vpack.c.b16 %v3084, %v3081
        %v3664 = vpack.c.b16 %v3085, %v3082
        %v3665 = vpack.c.b16 %v3089, %v3086
        %v3666 = vpack.c.b16 %v3090, %v3087
        %v3667 = vpack.c.b16 %v3091, %v3088
        %4244 = vmatprep.subr.bf16.mxu0 %v3093
        %4245 = vmatpush1.bf16.msra.mxu0 %v3092
        %4246 = vmatprep.subr.bf16.mxu0 %v3096
        %4247 = vmatpush1.bf16.msra.mxu0 %v3095
        %4248 = vmatprep.subr.bf16.mxu0 %v3099
        %4249 = vmatpush1.bf16.msra.mxu0 %v3098
        %4250 = vmatprep.subr.bf16.mxu0 %v3102
        %4251 = vmatpush1.bf16.msra.mxu0 %v3101
        %4252 = vmatprep.subr.bf16.mxu0 %v3105
        %4253 = vmatpush1.bf16.msra.mxu0 %v3104
        %4254 = vmatprep.subr.bf16.mxu0 %v3108
        %4255 = vmatpush1.bf16.msra.mxu0 %v3107
        %4256 = vmatprep.subr.bf16.mxu0 %v3111
        %4257 = vmatpush1.bf16.msra.mxu0 %v3110
        %4258 = vmatprep.subr.bf16.mxu0 %v3114
        %4259 = vmatpush1.bf16.msra.mxu0 %v3113
        %4260 = vmatprep.subr.bf16.mxu0 %v3117
        %4261 = vmatpush1.bf16.msra.mxu0 %v3116
        %4262 = vmatprep.subr.bf16.mxu0 %v3120
        %4263 = vmatpush1.bf16.msra.mxu0 %v3119
        %4264 = vmatprep.subr.bf16.mxu0 %v3123
        %4265 = vmatpush1.bf16.msra.mxu0 %v3122
        %4266 = vmatprep.subr.bf16.mxu0 %v3126
        %4267 = vmatpush1.bf16.msra.mxu0 %v3125
        %4268 = vmatprep.subr.bf16.mxu0 %v3129
        %4269 = vmatpush1.bf16.msra.mxu0 %v3128
        %4270 = vmatprep.subr.bf16.mxu0 %v3132
        %4271 = vmatpush1.bf16.msra.mxu0 %v3131
        %4272 = vmatprep.subr.bf16.mxu0 %v3135
        %4273 = vmatpush1.bf16.msra.mxu0 %v3134
        %4274 = vmatprep.subr.bf16.mxu0 %v3138
        %4275 = vmatpush1.bf16.msra.mxu0 %v3137
        %4276 = vmatprep.mubr.bf16.mxu0 %v1125
        %4277 = vmatmul.mubr.bf16.gmra.mrb[0].mxu0 %v1124
        %v4278 = vpop.f32.mrb[0].mxu0
        %v4279 = vadd.f32 %v1040, %v4278
        %v4280 = vpop.f32.mrb[0].mxu0
        %v4281 = vadd.f32 %v1044, %v4280
        %v4282 = vpop.f32.mrb[0].mxu0
        %v4283 = vadd.f32 %v1040, %v4282
        %v4284 = vpop.f32.mrb[0].mxu0
        %v4285 = vadd.f32 %v1044, %v4284
        %4286 = vdwg.mxu0
        %4287 = vmatprep.subr.bf16.mxu0 %v3141
        %4288 = vmatpush1.bf16.msra.mxu0 %v3140
        %4289 = vmatprep.subr.bf16.mxu0 %v3144
        %4290 = vmatpush1.bf16.msra.mxu0 %v3143
        %4291 = vmatprep.subr.bf16.mxu0 %v3147
        %4292 = vmatpush1.bf16.msra.mxu0 %v3146
        %4293 = vmatprep.subr.bf16.mxu0 %v3150
        %4294 = vmatpush1.bf16.msra.mxu0 %v3149
        %4295 = vmatprep.subr.bf16.mxu0 %v3153
        %4296 = vmatpush1.bf16.msra.mxu0 %v3152
        %4297 = vmatprep.subr.bf16.mxu0 %v3156
        %4298 = vmatpush1.bf16.msra.mxu0 %v3155
        %4299 = vmatprep.subr.bf16.mxu0 %v3159
        %4300 = vmatpush1.bf16.msra.mxu0 %v3158
        %4301 = vmatprep.subr.bf16.mxu0 %v3162
        %4302 = vmatpush1.bf16.msra.mxu0 %v3161
        %4303 = vmatprep.subr.bf16.mxu0 %v3165
        %4304 = vmatpush1.bf16.msra.mxu0 %v3164
        %4305 = vmatprep.subr.bf16.mxu0 %v3168
        %4306 = vmatpush1.bf16.msra.mxu0 %v3167
        %4307 = vmatprep.subr.bf16.mxu0 %v3171
        %4308 = vmatpush1.bf16.msra.mxu0 %v3170
        %4309 = vmatprep.subr.bf16.mxu0 %v3174
        %4310 = vmatpush1.bf16.msra.mxu0 %v3173
        %4311 = vmatprep.subr.bf16.mxu0 %v3177
        %4312 = vmatpush1.bf16.msra.mxu0 %v3176
        %4313 = vmatprep.subr.bf16.mxu0 %v3180
        %4314 = vmatpush1.bf16.msra.mxu0 %v3179
        %4315 = vmatprep.subr.bf16.mxu0 %v3183
        %4316 = vmatpush1.bf16.msra.mxu0 %v3182
        %4317 = vmatprep.subr.bf16.mxu0 %v3186
        %4318 = vmatpush1.bf16.msra.mxu0 %v3185
        %4319 = vmatprep.mubr.bf16.mxu0 %v1127
        %4320 = vmatmul.mubr.bf16.gmra.mrb[0].mxu0 %v1126
        %v4321 = vpop.f32.mrb[0].mxu0
        %v4322 = vadd.f32 %v4279, %v4321
        %v4323 = vpop.f32.mrb[0].mxu0
        %v4324 = vadd.f32 %v4281, %v4323
        %v4325 = vpop.f32.mrb[0].mxu0
        %v4326 = vadd.f32 %v4283, %v4325
        %v4327 = vpop.f32.mrb[0].mxu0
        %v4328 = vadd.f32 %v4285, %v4327
        %4329 = vdwg.mxu0
        %4330 = vmatprep.subr.bf16.mxu0 %v3189
        %4331 = vmatpush1.bf16.msra.mxu0 %v3188
        %4332 = vmatprep.subr.bf16.mxu0 %v3192
        %4333 = vmatpush1.bf16.msra.mxu0 %v3191
        %4334 = vmatprep.subr.bf16.mxu0 %v3195
        %4335 = vmatpush1.bf16.msra.mxu0 %v3194
        %4336 = vmatprep.subr.bf16.mxu0 %v3198
        %4337 = vmatpush1.bf16.msra.mxu0 %v3197
        %4338 = vmatprep.subr.bf16.mxu0 %v3201
        %4339 = vmatpush1.bf16.msra.mxu0 %v3200
        %4340 = vmatprep.subr.bf16.mxu0 %v3204
        %4341 = vmatpush1.bf16.msra.mxu0 %v3203
        %4342 = vmatprep.subr.bf16.mxu0 %v3207
        %4343 = vmatpush1.bf16.msra.mxu0 %v3206
        %4344 = vmatprep.subr.bf16.mxu0 %v3210
        %4345 = vmatpush1.bf16.msra.mxu0 %v3209
        %4346 = vmatprep.subr.bf16.mxu0 %v3213
        %4347 = vmatpush1.bf16.msra.mxu0 %v3212
        %4348 = vmatprep.subr.bf16.mxu0 %v3216
        %4349 = vmatpush1.bf16.msra.mxu0 %v3215
        %4350 = vmatprep.subr.bf16.mxu0 %v3219
        %4351 = vmatpush1.bf16.msra.mxu0 %v3218
        %4352 = vmatprep.subr.bf16.mxu0 %v3222
        %4353 = vmatpush1.bf16.msra.mxu0 %v3221
        %4354 = vmatprep.subr.bf16.mxu0 %v3225
        %4355 = vmatpush1.bf16.msra.mxu0 %v3224
        %4356 = vmatprep.subr.bf16.mxu0 %v3228
        %4357 = vmatpush1.bf16.msra.mxu0 %v3227
        %4358 = vmatprep.subr.bf16.mxu0 %v3231
        %4359 = vmatpush1.bf16.msra.mxu0 %v3230
        %4360 = vmatprep.subr.bf16.mxu0 %v3234
        %4361 = vmatpush1.bf16.msra.mxu0 %v3233
        %4362 = vmatprep.mubr.bf16.mxu0 %v1129
        %4363 = vmatmul.mubr.bf16.gmra.mrb[0].mxu0 %v1128
        %v4364 = vpop.f32.mrb[0].mxu0
        %v4365 = vadd.f32 %v4322, %v4364
        %v4366 = vpop.f32.mrb[0].mxu0
        %v4367 = vadd.f32 %v4324, %v4366
        %v4368 = vpop.f32.mrb[0].mxu0
        %v4369 = vadd.f32 %v4326, %v4368
        %v4370 = vpop.f32.mrb[0].mxu0
        %v4371 = vadd.f32 %v4328, %v4370
        %4372 = vdwg.mxu0
        %4373 = vmatprep.subr.bf16.mxu0 %v3237
        %4374 = vmatpush1.bf16.msra.mxu0 %v3236
        %4375 = vmatprep.subr.bf16.mxu0 %v3240
        %4376 = vmatpush1.bf16.msra.mxu0 %v3239
        %4377 = vmatprep.subr.bf16.mxu0 %v3243
        %4378 = vmatpush1.bf16.msra.mxu0 %v3242
        %4379 = vmatprep.subr.bf16.mxu0 %v3246
        %4380 = vmatpush1.bf16.msra.mxu0 %v3245
        %4381 = vmatprep.subr.bf16.mxu0 %v3249
        %4382 = vmatpush1.bf16.msra.mxu0 %v3248
        %4383 = vmatprep.subr.bf16.mxu0 %v3252
        %4384 = vmatpush1.bf16.msra.mxu0 %v3251
        %4385 = vmatprep.subr.bf16.mxu0 %v3255
        %4386 = vmatpush1.bf16.msra.mxu0 %v3254
        %4387 = vmatprep.subr.bf16.mxu0 %v3258
        %4388 = vmatpush1.bf16.msra.mxu0 %v3257
        %4389 = vmatprep.subr.bf16.mxu0 %v3261
        %4390 = vmatpush1.bf16.msra.mxu0 %v3260
        %4391 = vmatprep.subr.bf16.mxu0 %v3264
        %4392 = vmatpush1.bf16.msra.mxu0 %v3263
        %4393 = vmatprep.subr.bf16.mxu0 %v3267
        %4394 = vmatpush1.bf16.msra.mxu0 %v3266
        %4395 = vmatprep.subr.bf16.mxu0 %v3270
        %4396 = vmatpush1.bf16.msra.mxu0 %v3269
        %4397 = vmatprep.subr.bf16.mxu0 %v3273
        %4398 = vmatpush1.bf16.msra.mxu0 %v3272
        %4399 = vmatprep.subr.bf16.mxu0 %v3276
        %4400 = vmatpush1.bf16.msra.mxu0 %v3275
        %4401 = vmatprep.subr.bf16.mxu0 %v3279
        %4402 = vmatpush1.bf16.msra.mxu0 %v3278
        %4403 = vmatprep.subr.bf16.mxu0 %v3282
        %4404 = vmatpush1.bf16.msra.mxu0 %v3281
        %4405 = vmatprep.mubr.bf16.mxu0 %v1131
        %4406 = vmatmul.mubr.bf16.gmra.mrb[0].mxu0 %v1130
        %v4407 = vpop.f32.mrb[0].mxu0
        %v4408 = vadd.f32 %v4365, %v4407
        %v4409 = vpop.f32.mrb[0].mxu0
        %v4410 = vadd.f32 %v4367, %v4409
        %v4411 = vpop.f32.mrb[0].mxu0
        %v4412 = vadd.f32 %v4369, %v4411
        %v4413 = vpop.f32.mrb[0].mxu0
        %v4414 = vadd.f32 %v4371, %v4413
        %4415 = vdwg.mxu0
        %4416 = vmatprep.subr.bf16.mxu0 %v3285
        %4417 = vmatpush1.bf16.msra.mxu0 %v3284
        %4418 = vmatprep.subr.bf16.mxu0 %v3288
        %4419 = vmatpush1.bf16.msra.mxu0 %v3287
        %4420 = vmatprep.subr.bf16.mxu0 %v3291
        %4421 = vmatpush1.bf16.msra.mxu0 %v3290
        %4422 = vmatprep.subr.bf16.mxu0 %v3294
        %4423 = vmatpush1.bf16.msra.mxu0 %v3293
        %4424 = vmatprep.subr.bf16.mxu0 %v3297
        %4425 = vmatpush1.bf16.msra.mxu0 %v3296
        %4426 = vmatprep.subr.bf16.mxu0 %v3300
        %4427 = vmatpush1.bf16.msra.mxu0 %v3299
        %4428 = vmatprep.subr.bf16.mxu0 %v3303
        %4429 = vmatpush1.bf16.msra.mxu0 %v3302
        %4430 = vmatprep.subr.bf16.mxu0 %v3306
        %4431 = vmatpush1.bf16.msra.mxu0 %v3305
        %4432 = vmatprep.subr.bf16.mxu0 %v3309
        %4433 = vmatpush1.bf16.msra.mxu0 %v3308
        %4434 = vmatprep.subr.bf16.mxu0 %v3312
        %4435 = vmatpush1.bf16.msra.mxu0 %v3311
        %4436 = vmatprep.subr.bf16.mxu0 %v3315
        %4437 = vmatpush1.bf16.msra.mxu0 %v3314
        %4438 = vmatprep.subr.bf16.mxu0 %v3318
        %4439 = vmatpush1.bf16.msra.mxu0 %v3317
        %4440 = vmatprep.subr.bf16.mxu0 %v3321
        %4441 = vmatpush1.bf16.msra.mxu0 %v3320
        %4442 = vmatprep.subr.bf16.mxu0 %v3324
        %4443 = vmatpush1.bf16.msra.mxu0 %v3323
        %4444 = vmatprep.subr.bf16.mxu0 %v3327
        %4445 = vmatpush1.bf16.msra.mxu0 %v3326
        %4446 = vmatprep.subr.bf16.mxu0 %v3330
        %4447 = vmatpush1.bf16.msra.mxu0 %v3329
        %4448 = vmatprep.mubr.bf16.mxu0 %v1133
        %4449 = vmatmul.mubr.bf16.gmra.mrb[0].mxu0 %v1132
        %v4450 = vpop.f32.mrb[0].mxu0
        %v4451 = vadd.f32 %v4408, %v4450
        %v4452 = vpop.f32.mrb[0].mxu0
        %v4453 = vadd.f32 %v4410, %v4452
        %v4454 = vpop.f32.mrb[0].mxu0
        %v4455 = vadd.f32 %v4412, %v4454
        %v4456 = vpop.f32.mrb[0].mxu0
        %v4457 = vadd.f32 %v4414, %v4456
        %4458 = vdwg.mxu0
        %4459 = vmatprep.subr.bf16.mxu0 %v3333
        %4460 = vmatpush1.bf16.msra.mxu0 %v3332
        %4461 = vmatprep.subr.bf16.mxu0 %v3336
        %4462 = vmatpush1.bf16.msra.mxu0 %v3335
        %4463 = vmatprep.subr.bf16.mxu0 %v3339
        %4464 = vmatpush1.bf16.msra.mxu0 %v3338
        %4465 = vmatprep.subr.bf16.mxu0 %v3342
        %4466 = vmatpush1.bf16.msra.mxu0 %v3341
        %4467 = vmatprep.subr.bf16.mxu0 %v3345
        %4468 = vmatpush1.bf16.msra.mxu0 %v3344
        %4469 = vmatprep.subr.bf16.mxu0 %v3348
        %4470 = vmatpush1.bf16.msra.mxu0 %v3347
        %4471 = vmatprep.subr.bf16.mxu0 %v3351
        %4472 = vmatpush1.bf16.msra.mxu0 %v3350
        %4473 = vmatprep.subr.bf16.mxu0 %v3354
        %4474 = vmatpush1.bf16.msra.mxu0 %v3353
        %4475 = vmatprep.subr.bf16.mxu0 %v3357
        %4476 = vmatpush1.bf16.msra.mxu0 %v3356
        %4477 = vmatprep.subr.bf16.mxu0 %v3360
        %4478 = vmatpush1.bf16.msra.mxu0 %v3359
        %4479 = vmatprep.subr.bf16.mxu0 %v3363
        %4480 = vmatpush1.bf16.msra.mxu0 %v3362
        %4481 = vmatprep.subr.bf16.mxu0 %v3366
        %4482 = vmatpush1.bf16.msra.mxu0 %v3365
        %4483 = vmatprep.subr.bf16.mxu0 %v3369
        %4484 = vmatpush1.bf16.msra.mxu0 %v3368
        %4485 = vmatprep.subr.bf16.mxu0 %v3372
        %4486 = vmatpush1.bf16.msra.mxu0 %v3371
        %4487 = vmatprep.subr.bf16.mxu0 %v3375
        %4488 = vmatpush1.bf16.msra.mxu0 %v3374
        %4489 = vmatprep.subr.bf16.mxu0 %v3378
        %4490 = vmatpush1.bf16.msra.mxu0 %v3377
        %4491 = vmatprep.mubr.bf16.mxu0 %v1135
        %4492 = vmatmul.mubr.bf16.gmra.mrb[0].mxu0 %v1134
        %v4493 = vpop.f32.mrb[0].mxu0
        %v4494 = vadd.f32 %v4451, %v4493
        %v4495 = vpop.f32.mrb[0].mxu0
        %v4496 = vadd.f32 %v4453, %v4495
        %v4497 = vpop.f32.mrb[0].mxu0
        %v4498 = vadd.f32 %v4455, %v4497
        %v4499 = vpop.f32.mrb[0].mxu0
        %v4500 = vadd.f32 %v4457, %v4499
        %4501 = vdwg.mxu0
        %4502 = vmatprep.subr.bf16.mxu0 %v3381
        %4503 = vmatpush1.bf16.msra.mxu0 %v3380
        %4504 = vmatprep.subr.bf16.mxu0 %v3384
        %4505 = vmatpush1.bf16.msra.mxu0 %v3383
        %4506 = vmatprep.subr.bf16.mxu0 %v3387
        %4507 = vmatpush1.bf16.msra.mxu0 %v3386
        %4508 = vmatprep.subr.bf16.mxu0 %v3390
        %4509 = vmatpush1.bf16.msra.mxu0 %v3389
        %4510 = vmatprep.subr.bf16.mxu0 %v3393
        %4511 = vmatpush1.bf16.msra.mxu0 %v3392
        %4512 = vmatprep.subr.bf16.mxu0 %v3396
        %4513 = vmatpush1.bf16.msra.mxu0 %v3395
        %4514 = vmatprep.subr.bf16.mxu0 %v3399
        %4515 = vmatpush1.bf16.msra.mxu0 %v3398
        %4516 = vmatprep.subr.bf16.mxu0 %v3402
        %4517 = vmatpush1.bf16.msra.mxu0 %v3401
        %4518 = vmatprep.subr.bf16.mxu0 %v3405
        %4519 = vmatpush1.bf16.msra.mxu0 %v3404
        %4520 = vmatprep.subr.bf16.mxu0 %v3408
        %4521 = vmatpush1.bf16.msra.mxu0 %v3407
        %4522 = vmatprep.subr.bf16.mxu0 %v3411
        %4523 = vmatpush1.bf16.msra.mxu0 %v3410
        %4524 = vmatprep.subr.bf16.mxu0 %v3414
        %4525 = vmatpush1.bf16.msra.mxu0 %v3413
        %4526 = vmatprep.subr.bf16.mxu0 %v3417
        %4527 = vmatpush1.bf16.msra.mxu0 %v3416
        %4528 = vmatprep.subr.bf16.mxu0 %v3420
        %4529 = vmatpush1.bf16.msra.mxu0 %v3419
        %4530 = vmatprep.subr.bf16.mxu0 %v3423
        %4531 = vmatpush1.bf16.msra.mxu0 %v3422
        %4532 = vmatprep.subr.bf16.mxu0 %v3426
        %4533 = vmatpush1.bf16.msra.mxu0 %v3425
        %4534 = vmatprep.mubr.bf16.mxu0 %v1137
        %4535 = vmatmul.mubr.bf16.gmra.mrb[0].mxu0 %v1136
        %v4536 = vpop.f32.mrb[0].mxu0
        %v4537 = vadd.f32 %v4494, %v4536
        %v4538 = vpop.f32.mrb[0].mxu0
        %v4539 = vadd.f32 %v4496, %v4538
        %v4540 = vpop.f32.mrb[0].mxu0
        %v4541 = vadd.f32 %v4498, %v4540
        %v4542 = vpop.f32.mrb[0].mxu0
        %v4543 = vadd.f32 %v4500, %v4542
        %4544 = vdwg.mxu0
        %4545 = vmatprep.subr.bf16.mxu0 %v3429
        %4546 = vmatpush1.bf16.msra.mxu0 %v3428
        %4547 = vmatprep.subr.bf16.mxu0 %v3432
        %4548 = vmatpush1.bf16.msra.mxu0 %v3431
        %4549 = vmatprep.subr.bf16.mxu0 %v3435
        %4550 = vmatpush1.bf16.msra.mxu0 %v3434
        %4551 = vmatprep.subr.bf16.mxu0 %v3438
        %4552 = vmatpush1.bf16.msra.mxu0 %v3437
        %4553 = vmatprep.subr.bf16.mxu0 %v3441
        %4554 = vmatpush1.bf16.msra.mxu0 %v3440
        %4555 = vmatprep.subr.bf16.mxu0 %v3444
        %4556 = vmatpush1.bf16.msra.mxu0 %v3443
        %4557 = vmatprep.subr.bf16.mxu0 %v3447
        %4558 = vmatpush1.bf16.msra.mxu0 %v3446
        %4559 = vmatprep.subr.bf16.mxu0 %v3450
        %4560 = vmatpush1.bf16.msra.mxu0 %v3449
        %4561 = vmatprep.subr.bf16.mxu0 %v3453
        %4562 = vmatpush1.bf16.msra.mxu0 %v3452
        %4563 = vmatprep.subr.bf16.mxu0 %v3456
        %4564 = vmatpush1.bf16.msra.mxu0 %v3455
        %4565 = vmatprep.subr.bf16.mxu0 %v3459
        %4566 = vmatpush1.bf16.msra.mxu0 %v3458
        %4567 = vmatprep.subr.bf16.mxu0 %v3462
        %4568 = vmatpush1.bf16.msra.mxu0 %v3461
        %4569 = vmatprep.subr.bf16.mxu0 %v3465
        %4570 = vmatpush1.bf16.msra.mxu0 %v3464
        %4571 = vmatprep.subr.bf16.mxu0 %v3468
        %4572 = vmatpush1.bf16.msra.mxu0 %v3467
        %4573 = vmatprep.subr.bf16.mxu0 %v3471
        %4574 = vmatpush1.bf16.msra.mxu0 %v3470
        %4575 = vmatprep.subr.bf16.mxu0 %v3474
        %4576 = vmatpush1.bf16.msra.mxu0 %v3473
        %4577 = vmatprep.mubr.bf16.mxu0 %v1139
        %4578 = vmatmul.mubr.bf16.gmra.mrb[0].mxu0 %v1138
        %v4579 = vpop.f32.mrb[0].mxu0
        %v4580 = vadd.f32 %v4537, %v4579
        %v4581 = vpop.f32.mrb[0].mxu0
        %v4582 = vadd.f32 %v4539, %v4581
        %v4583 = vpop.f32.mrb[0].mxu0
        %v4584 = vadd.f32 %v4541, %v4583
        %v4585 = vpop.f32.mrb[0].mxu0
        %v4586 = vadd.f32 %v4543, %v4585
        %4587 = vdwg.mxu0
        %4588 = vmatprep.subr.bf16.mxu0 %v3477
        %4589 = vmatpush1.bf16.msra.mxu0 %v3476
        %4590 = vmatprep.subr.bf16.mxu0 %v3480
        %4591 = vmatpush1.bf16.msra.mxu0 %v3479
        %4592 = vmatprep.subr.bf16.mxu0 %v3483
        %4593 = vmatpush1.bf16.msra.mxu0 %v3482
        %4594 = vmatprep.subr.bf16.mxu0 %v3486
        %4595 = vmatpush1.bf16.msra.mxu0 %v3485
        %4596 = vmatprep.subr.bf16.mxu0 %v3489
        %4597 = vmatpush1.bf16.msra.mxu0 %v3488
        %4598 = vmatprep.subr.bf16.mxu0 %v3492
        %4599 = vmatpush1.bf16.msra.mxu0 %v3491
        %4600 = vmatprep.subr.bf16.mxu0 %v3495
        %4601 = vmatpush1.bf16.msra.mxu0 %v3494
        %4602 = vmatprep.subr.bf16.mxu0 %v3498
        %4603 = vmatpush1.bf16.msra.mxu0 %v3497
        %4604 = vmatprep.subr.bf16.mxu0 %v3501
        %4605 = vmatpush1.bf16.msra.mxu0 %v3500
        %4606 = vmatprep.subr.bf16.mxu0 %v3504
        %4607 = vmatpush1.bf16.msra.mxu0 %v3503
        %4608 = vmatprep.subr.bf16.mxu0 %v3507
        %4609 = vmatpush1.bf16.msra.mxu0 %v3506
        %4610 = vmatprep.subr.bf16.mxu0 %v3510
        %4611 = vmatpush1.bf16.msra.mxu0 %v3509
        %4612 = vmatprep.subr.bf16.mxu0 %v3513
        %4613 = vmatpush1.bf16.msra.mxu0 %v3512
        %4614 = vmatprep.subr.bf16.mxu0 %v3516
        %4615 = vmatpush1.bf16.msra.mxu0 %v3515
        %4616 = vmatprep.subr.bf16.mxu0 %v3519
        %4617 = vmatpush1.bf16.msra.mxu0 %v3518
        %4618 = vmatprep.subr.bf16.mxu0 %v3522
        %4619 = vmatpush1.bf16.msra.mxu0 %v3521
        %4620 = vmatprep.mubr.bf16.mxu0 %v1141
        %4621 = vmatmul.mubr.bf16.gmra.mrb[0].mxu0 %v1140
        %v4622 = vpop.f32.mrb[0].mxu0
        %v4623 = vadd.f32 %v4580, %v4622
        %v4624 = vpop.f32.mrb[0].mxu0
        %v4625 = vadd.f32 %v4582, %v4624
        %v4626 = vpop.f32.mrb[0].mxu0
        %v4627 = vadd.f32 %v4584, %v4626
        %v4628 = vpop.f32.mrb[0].mxu0
        %v4629 = vadd.f32 %v4586, %v4628
        %4630 = vdwg.mxu0
        %4631 = vmatprep.subr.bf16.mxu0 %v3525
        %4632 = vmatpush1.bf16.msra.mxu0 %v3524
        %4633 = vmatprep.subr.bf16.mxu0 %v3528
        %4634 = vmatpush1.bf16.msra.mxu0 %v3527
        %4635 = vmatprep.subr.bf16.mxu0 %v3531
        %4636 = vmatpush1.bf16.msra.mxu0 %v3530
        %4637 = vmatprep.subr.bf16.mxu0 %v3534
        %4638 = vmatpush1.bf16.msra.mxu0 %v3533
        %4639 = vmatprep.subr.bf16.mxu0 %v3537
        %4640 = vmatpush1.bf16.msra.mxu0 %v3536
        %4641 = vmatprep.subr.bf16.mxu0 %v3540
        %4642 = vmatpush1.bf16.msra.mxu0 %v3539
        %4643 = vmatprep.subr.bf16.mxu0 %v3543
        %4644 = vmatpush1.bf16.msra.mxu0 %v3542
        %4645 = vmatprep.subr.bf16.mxu0 %v3546
        %4646 = vmatpush1.bf16.msra.mxu0 %v3545
        %4647 = vmatprep.subr.bf16.mxu0 %v3549
        %4648 = vmatpush1.bf16.msra.mxu0 %v3548
        %4649 = vmatprep.subr.bf16.mxu0 %v3552
        %4650 = vmatpush1.bf16.msra.mxu0 %v3551
        %4651 = vmatprep.subr.bf16.mxu0 %v3555
        %4652 = vmatpush1.bf16.msra.mxu0 %v3554
        %4653 = vmatprep.subr.bf16.mxu0 %v3558
        %4654 = vmatpush1.bf16.msra.mxu0 %v3557
        %4655 = vmatprep.subr.bf16.mxu0 %v3561
        %4656 = vmatpush1.bf16.msra.mxu0 %v3560
        %4657 = vmatprep.subr.bf16.mxu0 %v3564
        %4658 = vmatpush1.bf16.msra.mxu0 %v3563
        %4659 = vmatprep.subr.bf16.mxu0 %v3567
        %4660 = vmatpush1.bf16.msra.mxu0 %v3566
        %4661 = vmatprep.subr.bf16.mxu0 %v3570
        %4662 = vmatpush1.bf16.msra.mxu0 %v3569
        %4663 = vmatprep.mubr.bf16.mxu0 %v1143
        %4664 = vmatmul.mubr.bf16.gmra.mrb[0].mxu0 %v1142
        %v4665 = vpop.f32.mrb[0].mxu0
        %v4666 = vadd.f32 %v4623, %v4665
        %v4667 = vpop.f32.mrb[0].mxu0
        %v4668 = vadd.f32 %v4625, %v4667
        %v4669 = vpop.f32.mrb[0].mxu0
        %v4670 = vadd.f32 %v4627, %v4669
        %v4671 = vpop.f32.mrb[0].mxu0
        %v4672 = vadd.f32 %v4629, %v4671
        %4673 = vdwg.mxu0
        %4674 = vmatprep.subr.bf16.mxu0 %v3573
        %4675 = vmatpush1.bf16.msra.mxu0 %v3572
        %4676 = vmatprep.subr.bf16.mxu0 %v3576
        %4677 = vmatpush1.bf16.msra.mxu0 %v3575
        %4678 = vmatprep.subr.bf16.mxu0 %v3579
        %4679 = vmatpush1.bf16.msra.mxu0 %v3578
        %4680 = vmatprep.subr.bf16.mxu0 %v3582
        %4681 = vmatpush1.bf16.msra.mxu0 %v3581
        %4682 = vmatprep.subr.bf16.mxu0 %v3585
        %4683 = vmatpush1.bf16.msra.mxu0 %v3584
        %4684 = vmatprep.subr.bf16.mxu0 %v3588
        %4685 = vmatpush1.bf16.msra.mxu0 %v3587
        %4686 = vmatprep.subr.bf16.mxu0 %v3591
        %4687 = vmatpush1.bf16.msra.mxu0 %v3590
        %4688 = vmatprep.subr.bf16.mxu0 %v3594
        %4689 = vmatpush1.bf16.msra.mxu0 %v3593
        %4690 = vmatprep.subr.bf16.mxu0 %v3597
        %4691 = vmatpush1.bf16.msra.mxu0 %v3596
        %4692 = vmatprep.subr.bf16.mxu0 %v3600
        %4693 = vmatpush1.bf16.msra.mxu0 %v3599
        %4694 = vmatprep.subr.bf16.mxu0 %v3603
        %4695 = vmatpush1.bf16.msra.mxu0 %v3602
        %4696 = vmatprep.subr.bf16.mxu0 %v3606
        %4697 = vmatpush1.bf16.msra.mxu0 %v3605
        %4698 = vmatprep.subr.bf16.mxu0 %v3609
        %4699 = vmatpush1.bf16.msra.mxu0 %v3608
        %4700 = vmatprep.subr.bf16.mxu0 %v3612
        %4701 = vmatpush1.bf16.msra.mxu0 %v3611
        %4702 = vmatprep.subr.bf16.mxu0 %v3615
        %4703 = vmatpush1.bf16.msra.mxu0 %v3614
        %4704 = vmatprep.subr.bf16.mxu0 %v3618
        %4705 = vmatpush1.bf16.msra.mxu0 %v3617
        %4706 = vmatprep.mubr.bf16.mxu0 %v1145
        %4707 = vmatmul.mubr.bf16.gmra.mrb[0].mxu0 %v1144
        %v4708 = vpop.f32.mrb[0].mxu0
        %v4709 = vadd.f32 %v4666, %v4708
        %v4710 = vpop.f32.mrb[0].mxu0
        %v4711 = vadd.f32 %v4668, %v4710
        %v4712 = vpop.f32.mrb[0].mxu0
        %v4713 = vadd.f32 %v4670, %v4712
        %v4714 = vpop.f32.mrb[0].mxu0
        %v4715 = vadd.f32 %v4672, %v4714
        %4716 = vdwg.mxu0
        %4717 = vmatprep.subr.bf16.mxu0 %v3621
        %4718 = vmatpush1.bf16.msra.mxu0 %v3620
        %4719 = vmatprep.subr.bf16.mxu0 %v3624
        %4720 = vmatpush1.bf16.msra.mxu0 %v3623
        %4721 = vmatprep.subr.bf16.mxu0 %v3627
        %4722 = vmatpush1.bf16.msra.mxu0 %v3626
        %4723 = vmatprep.subr.bf16.mxu0 %v3630
        %4724 = vmatpush1.bf16.msra.mxu0 %v3629
        %4725 = vmatprep.subr.bf16.mxu0 %v3633
        %4726 = vmatpush1.bf16.msra.mxu0 %v3632
        %4727 = vmatprep.subr.bf16.mxu0 %v3636
        %4728 = vmatpush1.bf16.msra.mxu0 %v3635
        %4729 = vmatprep.subr.bf16.mxu0 %v3639
        %4730 = vmatpush1.bf16.msra.mxu0 %v3638
        %4731 = vmatprep.subr.bf16.mxu0 %v3642
        %4732 = vmatpush1.bf16.msra.mxu0 %v3641
        %4733 = vmatprep.subr.bf16.mxu0 %v3645
        %4734 = vmatpush1.bf16.msra.mxu0 %v3644
        %4735 = vmatprep.subr.bf16.mxu0 %v3648
        %4736 = vmatpush1.bf16.msra.mxu0 %v3647
        %4737 = vmatprep.subr.bf16.mxu0 %v3651
        %4738 = vmatpush1.bf16.msra.mxu0 %v3650
        %4739 = vmatprep.subr.bf16.mxu0 %v3654
        %4740 = vmatpush1.bf16.msra.mxu0 %v3653
        %4741 = vmatprep.subr.bf16.mxu0 %v3657
        %4742 = vmatpush1.bf16.msra.mxu0 %v3656
        %4743 = vmatprep.subr.bf16.mxu0 %v3660
        %4744 = vmatpush1.bf16.msra.mxu0 %v3659
        %4745 = vmatprep.subr.bf16.mxu0 %v3663
        %4746 = vmatpush1.bf16.msra.mxu0 %v3662
        %4747 = vmatprep.subr.bf16.mxu0 %v3666
        %4748 = vmatpush1.bf16.msra.mxu0 %v3665
        %4749 = vmatprep.mubr.bf16.mxu0 %v1147
        %4750 = vmatmul.mubr.bf16.gmra.mrb[0].mxu0 %v1146
        %v4751 = vpop.f32.mrb[0].mxu0
        %v4752 = vadd.f32 %v4709, %v4751
        %v4753 = vpop.f32.mrb[0].mxu0
        %v4754 = vadd.f32 %v4711, %v4753
        %v4755 = vpop.f32.mrb[0].mxu0
        %v4756 = vadd.f32 %v4713, %v4755
        %v4757 = vpop.f32.mrb[0].mxu0
        %v4758 = vadd.f32 %v4715, %v4757
        %4759 = vdwg.mxu0
        %4760 = vmatprep.subr.bf16.mxu0 0
        %4761 = vmatpush1.bf16.msra.mxu0 %v3094
        %4762 = vmatprep.subr.bf16.mxu0 0
        %4763 = vmatpush1.bf16.msra.mxu0 %v3097
        %4764 = vmatprep.subr.bf16.mxu0 0
        %4765 = vmatpush1.bf16.msra.mxu0 %v3100
        %4766 = vmatprep.subr.bf16.mxu0 0
        %4767 = vmatpush1.bf16.msra.mxu0 %v3103
        %4768 = vmatprep.subr.bf16.mxu0 0
        %4769 = vmatpush1.bf16.msra.mxu0 %v3106
        %4770 = vmatprep.subr.bf16.mxu0 0
        %4771 = vmatpush1.bf16.msra.mxu0 %v3109
        %4772 = vmatprep.subr.bf16.mxu0 0
        %4773 = vmatpush1.bf16.msra.mxu0 %v3112
        %4774 = vmatprep.subr.bf16.mxu0 0
        %4775 = vmatpush1.bf16.msra.mxu0 %v3115
        %4776 = vmatprep.subr.bf16.mxu0 0
        %4777 = vmatpush1.bf16.msra.mxu0 %v3118
        %4778 = vmatprep.subr.bf16.mxu0 0
        %4779 = vmatpush1.bf16.msra.mxu0 %v3121
        %4780 = vmatprep.subr.bf16.mxu0 0
        %4781 = vmatpush1.bf16.msra.mxu0 %v3124
        %4782 = vmatprep.subr.bf16.mxu0 0
        %4783 = vmatpush1.bf16.msra.mxu0 %v3127
        %4784 = vmatprep.subr.bf16.mxu0 0
        %4785 = vmatpush1.bf16.msra.mxu0 %v3130
        %4786 = vmatprep.subr.bf16.mxu0 0
        %4787 = vmatpush1.bf16.msra.mxu0 %v3133
        %4788 = vmatprep.subr.bf16.mxu0 0
        %4789 = vmatpush1.bf16.msra.mxu0 %v3136
        %4790 = vmatprep.subr.bf16.mxu0 0
        %4791 = vmatpush1.bf16.msra.mxu0 %v3139
        %4792 = vmatprep.mubr.bf16.mxu0 %v1125
        %4793 = vmatmul.mubr.bf16.gmra.mrb[0].mxu0 %v1124
        %v4794 = vpop.f32.mrb[0].mxu0
        %v4795 = vadd.f32 %v1048, %v4794
        %v4796 = vpop.f32.mrb[0].mxu0
        %v4797 = vpop.f32.mrb[0].mxu0
        %v4798 = vadd.f32 %v1048, %v4797
        %v4799 = vpop.f32.mrb[0].mxu0
        %4800 = vdwg.mxu0
        %4801 = vmatprep.subr.bf16.mxu0 0
        %4802 = vmatpush1.bf16.msra.mxu0 %v3142
        %4803 = vmatprep.subr.bf16.mxu0 0
        %4804 = vmatpush1.bf16.msra.mxu0 %v3145
        %4805 = vmatprep.subr.bf16.mxu0 0
        %4806 = vmatpush1.bf16.msra.mxu0 %v3148
        %4807 = vmatprep.subr.bf16.mxu0 0
        %4808 = vmatpush1.bf16.msra.mxu0 %v3151
        %4809 = vmatprep.subr.bf16.mxu0 0
        %4810 = vmatpush1.bf16.msra.mxu0 %v3154
        %4811 = vmatprep.subr.bf16.mxu0 0
        %4812 = vmatpush1.bf16.msra.mxu0 %v3157
        %4813 = vmatprep.subr.bf16.mxu0 0
        %4814 = vmatpush1.bf16.msra.mxu0 %v3160
        %4815 = vmatprep.subr.bf16.mxu0 0
        %4816 = vmatpush1.bf16.msra.mxu0 %v3163
        %4817 = vmatprep.subr.bf16.mxu0 0
        %4818 = vmatpush1.bf16.msra.mxu0 %v3166
        %4819 = vmatprep.subr.bf16.mxu0 0
        %4820 = vmatpush1.bf16.msra.mxu0 %v3169
        %4821 = vmatprep.subr.bf16.mxu0 0
        %4822 = vmatpush1.bf16.msra.mxu0 %v3172
        %4823 = vmatprep.subr.bf16.mxu0 0
        %4824 = vmatpush1.bf16.msra.mxu0 %v3175
        %4825 = vmatprep.subr.bf16.mxu0 0
        %4826 = vmatpush1.bf16.msra.mxu0 %v3178
        %4827 = vmatprep.subr.bf16.mxu0 0
        %4828 = vmatpush1.bf16.msra.mxu0 %v3181
        %4829 = vmatprep.subr.bf16.mxu0 0
        %4830 = vmatpush1.bf16.msra.mxu0 %v3184
        %4831 = vmatprep.subr.bf16.mxu0 0
        %4832 = vmatpush1.bf16.msra.mxu0 %v3187
        %4833 = vmatprep.mubr.bf16.mxu0 %v1127
        %4834 = vmatmul.mubr.bf16.gmra.mrb[0].mxu0 %v1126
        %v4835 = vpop.f32.mrb[0].mxu0
        %v4836 = vadd.f32 %v4795, %v4835
        %v4837 = vpop.f32.mrb[0].mxu0
        %v4838 = vpop.f32.mrb[0].mxu0
        %v4839 = vadd.f32 %v4798, %v4838
        %v4840 = vpop.f32.mrb[0].mxu0
        %4841 = vdwg.mxu0
        %4842 = vmatprep.subr.bf16.mxu0 0
        %4843 = vmatpush1.bf16.msra.mxu0 %v3190
        %4844 = vmatprep.subr.bf16.mxu0 0
        %4845 = vmatpush1.bf16.msra.mxu0 %v3193
        %4846 = vmatprep.subr.bf16.mxu0 0
        %4847 = vmatpush1.bf16.msra.mxu0 %v3196
        %4848 = vmatprep.subr.bf16.mxu0 0
        %4849 = vmatpush1.bf16.msra.mxu0 %v3199
        %4850 = vmatprep.subr.bf16.mxu0 0
        %4851 = vmatpush1.bf16.msra.mxu0 %v3202
        %4852 = vmatprep.subr.bf16.mxu0 0
        %4853 = vmatpush1.bf16.msra.mxu0 %v3205
        %4854 = vmatprep.subr.bf16.mxu0 0
        %4855 = vmatpush1.bf16.msra.mxu0 %v3208
        %4856 = vmatprep.subr.bf16.mxu0 0
        %4857 = vmatpush1.bf16.msra.mxu0 %v3211
        %4858 = vmatprep.subr.bf16.mxu0 0
        %4859 = vmatpush1.bf16.msra.mxu0 %v3214
        %4860 = vmatprep.subr.bf16.mxu0 0
        %4861 = vmatpush1.bf16.msra.mxu0 %v3217
        %4862 = vmatprep.subr.bf16.mxu0 0
        %4863 = vmatpush1.bf16.msra.mxu0 %v3220
        %4864 = vmatprep.subr.bf16.mxu0 0
        %4865 = vmatpush1.bf16.msra.mxu0 %v3223
        %4866 = vmatprep.subr.bf16.mxu0 0
        %4867 = vmatpush1.bf16.msra.mxu0 %v3226
        %4868 = vmatprep.subr.bf16.mxu0 0
        %4869 = vmatpush1.bf16.msra.mxu0 %v3229
        %4870 = vmatprep.subr.bf16.mxu0 0
        %4871 = vmatpush1.bf16.msra.mxu0 %v3232
        %4872 = vmatprep.subr.bf16.mxu0 0
        %4873 = vmatpush1.bf16.msra.mxu0 %v3235
        %4874 = vmatprep.mubr.bf16.mxu0 %v1129
        %4875 = vmatmul.mubr.bf16.gmra.mrb[0].mxu0 %v1128
        %v4876 = vpop.f32.mrb[0].mxu0
        %v4877 = vadd.f32 %v4836, %v4876
        %v4878 = vpop.f32.mrb[0].mxu0
        %v4879 = vpop.f32.mrb[0].mxu0
        %v4880 = vadd.f32 %v4839, %v4879
        %v4881 = vpop.f32.mrb[0].mxu0
        %4882 = vdwg.mxu0
        %4883 = vmatprep.subr.bf16.mxu0 0
        %4884 = vmatpush1.bf16.msra.mxu0 %v3238
        %4885 = vmatprep.subr.bf16.mxu0 0
        %4886 = vmatpush1.bf16.msra.mxu0 %v3241
        %4887 = vmatprep.subr.bf16.mxu0 0
        %4888 = vmatpush1.bf16.msra.mxu0 %v3244
        %4889 = vmatprep.subr.bf16.mxu0 0
        %4890 = vmatpush1.bf16.msra.mxu0 %v3247
        %4891 = vmatprep.subr.bf16.mxu0 0
        %4892 = vmatpush1.bf16.msra.mxu0 %v3250
        %4893 = vmatprep.subr.bf16.mxu0 0
        %4894 = vmatpush1.bf16.msra.mxu0 %v3253
        %4895 = vmatprep.subr.bf16.mxu0 0
        %4896 = vmatpush1.bf16.msra.mxu0 %v3256
        %4897 = vmatprep.subr.bf16.mxu0 0
        %4898 = vmatpush1.bf16.msra.mxu0 %v3259
        %4899 = vmatprep.subr.bf16.mxu0 0
        %4900 = vmatpush1.bf16.msra.mxu0 %v3262
        %4901 = vmatprep.subr.bf16.mxu0 0
        %4902 = vmatpush1.bf16.msra.mxu0 %v3265
        %4903 = vmatprep.subr.bf16.mxu0 0
        %4904 = vmatpush1.bf16.msra.mxu0 %v3268
        %4905 = vmatprep.subr.bf16.mxu0 0
        %4906 = vmatpush1.bf16.msra.mxu0 %v3271
        %4907 = vmatprep.subr.bf16.mxu0 0
        %4908 = vmatpush1.bf16.msra.mxu0 %v3274
        %4909 = vmatprep.subr.bf16.mxu0 0
        %4910 = vmatpush1.bf16.msra.mxu0 %v3277
        %4911 = vmatprep.subr.bf16.mxu0 0
        %4912 = vmatpush1.bf16.msra.mxu0 %v3280
        %4913 = vmatprep.subr.bf16.mxu0 0
        %4914 = vmatpush1.bf16.msra.mxu0 %v3283
        %4915 = vmatprep.mubr.bf16.mxu0 %v1131
        %4916 = vmatmul.mubr.bf16.gmra.mrb[0].mxu0 %v1130
        %v4917 = vpop.f32.mrb[0].mxu0
        %v4918 = vadd.f32 %v4877, %v4917
        %v4919 = vpop.f32.mrb[0].mxu0
        %v4920 = vpop.f32.mrb[0].mxu0
        %v4921 = vadd.f32 %v4880, %v4920
        %v4922 = vpop.f32.mrb[0].mxu0
        %4923 = vdwg.mxu0
        %4924 = vmatprep.subr.bf16.mxu0 0
        %4925 = vmatpush1.bf16.msra.mxu0 %v3286
        %4926 = vmatprep.subr.bf16.mxu0 0
        %4927 = vmatpush1.bf16.msra.mxu0 %v3289
        %4928 = vmatprep.subr.bf16.mxu0 0
        %4929 = vmatpush1.bf16.msra.mxu0 %v3292
        %4930 = vmatprep.subr.bf16.mxu0 0
        %4931 = vmatpush1.bf16.msra.mxu0 %v3295
        %4932 = vmatprep.subr.bf16.mxu0 0
        %4933 = vmatpush1.bf16.msra.mxu0 %v3298
        %4934 = vmatprep.subr.bf16.mxu0 0
        %4935 = vmatpush1.bf16.msra.mxu0 %v3301
        %4936 = vmatprep.subr.bf16.mxu0 0
        %4937 = vmatpush1.bf16.msra.mxu0 %v3304
        %4938 = vmatprep.subr.bf16.mxu0 0
        %4939 = vmatpush1.bf16.msra.mxu0 %v3307
        %4940 = vmatprep.subr.bf16.mxu0 0
        %4941 = vmatpush1.bf16.msra.mxu0 %v3310
        %4942 = vmatprep.subr.bf16.mxu0 0
        %4943 = vmatpush1.bf16.msra.mxu0 %v3313
        %4944 = vmatprep.subr.bf16.mxu0 0
        %4945 = vmatpush1.bf16.msra.mxu0 %v3316
        %4946 = vmatprep.subr.bf16.mxu0 0
        %4947 = vmatpush1.bf16.msra.mxu0 %v3319
        %4948 = vmatprep.subr.bf16.mxu0 0
        %4949 = vmatpush1.bf16.msra.mxu0 %v3322
        %4950 = vmatprep.subr.bf16.mxu0 0
        %4951 = vmatpush1.bf16.msra.mxu0 %v3325
        %4952 = vmatprep.subr.bf16.mxu0 0
        %4953 = vmatpush1.bf16.msra.mxu0 %v3328
        %4954 = vmatprep.subr.bf16.mxu0 0
        %4955 = vmatpush1.bf16.msra.mxu0 %v3331
        %4956 = vmatprep.mubr.bf16.mxu0 %v1133
        %4957 = vmatmul.mubr.bf16.gmra.mrb[0].mxu0 %v1132
        %v4958 = vpop.f32.mrb[0].mxu0
        %v4959 = vadd.f32 %v4918, %v4958
        %v4960 = vpop.f32.mrb[0].mxu0
        %v4961 = vpop.f32.mrb[0].mxu0
        %v4962 = vadd.f32 %v4921, %v4961
        %v4963 = vpop.f32.mrb[0].mxu0
        %4964 = vdwg.mxu0
        %4965 = vmatprep.subr.bf16.mxu0 0
        %4966 = vmatpush1.bf16.msra.mxu0 %v3334
        %4967 = vmatprep.subr.bf16.mxu0 0
        %4968 = vmatpush1.bf16.msra.mxu0 %v3337
        %4969 = vmatprep.subr.bf16.mxu0 0
        %4970 = vmatpush1.bf16.msra.mxu0 %v3340
        %4971 = vmatprep.subr.bf16.mxu0 0
        %4972 = vmatpush1.bf16.msra.mxu0 %v3343
        %4973 = vmatprep.subr.bf16.mxu0 0
        %4974 = vmatpush1.bf16.msra.mxu0 %v3346
        %4975 = vmatprep.subr.bf16.mxu0 0
        %4976 = vmatpush1.bf16.msra.mxu0 %v3349
        %4977 = vmatprep.subr.bf16.mxu0 0
        %4978 = vmatpush1.bf16.msra.mxu0 %v3352
        %4979 = vmatprep.subr.bf16.mxu0 0
        %4980 = vmatpush1.bf16.msra.mxu0 %v3355
        %4981 = vmatprep.subr.bf16.mxu0 0
        %4982 = vmatpush1.bf16.msra.mxu0 %v3358
        %4983 = vmatprep.subr.bf16.mxu0 0
        %4984 = vmatpush1.bf16.msra.mxu0 %v3361
        %4985 = vmatprep.subr.bf16.mxu0 0
        %4986 = vmatpush1.bf16.msra.mxu0 %v3364
        %4987 = vmatprep.subr.bf16.mxu0 0
        %4988 = vmatpush1.bf16.msra.mxu0 %v3367
        %4989 = vmatprep.subr.bf16.mxu0 0
        %4990 = vmatpush1.bf16.msra.mxu0 %v3370
        %4991 = vmatprep.subr.bf16.mxu0 0
        %4992 = vmatpush1.bf16.msra.mxu0 %v3373
        %4993 = vmatprep.subr.bf16.mxu0 0
        %4994 = vmatpush1.bf16.msra.mxu0 %v3376
        %4995 = vmatprep.subr.bf16.mxu0 0
        %4996 = vmatpush1.bf16.msra.mxu0 %v3379
        %4997 = vmatprep.mubr.bf16.mxu0 %v1135
        %4998 = vmatmul.mubr.bf16.gmra.mrb[0].mxu0 %v1134
        %v4999 = vpop.f32.mrb[0].mxu0
        %v5000 = vadd.f32 %v4959, %v4999
        %v5001 = vpop.f32.mrb[0].mxu0
        %v5002 = vpop.f32.mrb[0].mxu0
        %v5003 = vadd.f32 %v4962, %v5002
        %v5004 = vpop.f32.mrb[0].mxu0
        %5005 = vdwg.mxu0
        %5006 = vmatprep.subr.bf16.mxu0 0
        %5007 = vmatpush1.bf16.msra.mxu0 %v3382
        %5008 = vmatprep.subr.bf16.mxu0 0
        %5009 = vmatpush1.bf16.msra.mxu0 %v3385
        %5010 = vmatprep.subr.bf16.mxu0 0
        %5011 = vmatpush1.bf16.msra.mxu0 %v3388
        %5012 = vmatprep.subr.bf16.mxu0 0
        %5013 = vmatpush1.bf16.msra.mxu0 %v3391
        %5014 = vmatprep.subr.bf16.mxu0 0
        %5015 = vmatpush1.bf16.msra.mxu0 %v3394
        %5016 = vmatprep.subr.bf16.mxu0 0
        %5017 = vmatpush1.bf16.msra.mxu0 %v3397
        %5018 = vmatprep.subr.bf16.mxu0 0
        %5019 = vmatpush1.bf16.msra.mxu0 %v3400
        %5020 = vmatprep.subr.bf16.mxu0 0
        %5021 = vmatpush1.bf16.msra.mxu0 %v3403
        %5022 = vmatprep.subr.bf16.mxu0 0
        %5023 = vmatpush1.bf16.msra.mxu0 %v3406
        %5024 = vmatprep.subr.bf16.mxu0 0
        %5025 = vmatpush1.bf16.msra.mxu0 %v3409
        %5026 = vmatprep.subr.bf16.mxu0 0
        %5027 = vmatpush1.bf16.msra.mxu0 %v3412
        %5028 = vmatprep.subr.bf16.mxu0 0
        %5029 = vmatpush1.bf16.msra.mxu0 %v3415
        %5030 = vmatprep.subr.bf16.mxu0 0
        %5031 = vmatpush1.bf16.msra.mxu0 %v3418
        %5032 = vmatprep.subr.bf16.mxu0 0
        %5033 = vmatpush1.bf16.msra.mxu0 %v3421
        %5034 = vmatprep.subr.bf16.mxu0 0
        %5035 = vmatpush1.bf16.msra.mxu0 %v3424
        %5036 = vmatprep.subr.bf16.mxu0 0
        %5037 = vmatpush1.bf16.msra.mxu0 %v3427
        %5038 = vmatprep.mubr.bf16.mxu0 %v1137
        %5039 = vmatmul.mubr.bf16.gmra.mrb[0].mxu0 %v1136
        %v5040 = vpop.f32.mrb[0].mxu0
        %v5041 = vadd.f32 %v5000, %v5040
        %v5042 = vpop.f32.mrb[0].mxu0
        %v5043 = vpop.f32.mrb[0].mxu0
        %v5044 = vadd.f32 %v5003, %v5043
        %v5045 = vpop.f32.mrb[0].mxu0
        %5046 = vdwg.mxu0
        %5047 = vmatprep.subr.bf16.mxu0 0
        %5048 = vmatpush1.bf16.msra.mxu0 %v3430
        %5049 = vmatprep.subr.bf16.mxu0 0
        %5050 = vmatpush1.bf16.msra.mxu0 %v3433
        %5051 = vmatprep.subr.bf16.mxu0 0
        %5052 = vmatpush1.bf16.msra.mxu0 %v3436
        %5053 = vmatprep.subr.bf16.mxu0 0
        %5054 = vmatpush1.bf16.msra.mxu0 %v3439
        %5055 = vmatprep.subr.bf16.mxu0 0
        %5056 = vmatpush1.bf16.msra.mxu0 %v3442
        %5057 = vmatprep.subr.bf16.mxu0 0
        %5058 = vmatpush1.bf16.msra.mxu0 %v3445
        %5059 = vmatprep.subr.bf16.mxu0 0
        %5060 = vmatpush1.bf16.msra.mxu0 %v3448
        %5061 = vmatprep.subr.bf16.mxu0 0
        %5062 = vmatpush1.bf16.msra.mxu0 %v3451
        %5063 = vmatprep.subr.bf16.mxu0 0
        %5064 = vmatpush1.bf16.msra.mxu0 %v3454
        %5065 = vmatprep.subr.bf16.mxu0 0
        %5066 = vmatpush1.bf16.msra.mxu0 %v3457
        %5067 = vmatprep.subr.bf16.mxu0 0
        %5068 = vmatpush1.bf16.msra.mxu0 %v3460
        %5069 = vmatprep.subr.bf16.mxu0 0
        %5070 = vmatpush1.bf16.msra.mxu0 %v3463
        %5071 = vmatprep.subr.bf16.mxu0 0
        %5072 = vmatpush1.bf16.msra.mxu0 %v3466
        %5073 = vmatprep.subr.bf16.mxu0 0
        %5074 = vmatpush1.bf16.msra.mxu0 %v3469
        %5075 = vmatprep.subr.bf16.mxu0 0
        %5076 = vmatpush1.bf16.msra.mxu0 %v3472
        %5077 = vmatprep.subr.bf16.mxu0 0
        %5078 = vmatpush1.bf16.msra.mxu0 %v3475
        %5079 = vmatprep.mubr.bf16.mxu0 %v1139
        %5080 = vmatmul.mubr.bf16.gmra.mrb[0].mxu0 %v1138
        %v5081 = vpop.f32.mrb[0].mxu0
        %v5082 = vadd.f32 %v5041, %v5081
        %v5083 = vpop.f32.mrb[0].mxu0
        %v5084 = vpop.f32.mrb[0].mxu0
        %v5085 = vadd.f32 %v5044, %v5084
        %v5086 = vpop.f32.mrb[0].mxu0
        %5087 = vdwg.mxu0
        %5088 = vmatprep.subr.bf16.mxu0 0
        %5089 = vmatpush1.bf16.msra.mxu0 %v3478
        %5090 = vmatprep.subr.bf16.mxu0 0
        %5091 = vmatpush1.bf16.msra.mxu0 %v3481
        %5092 = vmatprep.subr.bf16.mxu0 0
        %5093 = vmatpush1.bf16.msra.mxu0 %v3484
        %5094 = vmatprep.subr.bf16.mxu0 0
        %5095 = vmatpush1.bf16.msra.mxu0 %v3487
        %5096 = vmatprep.subr.bf16.mxu0 0
        %5097 = vmatpush1.bf16.msra.mxu0 %v3490
        %5098 = vmatprep.subr.bf16.mxu0 0
        %5099 = vmatpush1.bf16.msra.mxu0 %v3493
        %5100 = vmatprep.subr.bf16.mxu0 0
        %5101 = vmatpush1.bf16.msra.mxu0 %v3496
        %5102 = vmatprep.subr.bf16.mxu0 0
        %5103 = vmatpush1.bf16.msra.mxu0 %v3499
        %5104 = vmatprep.subr.bf16.mxu0 0
        %5105 = vmatpush1.bf16.msra.mxu0 %v3502
        %5106 = vmatprep.subr.bf16.mxu0 0
        %5107 = vmatpush1.bf16.msra.mxu0 %v3505
        %5108 = vmatprep.subr.bf16.mxu0 0
        %5109 = vmatpush1.bf16.msra.mxu0 %v3508
        %5110 = vmatprep.subr.bf16.mxu0 0
        %5111 = vmatpush1.bf16.msra.mxu0 %v3511
        %5112 = vmatprep.subr.bf16.mxu0 0
        %5113 = vmatpush1.bf16.msra.mxu0 %v3514
        %5114 = vmatprep.subr.bf16.mxu0 0
        %5115 = vmatpush1.bf16.msra.mxu0 %v3517
        %5116 = vmatprep.subr.bf16.mxu0 0
        %5117 = vmatpush1.bf16.msra.mxu0 %v3520
        %5118 = vmatprep.subr.bf16.mxu0 0
        %5119 = vmatpush1.bf16.msra.mxu0 %v3523
        %5120 = vmatprep.mubr.bf16.mxu0 %v1141
        %5121 = vmatmul.mubr.bf16.gmra.mrb[0].mxu0 %v1140
        %v5122 = vpop.f32.mrb[0].mxu0
        %v5123 = vadd.f32 %v5082, %v5122
        %v5124 = vpop.f32.mrb[0].mxu0
        %v5125 = vpop.f32.mrb[0].mxu0
        %v5126 = vadd.f32 %v5085, %v5125
        %v5127 = vpop.f32.mrb[0].mxu0
        %5128 = vdwg.mxu0
        %5129 = vmatprep.subr.bf16.mxu0 0
        %5130 = vmatpush1.bf16.msra.mxu0 %v3526
        %5131 = vmatprep.subr.bf16.mxu0 0
        %5132 = vmatpush1.bf16.msra.mxu0 %v3529
        %5133 = vmatprep.subr.bf16.mxu0 0
        %5134 = vmatpush1.bf16.msra.mxu0 %v3532
        %5135 = vmatprep.subr.bf16.mxu0 0
        %5136 = vmatpush1.bf16.msra.mxu0 %v3535
        %5137 = vmatprep.subr.bf16.mxu0 0
        %5138 = vmatpush1.bf16.msra.mxu0 %v3538
        %5139 = vmatprep.subr.bf16.mxu0 0
        %5140 = vmatpush1.bf16.msra.mxu0 %v3541
        %5141 = vmatprep.subr.bf16.mxu0 0
        %5142 = vmatpush1.bf16.msra.mxu0 %v3544
        %5143 = vmatprep.subr.bf16.mxu0 0
        %5144 = vmatpush1.bf16.msra.mxu0 %v3547
        %5145 = vmatprep.subr.bf16.mxu0 0
        %5146 = vmatpush1.bf16.msra.mxu0 %v3550
        %5147 = vmatprep.subr.bf16.mxu0 0
        %5148 = vmatpush1.bf16.msra.mxu0 %v3553
        %5149 = vmatprep.subr.bf16.mxu0 0
        %5150 = vmatpush1.bf16.msra.mxu0 %v3556
        %5151 = vmatprep.subr.bf16.mxu0 0
        %5152 = vmatpush1.bf16.msra.mxu0 %v3559
        %5153 = vmatprep.subr.bf16.mxu0 0
        %5154 = vmatpush1.bf16.msra.mxu0 %v3562
        %5155 = vmatprep.subr.bf16.mxu0 0
        %5156 = vmatpush1.bf16.msra.mxu0 %v3565
        %5157 = vmatprep.subr.bf16.mxu0 0
        %5158 = vmatpush1.bf16.msra.mxu0 %v3568
        %5159 = vmatprep.subr.bf16.mxu0 0
        %5160 = vmatpush1.bf16.msra.mxu0 %v3571
        %5161 = vmatprep.mubr.bf16.mxu0 %v1143
        %5162 = vmatmul.mubr.bf16.gmra.mrb[0].mxu0 %v1142
        %v5163 = vpop.f32.mrb[0].mxu0
        %v5164 = vadd.f32 %v5123, %v5163
        %v5165 = vpop.f32.mrb[0].mxu0
        %v5166 = vpop.f32.mrb[0].mxu0
        %v5167 = vadd.f32 %v5126, %v5166
        %v5168 = vpop.f32.mrb[0].mxu0
        %5169 = vdwg.mxu0
        %5170 = vmatprep.subr.bf16.mxu0 0
        %5171 = vmatpush1.bf16.msra.mxu0 %v3574
        %5172 = vmatprep.subr.bf16.mxu0 0
        %5173 = vmatpush1.bf16.msra.mxu0 %v3577
        %5174 = vmatprep.subr.bf16.mxu0 0
        %5175 = vmatpush1.bf16.msra.mxu0 %v3580
        %5176 = vmatprep.subr.bf16.mxu0 0
        %5177 = vmatpush1.bf16.msra.mxu0 %v3583
        %5178 = vmatprep.subr.bf16.mxu0 0
        %5179 = vmatpush1.bf16.msra.mxu0 %v3586
        %5180 = vmatprep.subr.bf16.mxu0 0
        %5181 = vmatpush1.bf16.msra.mxu0 %v3589
        %5182 = vmatprep.subr.bf16.mxu0 0
        %5183 = vmatpush1.bf16.msra.mxu0 %v3592
        %5184 = vmatprep.subr.bf16.mxu0 0
        %5185 = vmatpush1.bf16.msra.mxu0 %v3595
        %5186 = vmatprep.subr.bf16.mxu0 0
        %5187 = vmatpush1.bf16.msra.mxu0 %v3598
        %5188 = vmatprep.subr.bf16.mxu0 0
        %5189 = vmatpush1.bf16.msra.mxu0 %v3601
        %5190 = vmatprep.subr.bf16.mxu0 0
        %5191 = vmatpush1.bf16.msra.mxu0 %v3604
        %5192 = vmatprep.subr.bf16.mxu0 0
        %5193 = vmatpush1.bf16.msra.mxu0 %v3607
        %5194 = vmatprep.subr.bf16.mxu0 0
        %5195 = vmatpush1.bf16.msra.mxu0 %v3610
        %5196 = vmatprep.subr.bf16.mxu0 0
        %5197 = vmatpush1.bf16.msra.mxu0 %v3613
        %5198 = vmatprep.subr.bf16.mxu0 0
        %5199 = vmatpush1.bf16.msra.mxu0 %v3616
        %5200 = vmatprep.subr.bf16.mxu0 0
        %5201 = vmatpush1.bf16.msra.mxu0 %v3619
        %5202 = vmatprep.mubr.bf16.mxu0 %v1145
        %5203 = vmatmul.mubr.bf16.gmra.mrb[0].mxu0 %v1144
        %v5204 = vpop.f32.mrb[0].mxu0
        %v5205 = vadd.f32 %v5164, %v5204
        %v5206 = vpop.f32.mrb[0].mxu0
        %v5207 = vpop.f32.mrb[0].mxu0
        %v5208 = vadd.f32 %v5167, %v5207
        %v5209 = vpop.f32.mrb[0].mxu0
        %5210 = vdwg.mxu0
        %5211 = vmatprep.subr.bf16.mxu0 0
        %5212 = vmatpush1.bf16.msra.mxu0 %v3622
        %5213 = vmatprep.subr.bf16.mxu0 0
        %5214 = vmatpush1.bf16.msra.mxu0 %v3625
        %5215 = vmatprep.subr.bf16.mxu0 0
        %5216 = vmatpush1.bf16.msra.mxu0 %v3628
        %5217 = vmatprep.subr.bf16.mxu0 0
        %5218 = vmatpush1.bf16.msra.mxu0 %v3631
        %5219 = vmatprep.subr.bf16.mxu0 0
        %5220 = vmatpush1.bf16.msra.mxu0 %v3634
        %5221 = vmatprep.subr.bf16.mxu0 0
        %5222 = vmatpush1.bf16.msra.mxu0 %v3637
        %5223 = vmatprep.subr.bf16.mxu0 0
        %5224 = vmatpush1.bf16.msra.mxu0 %v3640
        %5225 = vmatprep.subr.bf16.mxu0 0
        %5226 = vmatpush1.bf16.msra.mxu0 %v3643
        %5227 = vmatprep.subr.bf16.mxu0 0
        %5228 = vmatpush1.bf16.msra.mxu0 %v3646
        %5229 = vmatprep.subr.bf16.mxu0 0
        %5230 = vmatpush1.bf16.msra.mxu0 %v3649
        %5231 = vmatprep.subr.bf16.mxu0 0
        %5232 = vmatpush1.bf16.msra.mxu0 %v3652
        %5233 = vmatprep.subr.bf16.mxu0 0
        %5234 = vmatpush1.bf16.msra.mxu0 %v3655
        %5235 = vmatprep.subr.bf16.mxu0 0
        %5236 = vmatpush1.bf16.msra.mxu0 %v3658
        %5237 = vmatprep.subr.bf16.mxu0 0
        %5238 = vmatpush1.bf16.msra.mxu0 %v3661
        %5239 = vmatprep.subr.bf16.mxu0 0
        %5240 = vmatpush1.bf16.msra.mxu0 %v3664
        %5241 = vmatprep.subr.bf16.mxu0 0
        %5242 = vmatpush1.bf16.msra.mxu0 %v3667
        %5243 = vmatprep.mubr.bf16.mxu0 %v1147
        %5244 = vmatmul.mubr.bf16.gmra.mrb[0].mxu0 %v1146
        %v5245 = vpop.f32.mrb[0].mxu0
        %v5246 = vadd.f32 %v5205, %v5245
        %v5247 = vpop.f32.mrb[0].mxu0
        %v5248 = vpop.f32.mrb[0].mxu0
        %v5249 = vadd.f32 %v5208, %v5248
        %v5250 = vpop.f32.mrb[0].mxu0
        %5251 = vdwg.mxu0
        %5252 = vst [vmem:[%s238] sm:$0xff] %v4752
        %5253 = vst [vmem:[%s238 + $0x8] sm:$0xff] %v4754
        %5254 = vst [vmem:[%s238 + $0x10] sm:$0xff] %v5246
        %5255 = vst [vmem:[%s238 + $0x18] sm:$0xff] %v4756
        %5256 = vst [vmem:[%s238 + $0x20] sm:$0xff] %v4758
        %5257 = vst [vmem:[%s238 + $0x28] sm:$0xff] %v5249
        %s5258 = sand.u32 %s102, 1
        %s5259 = scalar_lea.sflag [#allocation4], %s5258
        %s5260 = sand.u32 %s102, 1
        %s5261 = smul.addr %s5260, 48
        %s5262 = scalar_lea.vmem [#allocation8], %s5261
        // Predicated region
        $region45: #{tpu_custom_call.1} parent=31 // pred_check
          %p5263 = pneg %p112
        $region46: #{tpu_custom_call.1} parent=31 // pred_check_branch
          %5265 = sbr.rel (%p5263) target = $region48
        $region47: #{tpu_custom_call.1} parent=31 // pred_region
          %s5266 = smul.u32 3, %s21
          %s5268 = ssub.s32 768, 768
          %5269 = vsyncadd %s5259, %s5268
          %s5270 = smul.addr %s5266, 128
          %s5271 = scalar_lea.hbm %s3, %s5270
          %s5272 = sshll.u32 %s5262, 4
          %s5273 = int_to_ptr.vmem [resolvable:$true] %s5272
          %5278 = dma.vmem_to_hbm [thread:$0]  %s5273, 768, %s5271, %s5259, 384, 768, 24
        $region48: #{tpu_custom_call.1} parent=31 // pred_fallthru
          _
      $region32: #{tpu_custom_call.1} parent=5 // pred_fallthru
        _
      %p5279 = scmp.le.s32.totalorder 2, %s16
      // Predicated region
      $region49: #{tpu_custom_call.1} parent=5 // pred_check
        %p5280 = pneg %p5279
      $region50: #{tpu_custom_call.1} parent=5 // pred_check_branch
        %5282 = sbr.rel (%p5280) target = $region52
      $region51: #{tpu_custom_call.1} parent=5 // pred_region
        %s5283 = ssub.s32 %s16, 2
        // Predicated region
        $region53: #{tpu_custom_call.1} parent=51 // pred_check
          %p5284 = pneg %p118
        $region54: #{tpu_custom_call.1} parent=51 // pred_check_branch
          %5286 = sbr.rel (%p5284) target = $region56
        $region55: #{tpu_custom_call.1} parent=51 // pred_region
          %s5287 = sand.u32 %s103, 1
          %s5288 = scalar_lea.sflag [#allocation4], %s5287
          %s5289 = sand.u32 %s103, 1
          %s5290 = smul.addr %s5289, 48
          %s5291 = scalar_lea.vmem [#allocation8], %s5290
          %5292 = dma.done %s5288, 768
        $region56: #{tpu_custom_call.1} parent=51 // pred_fallthru
          _
      $region52: #{tpu_custom_call.1} parent=5 // pred_fallthru
        _
    $region6: #{tpu_custom_call.1} parent=1 // loop_footer
      %s20 = sadd.s32 1, %s16
    $region7: #{tpu_custom_call.1} parent=1 // loop_footer_branch
      %15 = sbr.rel target = $region3
    $region8: #{tpu_custom_call.1} parent=1 // loop_exit
      _
    %5293 = vsyncpa [#allocation3], 1
    %s5294 = scalar_lea.sflag [#allocation3], 1
    %5295 = vsyncpa %s5294, 1
    %5296 = vsyncpa [#allocation6], 1
    %s5297 = scalar_lea.sflag [#allocation6], 1
    %5298 = vsyncpa %s5297, 1
    %5299 = vsyncpa [#allocation4], 1
    %s5300 = scalar_lea.sflag [#allocation4], 1
    %5301 = vsyncpa %s5300, 1

</llo_original>
